<compile_context>
chip_gen: v6e
topology: v6e:2x2x1
jax: 0.10.0
libtpu: 0.0.40
codegen_flags: <defaults>
</compile_context>

<pallas_src>
import functools

import jax
import jax.numpy as jnp
from jax.experimental import pallas as pl
from jax.experimental.pallas import tpu as pltpu


# ---------------------------------------------------------------------------
# Per-generation sizing helpers
# ---------------------------------------------------------------------------

@functools.lru_cache(maxsize=None)
def _vmem_capacity_bytes():
    """Physical VMEM per core (v5e/v6e: 128 MiB, v7x: 64 MiB); conservative fallback."""
    try:
        return int(pltpu.get_tpu_info().vmem_capacity_bytes)
    except Exception:  # noqa: BLE001 - fall back to the smallest (v7x-sized) budget
        return 64 * 1024 * 1024


def _vmem_limit_bytes():
    cap = _vmem_capacity_bytes()
    return int(min(100 * 1024 * 1024, max(32 * 1024 * 1024, cap * 3 // 4)))


def _round_up(x, m):
    return (x + m - 1) // m * m


def _pick_tile(dim, preferred, granule):
    """Largest multiple of `granule` <= `preferred` that divides `dim`; else `dim`."""
    if dim % granule != 0:
        return dim
    t = min(preferred, dim)
    t -= t % granule
    while t > 0 and dim % t != 0:
        t -= granule
    return t if t > 0 else dim


# ---------------------------------------------------------------------------
# Tiled matmul:  out[M, N] = x[M, K] @ w[K, N]   (bf16 operands, f32 accumulator)
# ---------------------------------------------------------------------------

def _matmul_kernel(x_ref, w_ref, o_ref, acc_ref):
    @pl.when(pl.program_id(2) == 0)
    def _():
        acc_ref[...] = jnp.zeros(acc_ref.shape, acc_ref.dtype)

    acc_ref[...] += jnp.dot(x_ref[...], w_ref[...],
                            preferred_element_type=jnp.float32)

    @pl.when(pl.program_id(2) == pl.num_programs(2) - 1)
    def _():
        o_ref[...] = acc_ref[...].astype(o_ref.dtype)


def linear(x2d, w, *, out_dtype=None, tm=512, tn=512, tk=512):
    """y = x2d @ w, tiled + pipelined.  Rows are padded to the tile size so an
    awkward M = B*S never degrades to a whole-dimension (VMEM-blowing) block."""
    m, k = x2d.shape
    k2, n = w.shape
    assert k == k2
    out_dtype = out_dtype if out_dtype is not None else x2d.dtype
    bn = _pick_tile(n, tn, 128)
    bk = _pick_tile(k, tk, 128)
    bm = min(tm, _round_up(m, 8))
    m_pad = _round_up(m, bm)
    xp = jnp.pad(x2d, ((0, m_pad - m), (0, 0))) if m_pad != m else x2d
    grid = (m_pad // bm, n // bn, k // bk)
    out = pl.pallas_call(
        _matmul_kernel,
        out_shape=jax.ShapeDtypeStruct((m_pad, n), out_dtype),
        grid_spec=pltpu.PrefetchScalarGridSpec(
            num_scalar_prefetch=0,
            grid=grid,
            in_specs=[
                pl.BlockSpec((bm, bk), lambda i, j, kk: (i, kk)),
                pl.BlockSpec((bk, bn), lambda i, j, kk: (kk, j)),
            ],
            out_specs=pl.BlockSpec((bm, bn), lambda i, j, kk: (i, j)),
            scratch_shapes=[pltpu.VMEM((bm, bn), jnp.float32)],
        ),
        compiler_params=pltpu.CompilerParams(
            dimension_semantics=("parallel", "parallel", "arbitrary"),
            vmem_limit_bytes=_vmem_limit_bytes(),
        ),
    )(xp, w)
    return out[:m] if m_pad != m else out


# ---------------------------------------------------------------------------
# Fused projection + RoPE:  x -> pre-rotated, pre-scaled q, k and v
# ---------------------------------------------------------------------------

def _proj_rope_kernel(x_ref, w_ref, rope_ref, q_ref, k_ref, v_ref, acc_ref):
    """x_ref: (bm, bk); w_ref: (5, bk, bn) = [Wq*scale, rot(Wq)*scale, Wk, rot(Wk), Wv];
    rope_ref: (2, bm, bn) = [cos, sin] rows aligned with x rows; outputs (bm, bn)."""
    kk = pl.program_id(2)

    @pl.when(kk == 0)
    def _():
        acc_ref[...] = jnp.zeros(acc_ref.shape, acc_ref.dtype)

    x = x_ref[...].astype(jnp.bfloat16)
    for p in range(5):
        acc_ref[p] += jnp.dot(x, w_ref[p], preferred_element_type=jnp.float32)

    @pl.when(kk == pl.num_programs(2) - 1)
    def _():
        cos = rope_ref[0].astype(jnp.float32)
        sin = rope_ref[1].astype(jnp.float32)
        q_ref[...] = (acc_ref[0] * cos + acc_ref[1] * sin).astype(q_ref.dtype)
        k_ref[...] = (acc_ref[2] * cos + acc_ref[3] * sin).astype(k_ref.dtype)
        v_ref[...] = acc_ref[4].astype(v_ref.dtype)


def project_qkv(x, w_stack, rope, *, out_dtype=jnp.bfloat16, tm=256, tn=512, tk=512):
    """(B,S,D) -> q, k, v each (B,S,D) in `out_dtype`; q/k already RoPE'd, q pre-scaled.
    One pass over x for all five folded projections + the RoPE epilogue."""
    b, s, d = x.shape
    m = b * s
    x2d = x.reshape(m, d)
    bm = _pick_tile(s, tm, 8)   # must divide S so rope rows track x rows per block
    bn = _pick_tile(d, tn, 128)
    bk = _pick_tile(d, tk, 128)
    s_blocks = s // bm
    grid = (m // bm, d // bn, d // bk)
    out = jax.ShapeDtypeStruct((m, d), out_dtype)
    q, k, v = pl.pallas_call(
        _proj_rope_kernel,
        out_shape=(out, out, out),
        grid_spec=pltpu.PrefetchScalarGridSpec(
            num_scalar_prefetch=0,
            grid=grid,
            in_specs=[
                pl.BlockSpec((bm, bk), lambda i, j, kk: (i, kk)),
                pl.BlockSpec((5, bk, bn), lambda i, j, kk: (0, kk, j)),
                pl.BlockSpec((2, bm, bn), lambda i, j, kk: (0, i % s_blocks, j)),
            ],
            out_specs=(
                pl.BlockSpec((bm, bn), lambda i, j, kk: (i, j)),
                pl.BlockSpec((bm, bn), lambda i, j, kk: (i, j)),
                pl.BlockSpec((bm, bn), lambda i, j, kk: (i, j)),
            ),
            scratch_shapes=[pltpu.VMEM((5, bm, bn), jnp.float32)],
        ),
        compiler_params=pltpu.CompilerParams(
            dimension_semantics=("parallel", "parallel", "arbitrary"),
            vmem_limit_bytes=_vmem_limit_bytes(),
        ),
    )(x2d, w_stack, rope)
    return q.reshape(b, s, d), k.reshape(b, s, d), v.reshape(b, s, d)


# ---------------------------------------------------------------------------
# Flash-style multi-head attention (q is pre-rotated and pre-scaled)
# ---------------------------------------------------------------------------

def _mla_attn_kernel(q_ref, k_ref, v_ref, o_ref, m_sc, l_sc, acc_sc, *, num_heads):
    hd = acc_sc.shape[-1]
    kv_i = pl.program_id(2)

    @pl.when(kv_i == 0)
    def _():
        m_sc[...] = jnp.full(m_sc.shape, -jnp.inf, m_sc.dtype)
        l_sc[...] = jnp.zeros(l_sc.shape, l_sc.dtype)
        acc_sc[...] = jnp.zeros(acc_sc.shape, acc_sc.dtype)

    # Per-head, lane-aligned ref slices (hd % 128 == 0) keep the live set small; the
    # H-way static unroll lets the scheduler overlap QK^T of head h with PV of head h-1.
    for h in range(num_heads):
        sl = slice(h * hd, (h + 1) * hd)
        s = jax.lax.dot_general(
            q_ref[0, :, sl], k_ref[0, :, sl], (((1,), (1,)), ((), ())),
            preferred_element_type=jnp.float32)                          # (bq, bkv)
        m_prev = m_sc[h]                                                  # (bq, 1)
        m_new = jnp.maximum(m_prev, jnp.max(s, axis=-1, keepdims=True))
        alpha = jnp.exp(m_prev - m_new)
        p = jnp.exp(s - m_new)
        l_sc[h] = alpha * l_sc[h] + jnp.sum(p, axis=-1, keepdims=True)
        acc_sc[h] = alpha * acc_sc[h] + jnp.dot(
            p.astype(v_ref.dtype), v_ref[0, :, sl],
            preferred_element_type=jnp.float32)
        m_sc[h] = m_new

    @pl.when(kv_i == pl.num_programs(2) - 1)
    def _():
        for h in range(num_heads):
            o_ref[0, :, h * hd:(h + 1) * hd] = (
                acc_sc[h] * pl.reciprocal(l_sc[h], approx=True)
            ).astype(o_ref.dtype)


def mla_attention(q, k, v, *, num_heads, block_q=None, block_kv=None):
    b, s, d = q.shape
    assert d % num_heads == 0
    hd = d // num_heads
    # Bigger tiles on 128 MiB-VMEM parts (v5e/v6e), conservative on v7x (64 MiB/TC).
    pref = 512 if _vmem_capacity_bytes() >= 100 * 1024 * 1024 else 256
    bq = _pick_tile(s, block_q or pref, 8)
    bkv = _pick_tile(s, block_kv or pref, 8)
    # TODO(synk): ragged / non-divisible S would need a masked last kv tile.
    grid = (b, s // bq, s // bkv)
    kern = functools.partial(_mla_attn_kernel, num_heads=num_heads)
    return pl.pallas_call(
        kern,
        out_shape=jax.ShapeDtypeStruct((b, s, d), q.dtype),
        grid_spec=pltpu.PrefetchScalarGridSpec(
            num_scalar_prefetch=0,
            grid=grid,
            in_specs=[
                pl.BlockSpec((1, bq, d), lambda bi, qi, ki: (bi, qi, 0)),
                pl.BlockSpec((1, bkv, d), lambda bi, qi, ki: (bi, ki, 0)),
                pl.BlockSpec((1, bkv, d), lambda bi, qi, ki: (bi, ki, 0)),
            ],
            out_specs=pl.BlockSpec((1, bq, d), lambda bi, qi, ki: (bi, qi, 0)),
            scratch_shapes=[
                pltpu.VMEM((num_heads, bq, 1), jnp.float32),    # running max  m
                pltpu.VMEM((num_heads, bq, 1), jnp.float32),    # running sum  l
                pltpu.VMEM((num_heads, bq, hd), jnp.float32),   # output accumulator
            ],
        ),
        compiler_params=pltpu.CompilerParams(
            dimension_semantics=("parallel", "parallel", "arbitrary"),
            vmem_limit_bytes=_vmem_limit_bytes(),
        ),
    )(q, k, v)


# ---------------------------------------------------------------------------
# Weight / RoPE-table preparation (plain JAX, cheap; cache in a real model)
# ---------------------------------------------------------------------------

def _rotate_half_cols(w):
    """x @ _rotate_half_cols(W) == rotate_half(x @ W) (interleaved even/odd convention
    of the reference): an exact signed permutation of W's output columns."""
    din, dout = w.shape
    wp = w.reshape(din, dout // 2, 2)
    return jnp.stack([-wp[..., 1], wp[..., 0]], axis=-1).reshape(din, dout)


def _rope_tables(seq_len, head_dim, num_heads, theta=10000.0):
    """cos/sin exactly as the reference (cat(freqs, freqs)), tiled to model width.
    Returns (2, S, D) = [cos; sin] in f32 (caller casts to bf16)."""
    inv_freq = 1.0 / (theta ** (jnp.arange(0, head_dim, 2, dtype=jnp.float32) / head_dim))
    t = jnp.arange(seq_len, dtype=jnp.float32)
    freqs = jnp.einsum("i,j->ij", t, inv_freq)
    emb = jnp.concatenate([freqs, freqs], axis=-1)            # (S, hd)
    cos = jnp.tile(jnp.cos(emb), (1, num_heads))              # (S, D)
    sin = jnp.tile(jnp.sin(emb), (1, num_heads))              # (S, D)
    return jnp.stack([cos, sin], axis=0)                      # (2, S, D)


def prepare_weights(params, *, num_heads, latent_dim, compute_dtype=jnp.bfloat16):
    """Fold latent down/up projections, rotate_half, and the attention scale into the
    projection weights.
    TODO(synk): in a real model precompute these once per checkpoint (and on v7x
    consider fp8 weight storage with per-tile scales) instead of per call."""
    d = params["q_w"].shape[0]
    hd = d // num_heads
    hi = jax.lax.Precision.HIGHEST
    scale = hd ** -0.5
    wq = params["q_w"] * scale                                                   # (D, D)
    wk = jnp.matmul(params["dkv_w"][:, :latent_dim], params["up_k_w"], precision=hi)
    wv = jnp.matmul(params["dkv_w"][:, latent_dim:], params["up_v_w"], precision=hi)
    w_stack = jnp.stack(
        [wq, _rotate_half_cols(wq), wk, _rotate_half_cols(wk), wv],
        axis=0).astype(compute_dtype)                                            # (5,D,D)
    w_out = params["out_w"].astype(compute_dtype)
    return w_stack, w_out


# ---------------------------------------------------------------------------
# MultiHeadLatentAttention forward (eval, no kv_cache, no mask)
# ---------------------------------------------------------------------------

def mla_forward(params, x, *, num_heads, latent_dim,
                block_q=None, block_kv=None, proj_block_m=256):
    b, s, d = x.shape
    assert d % num_heads == 0
    hd = d // num_heads
    cdt = jnp.bfloat16

    w_stack, w_out = prepare_weights(params, num_heads=num_heads,
                                     latent_dim=latent_dim, compute_dtype=cdt)
    rope = _rope_tables(s, hd, num_heads).astype(cdt)                     # (2, S, D)

    # One fused pass over x: pre-rotated, pre-scaled q/k and v in bf16.
    q, k, v = project_qkv(x, w_stack, rope, out_dtype=cdt, tm=proj_block_m)
    o = mla_attention(q, k, v, num_heads=num_heads,
                      block_q=block_q, block_kv=block_kv)                 # (B,S,D) bf16
    out = linear(o.reshape(b * s, d), w_out, out_dtype=x.dtype)
    return out.reshape(b, s, d)                     # reference returns (out, None)


# ---------------------------------------------------------------------------
# Pure-JAX f32 reference (mirrors the PyTorch module op-for-op) -- for checking
# ---------------------------------------------------------------------------

def _rotate_half_ref(t):
    t1, t2 = t[..., 0::2], t[..., 1::2]
    return jnp.stack([-t2, t1], axis=-1).reshape(t.shape)


def mla_reference(params, x, *, num_heads, latent_dim):
    hi = jax.lax.Precision.HIGHEST
    b, s, d = x.shape
    hd = d // num_heads
    q = jnp.einsum("bsd,de->bse", x, params["q_w"], precision=hi)
    dkv = jnp.einsum("bsd,de->bse", x, params["dkv_w"], precision=hi)
    d_k, d_v = dkv[..., :latent_dim], dkv[..., latent_dim:]
    k = jnp.einsum("bsl,ld->bsd", d_k, params["up_k_w"], precision=hi)
    v = jnp.einsum("bsl,ld->bsd", d_v, params["up_v_w"], precision=hi)
    q = q.reshape(b, s, num_heads, hd).transpose(0, 2, 1, 3)
    k = k.reshape(b, s, num_heads, hd).transpose(0, 2, 1, 3)
    v = v.reshape(b, s, num_heads, hd).transpose(0, 2, 1, 3)
    inv_freq = 1.0 / (10000.0 ** (jnp.arange(0, hd, 2, dtype=jnp.float32) / hd))
    freqs = jnp.einsum("i,j->ij", jnp.arange(s, dtype=jnp.float32), inv_freq)
    emb = jnp.concatenate([freqs, freqs], axis=-1)
    sin, cos = jnp.sin(emb), jnp.cos(emb)
    q = q * cos + _rotate_half_ref(q) * sin
    k = k * cos + _rotate_half_ref(k) * sin
    sc = jnp.einsum("bhqd,bhkd->bhqk", q, k, precision=hi) * (hd ** -0.5)
    p = jax.nn.softmax(sc, axis=-1)
    o = jnp.einsum("bhqk,bhkd->bhqd", p, v, precision=hi)
    o = o.transpose(0, 2, 1, 3).reshape(b, s, d)
    return jnp.einsum("bsd,de->bse", o, params["out_w"], precision=hi)


# ---------------------------------------------------------------------------
# Demo
# ---------------------------------------------------------------------------

if __name__ == "__main__":
    # Small shapes; head_dim = 128 keeps every in-kernel feature slice lane-aligned.
    # Blocks are chosen so the multi-step online-softmax kv loop and the per-batch
    # rope row-block mapping are both exercised.
    B, S, D = 2, 64, 256
    NUM_HEADS = 2            # head_dim = 128
    LATENT_DIM = 64

    key = jax.random.PRNGKey(0)
    kx, kq, kd, kku, kvu, ko = jax.random.split(key, 6)
    x = jax.random.normal(kx, (B, S, D), jnp.float32)
    params = {
        "q_w": jax.random.normal(kq, (D, D), jnp.float32) * 0.05,
        "dkv_w": jax.random.normal(kd, (D, 2 * LATENT_DIM), jnp.float32) * 0.05,
        "up_k_w": jax.random.normal(kku, (LATENT_DIM, D), jnp.float32) * 0.05,
        "up_v_w": jax.random.normal(kvu, (LATENT_DIM, D), jnp.float32) * 0.05,
        "out_w": jax.random.normal(ko, (D, D), jnp.float32) * 0.05,
    }

    fwd = jax.jit(functools.partial(
        mla_forward, num_heads=NUM_HEADS, latent_dim=LATENT_DIM,
        block_q=32, block_kv=32, proj_block_m=32))
    out = jax.block_until_ready(fwd(params, x))
    assert out.shape == (B, S, D) and out.dtype == x.dtype

    # Sanity check against the pure-JAX f32 mirror of the PyTorch module
    # (kernel computes in bf16, so the tolerance is sized for bf16 matmul chains).
    ref = jax.block_until_ready(
        mla_reference(params, x, num_heads=NUM_HEADS, latent_dim=LATENT_DIM))
    max_err = float(jnp.max(jnp.abs(out - ref)))
    ref_scale = float(jnp.max(jnp.abs(ref)))
    assert max_err <= 2e-2 * ref_scale + 2e-3, (max_err, ref_scale)

    print("KERNEL_OK")
</pallas_src>

<mosaic_0001>
module attributes {stable_mosaic.version = 11 : i64} {
  func.func @_proj_rope_kernel(%arg0: i32, %arg1: i32, %arg2: i32, %arg3: memref<32x256xf32, #tpu.memory_space<vmem>>, %arg4: memref<5x256x256xbf16, #tpu.memory_space<vmem>>, %arg5: memref<2x32x256xbf16, #tpu.memory_space<vmem>>, %arg6: memref<32x256xbf16, #tpu.memory_space<vmem>>, %arg7: memref<32x256xbf16, #tpu.memory_space<vmem>>, %arg8: memref<32x256xbf16, #tpu.memory_space<vmem>>, %arg9: memref<5x32x256xf32, #tpu.memory_space<vmem>>) attributes {dimension_semantics = [#tpu.dimension_semantics<parallel>, #tpu.dimension_semantics<parallel>, #tpu.dimension_semantics<arbitrary>], iteration_bounds = array<i64: 4, 1, 1>, scalar_prefetch = 0 : i64, scratch_operands = 1 : i64, tpu.core_type = #tpu.core_type<tc>, window_params = [{transform_indices = @transform_0, window_bounds = array<i64: 32, 256>}, {transform_indices = @transform_1, window_bounds = array<i64: 5, 256, 256>}, {transform_indices = @transform_2, window_bounds = array<i64: 2, 32, 256>}, {transform_indices = @transform_3, window_bounds = array<i64: 32, 256>}, {transform_indices = @transform_4, window_bounds = array<i64: 32, 256>}, {transform_indices = @transform_5, window_bounds = array<i64: 32, 256>}]} {
    %c0_i32 = arith.constant 0 : i32
    %0 = arith.cmpi eq, %arg2, %c0_i32 : i32
    %1 = arith.extui %0 : i1 to i32
    %c0_i32_0 = arith.constant 0 : i32
    %2 = arith.cmpi ne, %1, %c0_i32_0 : i32
    scf.if %2 {
      %cst_49 = arith.constant 0.000000e+00 : f32
      %53 = vector.broadcast %cst_49 : f32 to vector<5x32x256xf32>
      %c0_50 = arith.constant 0 : index
      %c0_51 = arith.constant 0 : index
      %c0_52 = arith.constant 0 : index
      %54 = vector.load %arg9[%c0_50, %c0_51, %c0_52] : memref<5x32x256xf32, #tpu.memory_space<vmem>>, vector<5x32x256xf32>
      tpu.vector_store %arg9[%c0_50, %c0_51, %c0_52], %53 {strides = array<i32>} : memref<5x32x256xf32, #tpu.memory_space<vmem>>, vector<5x32x256xf32>,
    } else {
    }
    %c0 = arith.constant 0 : index
    %c0_1 = arith.constant 0 : index
    %3 = vector.load %arg3[%c0, %c0_1] : memref<32x256xf32, #tpu.memory_space<vmem>>, vector<32x256xf32>
    %4 = arith.truncf %3 : vector<32x256xf32> to vector<32x256xbf16>
    %c0_2 = arith.constant 0 : index
    %c0_3 = arith.constant 0 : index
    %c0_4 = arith.constant 0 : index
    %5 = vector.load %arg9[%c0_2, %c0_3, %c0_4] : memref<5x32x256xf32, #tpu.memory_space<vmem>>, vector<1x32x256xf32>
    %6 = vector.shape_cast %5 : vector<1x32x256xf32> to vector<32x256xf32>
    %c0_5 = arith.constant 0 : index
    %c0_6 = arith.constant 0 : index
    %c0_7 = arith.constant 0 : index
    %7 = vector.load %arg4[%c0_5, %c0_6, %c0_7] : memref<5x256x256xbf16, #tpu.memory_space<vmem>>, vector<1x256x256xbf16>
    %8 = vector.shape_cast %7 : vector<1x256x256xbf16> to vector<256x256xbf16>
    %cst = arith.constant dense<0.000000e+00> : vector<32x256xf32>
    %9 = tpu.matmul %4, %8, %cst {dimension_numbers = #tpu.dot_dimension_numbers<[1], [0], [0], [1], [0, 0, 1, 1], [], []>} : vector<32x256xbf16>, vector<256x256xbf16>, vector<32x256xf32> -> vector<32x256xf32>
    %10 = arith.addf %6, %9 : vector<32x256xf32>
    %c0_8 = arith.constant 0 : index
    %c0_9 = arith.constant 0 : index
    %c0_10 = arith.constant 0 : index
    %11 = vector.load %arg9[%c0_8, %c0_9, %c0_10] : memref<5x32x256xf32, #tpu.memory_space<vmem>>, vector<1x32x256xf32>
    %12 = vector.shape_cast %11 : vector<1x32x256xf32> to vector<32x256xf32>
    %13 = vector.shape_cast %10 : vector<32x256xf32> to vector<1x32x256xf32>
    tpu.vector_store %arg9[%c0_8, %c0_9, %c0_10], %13 {strides = array<i32>} : memref<5x32x256xf32, #tpu.memory_space<vmem>>, vector<1x32x256xf32>,
    %c1 = arith.constant 1 : index
    %c0_11 = arith.constant 0 : index
    %c0_12 = arith.constant 0 : index
    %14 = vector.load %arg9[%c1, %c0_11, %c0_12] : memref<5x32x256xf32, #tpu.memory_space<vmem>>, vector<1x32x256xf32>
    %15 = vector.shape_cast %14 : vector<1x32x256xf32> to vector<32x256xf32>
    %c1_13 = arith.constant 1 : index
    %c0_14 = arith.constant 0 : index
    %c0_15 = arith.constant 0 : index
    %16 = vector.load %arg4[%c1_13, %c0_14, %c0_15] : memref<5x256x256xbf16, #tpu.memory_space<vmem>>, vector<1x256x256xbf16>
    %17 = vector.shape_cast %16 : vector<1x256x256xbf16> to vector<256x256xbf16>
    %cst_16 = arith.constant dense<0.000000e+00> : vector<32x256xf32>
    %18 = tpu.matmul %4, %17, %cst_16 {dimension_numbers = #tpu.dot_dimension_numbers<[1], [0], [0], [1], [0, 0, 1, 1], [], []>} : vector<32x256xbf16>, vector<256x256xbf16>, vector<32x256xf32> -> vector<32x256xf32>
    %19 = arith.addf %15, %18 : vector<32x256xf32>
    %c1_17 = arith.constant 1 : index
    %c0_18 = arith.constant 0 : index
    %c0_19 = arith.constant 0 : index
    %20 = vector.load %arg9[%c1_17, %c0_18, %c0_19] : memref<5x32x256xf32, #tpu.memory_space<vmem>>, vector<1x32x256xf32>
    %21 = vector.shape_cast %20 : vector<1x32x256xf32> to vector<32x256xf32>
    %22 = vector.shape_cast %19 : vector<32x256xf32> to vector<1x32x256xf32>
    tpu.vector_store %arg9[%c1_17, %c0_18, %c0_19], %22 {strides = array<i32>} : memref<5x32x256xf32, #tpu.memory_space<vmem>>, vector<1x32x256xf32>,
    %c2 = arith.constant 2 : index
    %c0_20 = arith.constant 0 : index
    %c0_21 = arith.constant 0 : index
    %23 = vector.load %arg9[%c2, %c0_20, %c0_21] : memref<5x32x256xf32, #tpu.memory_space<vmem>>, vector<1x32x256xf32>
    %24 = vector.shape_cast %23 : vector<1x32x256xf32> to vector<32x256xf32>
    %c2_22 = arith.constant 2 : index
    %c0_23 = arith.constant 0 : index
    %c0_24 = arith.constant 0 : index
    %25 = vector.load %arg4[%c2_22, %c0_23, %c0_24] : memref<5x256x256xbf16, #tpu.memory_space<vmem>>, vector<1x256x256xbf16>
    %26 = vector.shape_cast %25 : vector<1x256x256xbf16> to vector<256x256xbf16>
    %cst_25 = arith.constant dense<0.000000e+00> : vector<32x256xf32>
    %27 = tpu.matmul %4, %26, %cst_25 {dimension_numbers = #tpu.dot_dimension_numbers<[1], [0], [0], [1], [0, 0, 1, 1], [], []>} : vector<32x256xbf16>, vector<256x256xbf16>, vector<32x256xf32> -> vector<32x256xf32>
    %28 = arith.addf %24, %27 : vector<32x256xf32>
    %c2_26 = arith.constant 2 : index
    %c0_27 = arith.constant 0 : index
    %c0_28 = arith.constant 0 : index
    %29 = vector.load %arg9[%c2_26, %c0_27, %c0_28] : memref<5x32x256xf32, #tpu.memory_space<vmem>>, vector<1x32x256xf32>
    %30 = vector.shape_cast %29 : vector<1x32x256xf32> to vector<32x256xf32>
    %31 = vector.shape_cast %28 : vector<32x256xf32> to vector<1x32x256xf32>
    tpu.vector_store %arg9[%c2_26, %c0_27, %c0_28], %31 {strides = array<i32>} : memref<5x32x256xf32, #tpu.memory_space<vmem>>, vector<1x32x256xf32>,
    %c3 = arith.constant 3 : index
    %c0_29 = arith.constant 0 : index
    %c0_30 = arith.constant 0 : index
    %32 = vector.load %arg9[%c3, %c0_29, %c0_30] : memref<5x32x256xf32, #tpu.memory_space<vmem>>, vector<1x32x256xf32>
    %33 = vector.shape_cast %32 : vector<1x32x256xf32> to vector<32x256xf32>
    %c3_31 = arith.constant 3 : index
    %c0_32 = arith.constant 0 : index
    %c0_33 = arith.constant 0 : index
    %34 = vector.load %arg4[%c3_31, %c0_32, %c0_33] : memref<5x256x256xbf16, #tpu.memory_space<vmem>>, vector<1x256x256xbf16>
    %35 = vector.shape_cast %34 : vector<1x256x256xbf16> to vector<256x256xbf16>
    %cst_34 = arith.constant dense<0.000000e+00> : vector<32x256xf32>
    %36 = tpu.matmul %4, %35, %cst_34 {dimension_numbers = #tpu.dot_dimension_numbers<[1], [0], [0], [1], [0, 0, 1, 1], [], []>} : vector<32x256xbf16>, vector<256x256xbf16>, vector<32x256xf32> -> vector<32x256xf32>
    %37 = arith.addf %33, %36 : vector<32x256xf32>
    %c3_35 = arith.constant 3 : index
    %c0_36 = arith.constant 0 : index
    %c0_37 = arith.constant 0 : index
    %38 = vector.load %arg9[%c3_35, %c0_36, %c0_37] : memref<5x32x256xf32, #tpu.memory_space<vmem>>, vector<1x32x256xf32>
    %39 = vector.shape_cast %38 : vector<1x32x256xf32> to vector<32x256xf32>
    %40 = vector.shape_cast %37 : vector<32x256xf32> to vector<1x32x256xf32>
    tpu.vector_store %arg9[%c3_35, %c0_36, %c0_37], %40 {strides = array<i32>} : memref<5x32x256xf32, #tpu.memory_space<vmem>>, vector<1x32x256xf32>,
    %c4 = arith.constant 4 : index
    %c0_38 = arith.constant 0 : index
    %c0_39 = arith.constant 0 : index
    %41 = vector.load %arg9[%c4, %c0_38, %c0_39] : memref<5x32x256xf32, #tpu.memory_space<vmem>>, vector<1x32x256xf32>
    %42 = vector.shape_cast %41 : vector<1x32x256xf32> to vector<32x256xf32>
    %c4_40 = arith.constant 4 : index
    %c0_41 = arith.constant 0 : index
    %c0_42 = arith.constant 0 : index
    %43 = vector.load %arg4[%c4_40, %c0_41, %c0_42] : memref<5x256x256xbf16, #tpu.memory_space<vmem>>, vector<1x256x256xbf16>
    %44 = vector.shape_cast %43 : vector<1x256x256xbf16> to vector<256x256xbf16>
    %cst_43 = arith.constant dense<0.000000e+00> : vector<32x256xf32>
    %45 = tpu.matmul %4, %44, %cst_43 {dimension_numbers = #tpu.dot_dimension_numbers<[1], [0], [0], [1], [0, 0, 1, 1], [], []>} : vector<32x256xbf16>, vector<256x256xbf16>, vector<32x256xf32> -> vector<32x256xf32>
    %46 = arith.addf %42, %45 : vector<32x256xf32>
    %c4_44 = arith.constant 4 : index
    %c0_45 = arith.constant 0 : index
    %c0_46 = arith.constant 0 : index
    %47 = vector.load %arg9[%c4_44, %c0_45, %c0_46] : memref<5x32x256xf32, #tpu.memory_space<vmem>>, vector<1x32x256xf32>
    %48 = vector.shape_cast %47 : vector<1x32x256xf32> to vector<32x256xf32>
    %49 = vector.shape_cast %46 : vector<32x256xf32> to vector<1x32x256xf32>
    tpu.vector_store %arg9[%c4_44, %c0_45, %c0_46], %49 {strides = array<i32>} : memref<5x32x256xf32, #tpu.memory_space<vmem>>, vector<1x32x256xf32>,
    %c0_i32_47 = arith.constant 0 : i32
    %50 = arith.cmpi eq, %arg2, %c0_i32_47 : i32
    %51 = arith.extui %50 : i1 to i32
    %c0_i32_48 = arith.constant 0 : i32
    %52 = arith.cmpi ne, %51, %c0_i32_48 : i32
    scf.if %52 {
      %c0_49 = arith.constant 0 : index
      %c0_50 = arith.constant 0 : index
      %c0_51 = arith.constant 0 : index
      %53 = vector.load %arg5[%c0_49, %c0_50, %c0_51] : memref<2x32x256xbf16, #tpu.memory_space<vmem>>, vector<1x32x256xbf16>
      %54 = vector.shape_cast %53 : vector<1x32x256xbf16> to vector<32x256xbf16>
      %55 = arith.extf %54 : vector<32x256xbf16> to vector<32x256xf32>
      %c1_52 = arith.constant 1 : index
      %c0_53 = arith.constant 0 : index
      %c0_54 = arith.constant 0 : index
      %56 = vector.load %arg5[%c1_52, %c0_53, %c0_54] : memref<2x32x256xbf16, #tpu.memory_space<vmem>>, vector<1x32x256xbf16>
      %57 = vector.shape_cast %56 : vector<1x32x256xbf16> to vector<32x256xbf16>
      %58 = arith.extf %57 : vector<32x256xbf16> to vector<32x256xf32>
      %c0_55 = arith.constant 0 : index
      %c0_56 = arith.constant 0 : index
      %c0_57 = arith.constant 0 : index
      %59 = vector.load %arg9[%c0_55, %c0_56, %c0_57] : memref<5x32x256xf32, #tpu.memory_space<vmem>>, vector<1x32x256xf32>
      %60 = vector.shape_cast %59 : vector<1x32x256xf32> to vector<32x256xf32>
      %61 = arith.mulf %60, %55 : vector<32x256xf32>
      %c1_58 = arith.constant 1 : index
      %c0_59 = arith.constant 0 : index
      %c0_60 = arith.constant 0 : index
      %62 = vector.load %arg9[%c1_58, %c0_59, %c0_60] : memref<5x32x256xf32, #tpu.memory_space<vmem>>, vector<1x32x256xf32>
      %63 = vector.shape_cast %62 : vector<1x32x256xf32> to vector<32x256xf32>
      %64 = arith.mulf %63, %58 : vector<32x256xf32>
      %65 = arith.addf %61, %64 : vector<32x256xf32>
      %66 = arith.truncf %65 : vector<32x256xf32> to vector<32x256xbf16>
      %c0_61 = arith.constant 0 : index
      %c0_62 = arith.constant 0 : index
      %67 = vector.load %arg6[%c0_61, %c0_62] : memref<32x256xbf16, #tpu.memory_space<vmem>>, vector<32x256xbf16>
      tpu.vector_store %arg6[%c0_61, %c0_62], %66 {strides = array<i32>} : memref<32x256xbf16, #tpu.memory_space<vmem>>, vector<32x256xbf16>,
      %c2_63 = arith.constant 2 : index
      %c0_64 = arith.constant 0 : index
      %c0_65 = arith.constant 0 : index
      %68 = vector.load %arg9[%c2_63, %c0_64, %c0_65] : memref<5x32x256xf32, #tpu.memory_space<vmem>>, vector<1x32x256xf32>
      %69 = vector.shape_cast %68 : vector<1x32x256xf32> to vector<32x256xf32>
      %70 = arith.mulf %69, %55 : vector<32x256xf32>
      %c3_66 = arith.constant 3 : index
      %c0_67 = arith.constant 0 : index
      %c0_68 = arith.constant 0 : index
      %71 = vector.load %arg9[%c3_66, %c0_67, %c0_68] : memref<5x32x256xf32, #tpu.memory_space<vmem>>, vector<1x32x256xf32>
      %72 = vector.shape_cast %71 : vector<1x32x256xf32> to vector<32x256xf32>
      %73 = arith.mulf %72, %58 : vector<32x256xf32>
      %74 = arith.addf %70, %73 : vector<32x256xf32>
      %75 = arith.truncf %74 : vector<32x256xf32> to vector<32x256xbf16>
      %c0_69 = arith.constant 0 : index
      %c0_70 = arith.constant 0 : index
      %76 = vector.load %arg7[%c0_69, %c0_70] : memref<32x256xbf16, #tpu.memory_space<vmem>>, vector<32x256xbf16>
      tpu.vector_store %arg7[%c0_69, %c0_70], %75 {strides = array<i32>} : memref<32x256xbf16, #tpu.memory_space<vmem>>, vector<32x256xbf16>,
      %c4_71 = arith.constant 4 : index
      %c0_72 = arith.constant 0 : index
      %c0_73 = arith.constant 0 : index
      %77 = vector.load %arg9[%c4_71, %c0_72, %c0_73] : memref<5x32x256xf32, #tpu.memory_space<vmem>>, vector<1x32x256xf32>
      %78 = vector.shape_cast %77 : vector<1x32x256xf32> to vector<32x256xf32>
      %79 = arith.truncf %78 : vector<32x256xf32> to vector<32x256xbf16>
      %c0_74 = arith.constant 0 : index
      %c0_75 = arith.constant 0 : index
      %80 = vector.load %arg8[%c0_74, %c0_75] : memref<32x256xbf16, #tpu.memory_space<vmem>>, vector<32x256xbf16>
      tpu.vector_store %arg8[%c0_74, %c0_75], %79 {strides = array<i32>} : memref<32x256xbf16, #tpu.memory_space<vmem>>, vector<32x256xbf16>,
    } else {
    }
    return
  }
  func.func @transform_0(%arg0: i32, %arg1: i32, %arg2: i32) -> (i32, i32) {
    %c0_i32 = arith.constant 0 : i32
    return %arg0, %arg2 : i32, i32
  }
  func.func @transform_1(%arg0: i32, %arg1: i32, %arg2: i32) -> (i32, i32, i32) {
    %c0_i32 = arith.constant 0 : i32
    %c0_i32_0 = arith.constant 0 : i32
    return %c0_i32, %arg2, %arg1 : i32, i32, i32
  }
  func.func @transform_2(%arg0: i32, %arg1: i32, %arg2: i32) -> (i32, i32, i32) {
    %c2_i32 = arith.constant 2 : i32
    %c0_i32 = arith.constant 0 : i32
    %0 = arith.cmpi eq, %c2_i32, %c0_i32 : i32
    %c1_i32 = arith.constant 1 : i32
    %1 = arith.select %0, %c1_i32, %c2_i32 : i32
    %2 = arith.remsi %arg0, %1 : i32
    %c0_i32_0 = arith.constant 0 : i32
    %3 = arith.cmpi ne, %2, %c0_i32_0 : i32
    %c0_i32_1 = arith.constant 0 : i32
    %4 = arith.cmpi slt, %2, %c0_i32_1 : i32
    %c0_i32_2 = arith.constant 0 : i32
    %5 = arith.cmpi slt, %1, %c0_i32_2 : i32
    %6 = arith.xori %4, %5 : i1
    %7 = arith.andi %6, %3 : i1
    %8 = arith.addi %2, %1 : i32
    %9 = arith.select %7, %8, %2 : i32
    %c0_i32_3 = arith.constant 0 : i32
    %c0_i32_4 = arith.constant 0 : i32
    return %c0_i32_3, %9, %arg1 : i32, i32, i32
  }
  func.func @transform_3(%arg0: i32, %arg1: i32, %arg2: i32) -> (i32, i32) {
    %c0_i32 = arith.constant 0 : i32
    return %arg0, %arg1 : i32, i32
  }
  func.func @transform_4(%arg0: i32, %arg1: i32, %arg2: i32) -> (i32, i32) {
    %c0_i32 = arith.constant 0 : i32
    return %arg0, %arg1 : i32, i32
  }
  func.func @transform_5(%arg0: i32, %arg1: i32, %arg2: i32) -> (i32, i32) {
    %c0_i32 = arith.constant 0 : i32
    return %arg0, %arg1 : i32, i32
  }
}

module attributes {stable_mosaic.version = 11 : i64} {
  func.func @_matmul_kernel(%arg0: i32, %arg1: i32, %arg2: i32, %arg3: memref<128x256xbf16, #tpu.memory_space<vmem>>, %arg4: memref<256x256xbf16, #tpu.memory_space<vmem>>, %arg5: memref<128x256xf32, #tpu.memory_space<vmem>>, %arg6: memref<128x256xf32, #tpu.memory_space<vmem>>) attributes {dimension_semantics = [#tpu.dimension_semantics<parallel>, #tpu.dimension_semantics<parallel>, #tpu.dimension_semantics<arbitrary>], iteration_bounds = array<i64: 1, 1, 1>, scalar_prefetch = 0 : i64, scratch_operands = 1 : i64, tpu.core_type = #tpu.core_type<tc>, window_params = [{transform_indices = @transform_0, window_bounds = array<i64: 128, 256>}, {transform_indices = @transform_1, window_bounds = array<i64: 256, 256>}, {transform_indices = @transform_2, window_bounds = array<i64: 128, 256>}]} {
    %c0_i32 = arith.constant 0 : i32
    %0 = arith.cmpi eq, %arg2, %c0_i32 : i32
    %1 = arith.extui %0 : i1 to i32
    %c0_i32_0 = arith.constant 0 : i32
    %2 = arith.cmpi ne, %1, %c0_i32_0 : i32
    scf.if %2 {
      %cst_10 = arith.constant 0.000000e+00 : f32
      %12 = vector.broadcast %cst_10 : f32 to vector<128x256xf32>
      %c0_11 = arith.constant 0 : index
      %c0_12 = arith.constant 0 : index
      %13 = vector.load %arg6[%c0_11, %c0_12] : memref<128x256xf32, #tpu.memory_space<vmem>>, vector<128x256xf32>
      tpu.vector_store %arg6[%c0_11, %c0_12], %12 {strides = array<i32>} : memref<128x256xf32, #tpu.memory_space<vmem>>, vector<128x256xf32>,
    } else {
    }
    %c0 = arith.constant 0 : index
    %c0_1 = arith.constant 0 : index
    %3 = vector.load %arg6[%c0, %c0_1] : memref<128x256xf32, #tpu.memory_space<vmem>>, vector<128x256xf32>
    %c0_2 = arith.constant 0 : index
    %c0_3 = arith.constant 0 : index
    %4 = vector.load %arg3[%c0_2, %c0_3] : memref<128x256xbf16, #tpu.memory_space<vmem>>, vector<128x256xbf16>
    %c0_4 = arith.constant 0 : index
    %c0_5 = arith.constant 0 : index
    %5 = vector.load %arg4[%c0_4, %c0_5] : memref<256x256xbf16, #tpu.memory_space<vmem>>, vector<256x256xbf16>
    %cst = arith.constant dense<0.000000e+00> : vector<128x256xf32>
    %6 = tpu.matmul %4, %5, %cst {dimension_numbers = #tpu.dot_dimension_numbers<[1], [0], [0], [1], [0, 0, 1, 1], [], []>} : vector<128x256xbf16>, vector<256x256xbf16>, vector<128x256xf32> -> vector<128x256xf32>
    %7 = arith.addf %3, %6 : vector<128x256xf32>
    %c0_6 = arith.constant 0 : index
    %c0_7 = arith.constant 0 : index
    %8 = vector.load %arg6[%c0_6, %c0_7] : memref<128x256xf32, #tpu.memory_space<vmem>>, vector<128x256xf32>
    tpu.vector_store %arg6[%c0_6, %c0_7], %7 {strides = array<i32>} : memref<128x256xf32, #tpu.memory_space<vmem>>, vector<128x256xf32>,
    %c0_i32_8 = arith.constant 0 : i32
    %9 = arith.cmpi eq, %arg2, %c0_i32_8 : i32
    %10 = arith.extui %9 : i1 to i32
    %c0_i32_9 = arith.constant 0 : i32
    %11 = arith.cmpi ne, %10, %c0_i32_9 : i32
    scf.if %11 {
      %c0_10 = arith.constant 0 : index
      %c0_11 = arith.constant 0 : index
      %12 = vector.load %arg6[%c0_10, %c0_11] : memref<128x256xf32, #tpu.memory_space<vmem>>, vector<128x256xf32>
      %c0_12 = arith.constant 0 : index
      %c0_13 = arith.constant 0 : index
      %13 = vector.load %arg5[%c0_12, %c0_13] : memref<128x256xf32, #tpu.memory_space<vmem>>, vector<128x256xf32>
      tpu.vector_store %arg5[%c0_12, %c0_13], %12 {strides = array<i32>} : memref<128x256xf32, #tpu.memory_space<vmem>>, vector<128x256xf32>,
    } else {
    }
    return
  }
  func.func @transform_0(%arg0: i32, %arg1: i32, %arg2: i32) -> (i32, i32) {
    %c0_i32 = arith.constant 0 : i32
    return %arg0, %arg2 : i32, i32
  }
  func.func @transform_1(%arg0: i32, %arg1: i32, %arg2: i32) -> (i32, i32) {
    %c0_i32 = arith.constant 0 : i32
    return %arg2, %arg1 : i32, i32
  }
  func.func @transform_2(%arg0: i32, %arg1: i32, %arg2: i32) -> (i32, i32) {
    %c0_i32 = arith.constant 0 : i32
    return %arg0, %arg1 : i32, i32
  }
}

module attributes {stable_mosaic.version = 11 : i64} {
  func.func @_mla_attn_kernel(%arg0: i32, %arg1: i32, %arg2: i32, %arg3: memref<1x32x256xbf16, #tpu.memory_space<vmem>>, %arg4: memref<1x32x256xbf16, #tpu.memory_space<vmem>>, %arg5: memref<1x32x256xbf16, #tpu.memory_space<vmem>>, %arg6: memref<1x32x256xbf16, #tpu.memory_space<vmem>>, %arg7: memref<2x32x1xf32, #tpu.memory_space<vmem>>, %arg8: memref<2x32x1xf32, #tpu.memory_space<vmem>>, %arg9: memref<2x32x128xf32, #tpu.memory_space<vmem>>) attributes {dimension_semantics = [#tpu.dimension_semantics<parallel>, #tpu.dimension_semantics<parallel>, #tpu.dimension_semantics<arbitrary>], iteration_bounds = array<i64: 2, 2, 2>, scalar_prefetch = 0 : i64, scratch_operands = 3 : i64, tpu.core_type = #tpu.core_type<tc>, window_params = [{transform_indices = @transform_0, window_bounds = array<i64: 1, 32, 256>}, {transform_indices = @transform_1, window_bounds = array<i64: 1, 32, 256>}, {transform_indices = @transform_2, window_bounds = array<i64: 1, 32, 256>}, {transform_indices = @transform_3, window_bounds = array<i64: 1, 32, 256>}]} {
    %c0_i32 = arith.constant 0 : i32
    %0 = arith.cmpi eq, %arg2, %c0_i32 : i32
    %1 = arith.extui %0 : i1 to i32
    %c0_i32_0 = arith.constant 0 : i32
    %2 = arith.cmpi ne, %1, %c0_i32_0 : i32
    scf.if %2 {
      %cst_60 = arith.constant 0xFF800000 : f32
      %84 = vector.broadcast %cst_60 : f32 to vector<2x32x1xf32>
      %c0_61 = arith.constant 0 : index
      %c0_62 = arith.constant 0 : index
      %c0_63 = arith.constant 0 : index
      %85 = vector.load %arg7[%c0_61, %c0_62, %c0_63] : memref<2x32x1xf32, #tpu.memory_space<vmem>>, vector<2x32x1xf32>
      tpu.vector_store %arg7[%c0_61, %c0_62, %c0_63], %84 {strides = array<i32>} : memref<2x32x1xf32, #tpu.memory_space<vmem>>, vector<2x32x1xf32>,
      %cst_64 = arith.constant 0.000000e+00 : f32
      %86 = vector.broadcast %cst_64 : f32 to vector<2x32x1xf32>
      %c0_65 = arith.constant 0 : index
      %c0_66 = arith.constant 0 : index
      %c0_67 = arith.constant 0 : index
      %87 = vector.load %arg8[%c0_65, %c0_66, %c0_67] : memref<2x32x1xf32, #tpu.memory_space<vmem>>, vector<2x32x1xf32>
      tpu.vector_store %arg8[%c0_65, %c0_66, %c0_67], %86 {strides = array<i32>} : memref<2x32x1xf32, #tpu.memory_space<vmem>>, vector<2x32x1xf32>,
      %cst_68 = arith.constant 0.000000e+00 : f32
      %88 = vector.broadcast %cst_68 : f32 to vector<2x32x128xf32>
      %c0_69 = arith.constant 0 : index
      %c0_70 = arith.constant 0 : index
      %c0_71 = arith.constant 0 : index
      %89 = vector.load %arg9[%c0_69, %c0_70, %c0_71] : memref<2x32x128xf32, #tpu.memory_space<vmem>>, vector<2x32x128xf32>
      tpu.vector_store %arg9[%c0_69, %c0_70, %c0_71], %88 {strides = array<i32>} : memref<2x32x128xf32, #tpu.memory_space<vmem>>, vector<2x32x128xf32>,
    } else {
    }
    %c0 = arith.constant 0 : index
    %c0_1 = arith.constant 0 : index
    %c0_2 = arith.constant 0 : index
    %3 = vector.load %arg3[%c0, %c0_1, %c0_2] : memref<1x32x256xbf16, #tpu.memory_space<vmem>>, vector<1x32x128xbf16>
    %4 = vector.shape_cast %3 : vector<1x32x128xbf16> to vector<32x128xbf16>
    %c0_3 = arith.constant 0 : index
    %c0_4 = arith.constant 0 : index
    %c0_5 = arith.constant 0 : index
    %5 = vector.load %arg4[%c0_3, %c0_4, %c0_5] : memref<1x32x256xbf16, #tpu.memory_space<vmem>>, vector<1x32x128xbf16>
    %6 = vector.shape_cast %5 : vector<1x32x128xbf16> to vector<32x128xbf16>
    %cst = arith.constant dense<0.000000e+00> : vector<32x32xf32>
    %7 = tpu.matmul %4, %6, %cst {dimension_numbers = #tpu.dot_dimension_numbers<[1], [1], [0], [0], [0, 0, 1, 0], [], []>} : vector<32x128xbf16>, vector<32x128xbf16>, vector<32x32xf32> -> vector<32x32xf32>
    %c0_6 = arith.constant 0 : index
    %c0_7 = arith.constant 0 : index
    %c0_8 = arith.constant 0 : index
    %8 = vector.load %arg7[%c0_6, %c0_7, %c0_8] : memref<2x32x1xf32, #tpu.memory_space<vmem>>, vector<1x32x1xf32>
    %9 = vector.shape_cast %8 : vector<1x32x1xf32> to vector<32x1xf32>
    %cst_9 = arith.constant dense<0xFF800000> : vector<32xf32>
    %10 = vector.multi_reduction <maximumf>, %7, %cst_9 [1] : vector<32x32xf32> to vector<32xf32>
    %11 = vector.shape_cast %10 : vector<32xf32> to vector<32x1xf32>
    %12 = arith.maximumf %9, %11 : vector<32x1xf32>
    %13 = arith.subf %9, %12 : vector<32x1xf32>
    %14 = math.exp %13 : vector<32x1xf32>
    %15 = vector.broadcast %12 : vector<32x1xf32> to vector<32x32xf32>
    %16 = arith.subf %7, %15 : vector<32x32xf32>
    %17 = math.exp %16 : vector<32x32xf32>
    %c0_10 = arith.constant 0 : index
    %c0_11 = arith.constant 0 : index
    %c0_12 = arith.constant 0 : index
    %18 = vector.load %arg8[%c0_10, %c0_11, %c0_12] : memref<2x32x1xf32, #tpu.memory_space<vmem>>, vector<1x32x1xf32>
    %19 = vector.shape_cast %18 : vector<1x32x1xf32> to vector<32x1xf32>
    %20 = arith.mulf %14, %19 : vector<32x1xf32>
    %cst_13 = arith.constant dense<0.000000e+00> : vector<32xf32>
    %21 = vector.multi_reduction <add>, %17, %cst_13 [1] : vector<32x32xf32> to vector<32xf32>
    %22 = vector.shape_cast %21 : vector<32xf32> to vector<32x1xf32>
    %23 = arith.addf %20, %22 : vector<32x1xf32>
    %c0_14 = arith.constant 0 : index
    %c0_15 = arith.constant 0 : index
    %c0_16 = arith.constant 0 : index
    %24 = vector.load %arg8[%c0_14, %c0_15, %c0_16] : memref<2x32x1xf32, #tpu.memory_space<vmem>>, vector<1x32x1xf32>
    %25 = vector.shape_cast %24 : vector<1x32x1xf32> to vector<32x1xf32>
    %26 = vector.shape_cast %23 : vector<32x1xf32> to vector<1x32x1xf32>
    tpu.vector_store %arg8[%c0_14, %c0_15, %c0_16], %26 {strides = array<i32>} : memref<2x32x1xf32, #tpu.memory_space<vmem>>, vector<1x32x1xf32>,
    %c0_17 = arith.constant 0 : index
    %c0_18 = arith.constant 0 : index
    %c0_19 = arith.constant 0 : index
    %27 = vector.load %arg9[%c0_17, %c0_18, %c0_19] : memref<2x32x128xf32, #tpu.memory_space<vmem>>, vector<1x32x128xf32>
    %28 = vector.shape_cast %27 : vector<1x32x128xf32> to vector<32x128xf32>
    %29 = vector.broadcast %14 : vector<32x1xf32> to vector<32x128xf32>
    %30 = arith.mulf %29, %28 : vector<32x128xf32>
    %31 = arith.truncf %17 : vector<32x32xf32> to vector<32x32xbf16>
    %c0_20 = arith.constant 0 : index
    %c0_21 = arith.constant 0 : index
    %c0_22 = arith.constant 0 : index
    %32 = vector.load %arg5[%c0_20, %c0_21, %c0_22] : memref<1x32x256xbf16, #tpu.memory_space<vmem>>, vector<1x32x128xbf16>
    %33 = vector.shape_cast %32 : vector<1x32x128xbf16> to vector<32x128xbf16>
    %cst_23 = arith.constant dense<0.000000e+00> : vector<32x128xf32>
    %34 = tpu.matmul %31, %33, %cst_23 {dimension_numbers = #tpu.dot_dimension_numbers<[1], [0], [0], [1], [0, 0, 1, 1], [], []>} : vector<32x32xbf16>, vector<32x128xbf16>, vector<32x128xf32> -> vector<32x128xf32>
    %35 = arith.addf %30, %34 : vector<32x128xf32>
    %c0_24 = arith.constant 0 : index
    %c0_25 = arith.constant 0 : index
    %c0_26 = arith.constant 0 : index
    %36 = vector.load %arg9[%c0_24, %c0_25, %c0_26] : memref<2x32x128xf32, #tpu.memory_space<vmem>>, vector<1x32x128xf32>
    %37 = vector.shape_cast %36 : vector<1x32x128xf32> to vector<32x128xf32>
    %38 = vector.shape_cast %35 : vector<32x128xf32> to vector<1x32x128xf32>
    tpu.vector_store %arg9[%c0_24, %c0_25, %c0_26], %38 {strides = array<i32>} : memref<2x32x128xf32, #tpu.memory_space<vmem>>, vector<1x32x128xf32>,
    %c0_27 = arith.constant 0 : index
    %c0_28 = arith.constant 0 : index
    %c0_29 = arith.constant 0 : index
    %39 = vector.load %arg7[%c0_27, %c0_28, %c0_29] : memref<2x32x1xf32, #tpu.memory_space<vmem>>, vector<1x32x1xf32>
    %40 = vector.shape_cast %39 : vector<1x32x1xf32> to vector<32x1xf32>
    %41 = vector.shape_cast %12 : vector<32x1xf32> to vector<1x32x1xf32>
    tpu.vector_store %arg7[%c0_27, %c0_28, %c0_29], %41 {strides = array<i32>} : memref<2x32x1xf32, #tpu.memory_space<vmem>>, vector<1x32x1xf32>,
    %c0_30 = arith.constant 0 : index
    %c0_31 = arith.constant 0 : index
    %c128 = arith.constant 128 : index
    %42 = vector.load %arg3[%c0_30, %c0_31, %c128] : memref<1x32x256xbf16, #tpu.memory_space<vmem>>, vector<1x32x128xbf16>
    %43 = vector.shape_cast %42 : vector<1x32x128xbf16> to vector<32x128xbf16>
    %c0_32 = arith.constant 0 : index
    %c0_33 = arith.constant 0 : index
    %c128_34 = arith.constant 128 : index
    %44 = vector.load %arg4[%c0_32, %c0_33, %c128_34] : memref<1x32x256xbf16, #tpu.memory_space<vmem>>, vector<1x32x128xbf16>
    %45 = vector.shape_cast %44 : vector<1x32x128xbf16> to vector<32x128xbf16>
    %cst_35 = arith.constant dense<0.000000e+00> : vector<32x32xf32>
    %46 = tpu.matmul %43, %45, %cst_35 {dimension_numbers = #tpu.dot_dimension_numbers<[1], [1], [0], [0], [0, 0, 1, 0], [], []>} : vector<32x128xbf16>, vector<32x128xbf16>, vector<32x32xf32> -> vector<32x32xf32>
    %c1 = arith.constant 1 : index
    %c0_36 = arith.constant 0 : index
    %c0_37 = arith.constant 0 : index
    %47 = vector.load %arg7[%c1, %c0_36, %c0_37] : memref<2x32x1xf32, #tpu.memory_space<vmem>>, vector<1x32x1xf32>
    %48 = vector.shape_cast %47 : vector<1x32x1xf32> to vector<32x1xf32>
    %cst_38 = arith.constant dense<0xFF800000> : vector<32xf32>
    %49 = vector.multi_reduction <maximumf>, %46, %cst_38 [1] : vector<32x32xf32> to vector<32xf32>
    %50 = vector.shape_cast %49 : vector<32xf32> to vector<32x1xf32>
    %51 = arith.maximumf %48, %50 : vector<32x1xf32>
    %52 = arith.subf %48, %51 : vector<32x1xf32>
    %53 = math.exp %52 : vector<32x1xf32>
    %54 = vector.broadcast %51 : vector<32x1xf32> to vector<32x32xf32>
    %55 = arith.subf %46, %54 : vector<32x32xf32>
    %56 = math.exp %55 : vector<32x32xf32>
    %c1_39 = arith.constant 1 : index
    %c0_40 = arith.constant 0 : index
    %c0_41 = arith.constant 0 : index
    %57 = vector.load %arg8[%c1_39, %c0_40, %c0_41] : memref<2x32x1xf32, #tpu.memory_space<vmem>>, vector<1x32x1xf32>
    %58 = vector.shape_cast %57 : vector<1x32x1xf32> to vector<32x1xf32>
    %59 = arith.mulf %53, %58 : vector<32x1xf32>
    %cst_42 = arith.constant dense<0.000000e+00> : vector<32xf32>
    %60 = vector.multi_reduction <add>, %56, %cst_42 [1] : vector<32x32xf32> to vector<32xf32>
    %61 = vector.shape_cast %60 : vector<32xf32> to vector<32x1xf32>
    %62 = arith.addf %59, %61 : vector<32x1xf32>
    %c1_43 = arith.constant 1 : index
    %c0_44 = arith.constant 0 : index
    %c0_45 = arith.constant 0 : index
    %63 = vector.load %arg8[%c1_43, %c0_44, %c0_45] : memref<2x32x1xf32, #tpu.memory_space<vmem>>, vector<1x32x1xf32>
    %64 = vector.shape_cast %63 : vector<1x32x1xf32> to vector<32x1xf32>
    %65 = vector.shape_cast %62 : vector<32x1xf32> to vector<1x32x1xf32>
    tpu.vector_store %arg8[%c1_43, %c0_44, %c0_45], %65 {strides = array<i32>} : memref<2x32x1xf32, #tpu.memory_space<vmem>>, vector<1x32x1xf32>,
    %c1_46 = arith.constant 1 : index
    %c0_47 = arith.constant 0 : index
    %c0_48 = arith.constant 0 : index
    %66 = vector.load %arg9[%c1_46, %c0_47, %c0_48] : memref<2x32x128xf32, #tpu.memory_space<vmem>>, vector<1x32x128xf32>
    %67 = vector.shape_cast %66 : vector<1x32x128xf32> to vector<32x128xf32>
    %68 = vector.broadcast %53 : vector<32x1xf32> to vector<32x128xf32>
    %69 = arith.mulf %68, %67 : vector<32x128xf32>
    %70 = arith.truncf %56 : vector<32x32xf32> to vector<32x32xbf16>
    %c0_49 = arith.constant 0 : index
    %c0_50 = arith.constant 0 : index
    %c128_51 = arith.constant 128 : index
    %71 = vector.load %arg5[%c0_49, %c0_50, %c128_51] : memref<1x32x256xbf16, #tpu.memory_space<vmem>>, vector<1x32x128xbf16>
    %72 = vector.shape_cast %71 : vector<1x32x128xbf16> to vector<32x128xbf16>
    %cst_52 = arith.constant dense<0.000000e+00> : vector<32x128xf32>
    %73 = tpu.matmul %70, %72, %cst_52 {dimension_numbers = #tpu.dot_dimension_numbers<[1], [0], [0], [1], [0, 0, 1, 1], [], []>} : vector<32x32xbf16>, vector<32x128xbf16>, vector<32x128xf32> -> vector<32x128xf32>
    %74 = arith.addf %69, %73 : vector<32x128xf32>
    %c1_53 = arith.constant 1 : index
    %c0_54 = arith.constant 0 : index
    %c0_55 = arith.constant 0 : index
    %75 = vector.load %arg9[%c1_53, %c0_54, %c0_55] : memref<2x32x128xf32, #tpu.memory_space<vmem>>, vector<1x32x128xf32>
    %76 = vector.shape_cast %75 : vector<1x32x128xf32> to vector<32x128xf32>
    %77 = vector.shape_cast %74 : vector<32x128xf32> to vector<1x32x128xf32>
    tpu.vector_store %arg9[%c1_53, %c0_54, %c0_55], %77 {strides = array<i32>} : memref<2x32x128xf32, #tpu.memory_space<vmem>>, vector<1x32x128xf32>,
    %c1_56 = arith.constant 1 : index
    %c0_57 = arith.constant 0 : index
    %c0_58 = arith.constant 0 : index
    %78 = vector.load %arg7[%c1_56, %c0_57, %c0_58] : memref<2x32x1xf32, #tpu.memory_space<vmem>>, vector<1x32x1xf32>
    %79 = vector.shape_cast %78 : vector<1x32x1xf32> to vector<32x1xf32>
    %80 = vector.shape_cast %51 : vector<32x1xf32> to vector<1x32x1xf32>
    tpu.vector_store %arg7[%c1_56, %c0_57, %c0_58], %80 {strides = array<i32>} : memref<2x32x1xf32, #tpu.memory_space<vmem>>, vector<1x32x1xf32>,
    %c1_i32 = arith.constant 1 : i32
    %81 = arith.cmpi eq, %arg2, %c1_i32 : i32
    %82 = arith.extui %81 : i1 to i32
    %c0_i32_59 = arith.constant 0 : i32
    %83 = arith.cmpi ne, %82, %c0_i32_59 : i32
    scf.if %83 {
      %c0_60 = arith.constant 0 : index
      %c0_61 = arith.constant 0 : index
      %c0_62 = arith.constant 0 : index
      %84 = vector.load %arg9[%c0_60, %c0_61, %c0_62] : memref<2x32x128xf32, #tpu.memory_space<vmem>>, vector<1x32x128xf32>
      %85 = vector.shape_cast %84 : vector<1x32x128xf32> to vector<32x128xf32>
      %c0_63 = arith.constant 0 : index
      %c0_64 = arith.constant 0 : index
      %c0_65 = arith.constant 0 : index
      %86 = vector.load %arg8[%c0_63, %c0_64, %c0_65] : memref<2x32x1xf32, #tpu.memory_space<vmem>>, vector<1x32x1xf32>
      %87 = vector.shape_cast %86 : vector<1x32x1xf32> to vector<32x1xf32>
      %88 = tpu.reciprocal %87 {approx = true} : vector<32x1xf32> -> vector<32x1xf32>
      %89 = vector.broadcast %88 : vector<32x1xf32> to vector<32x128xf32>
      %90 = arith.mulf %85, %89 : vector<32x128xf32>
      %91 = arith.truncf %90 : vector<32x128xf32> to vector<32x128xbf16>
      %c0_66 = arith.constant 0 : index
      %c0_67 = arith.constant 0 : index
      %c0_68 = arith.constant 0 : index
      %92 = vector.load %arg6[%c0_66, %c0_67, %c0_68] : memref<1x32x256xbf16, #tpu.memory_space<vmem>>, vector<1x32x128xbf16>
      %93 = vector.shape_cast %92 : vector<1x32x128xbf16> to vector<32x128xbf16>
      %94 = vector.shape_cast %91 : vector<32x128xbf16> to vector<1x32x128xbf16>
      tpu.vector_store %arg6[%c0_66, %c0_67, %c0_68], %94 {strides = array<i32>} : memref<1x32x256xbf16, #tpu.memory_space<vmem>>, vector<1x32x128xbf16>,
      %c1_69 = arith.constant 1 : index
      %c0_70 = arith.constant 0 : index
      %c0_71 = arith.constant 0 : index
      %95 = vector.load %arg9[%c1_69, %c0_70, %c0_71] : memref<2x32x128xf32, #tpu.memory_space<vmem>>, vector<1x32x128xf32>
      %96 = vector.shape_cast %95 : vector<1x32x128xf32> to vector<32x128xf32>
      %c1_72 = arith.constant 1 : index
      %c0_73 = arith.constant 0 : index
      %c0_74 = arith.constant 0 : index
      %97 = vector.load %arg8[%c1_72, %c0_73, %c0_74] : memref<2x32x1xf32, #tpu.memory_space<vmem>>, vector<1x32x1xf32>
      %98 = vector.shape_cast %97 : vector<1x32x1xf32> to vector<32x1xf32>
      %99 = tpu.reciprocal %98 {approx = true} : vector<32x1xf32> -> vector<32x1xf32>
      %100 = vector.broadcast %99 : vector<32x1xf32> to vector<32x128xf32>
      %101 = arith.mulf %96, %100 : vector<32x128xf32>
      %102 = arith.truncf %101 : vector<32x128xf32> to vector<32x128xbf16>
      %c0_75 = arith.constant 0 : index
      %c0_76 = arith.constant 0 : index
      %c128_77 = arith.constant 128 : index
      %103 = vector.load %arg6[%c0_75, %c0_76, %c128_77] : memref<1x32x256xbf16, #tpu.memory_space<vmem>>, vector<1x32x128xbf16>
      %104 = vector.shape_cast %103 : vector<1x32x128xbf16> to vector<32x128xbf16>
      %105 = vector.shape_cast %102 : vector<32x128xbf16> to vector<1x32x128xbf16>
      tpu.vector_store %arg6[%c0_75, %c0_76, %c128_77], %105 {strides = array<i32>} : memref<1x32x256xbf16, #tpu.memory_space<vmem>>, vector<1x32x128xbf16>,
    } else {
    }
    return
  }
  func.func @transform_0(%arg0: i32, %arg1: i32, %arg2: i32) -> (i32, i32, i32) {
    %c0_i32 = arith.constant 0 : i32
    %c0_i32_0 = arith.constant 0 : i32
    return %arg0, %arg1, %c0_i32 : i32, i32, i32
  }
  func.func @transform_1(%arg0: i32, %arg1: i32, %arg2: i32) -> (i32, i32, i32) {
    %c0_i32 = arith.constant 0 : i32
    %c0_i32_0 = arith.constant 0 : i32
    return %arg0, %arg2, %c0_i32 : i32, i32, i32
  }
  func.func @transform_2(%arg0: i32, %arg1: i32, %arg2: i32) -> (i32, i32, i32) {
    %c0_i32 = arith.constant 0 : i32
    %c0_i32_0 = arith.constant 0 : i32
    return %arg0, %arg2, %c0_i32 : i32, i32, i32
  }
  func.func @transform_3(%arg0: i32, %arg1: i32, %arg2: i32) -> (i32, i32, i32) {
    %c0_i32 = arith.constant 0 : i32
    %c0_i32_0 = arith.constant 0 : i32
    return %arg0, %arg1, %c0_i32 : i32, i32, i32
  }
}

</mosaic_0001>

<llo_original>
// kernel: mla_forward.5
$region0: #{mla_forward.5}
  #allocation0 [shape = 'u32[]', space=smem, size = 0x4, offset = 0x4, fixed_abs, tag = 'smem constant byte address 0x4 - core index']
  #allocation1 [shape = 'u32[144,128]{1,0:T(1,128)}', space=vmem, size = 0x12000, scoped, tag = 'internal scratch']
  #allocation2 [shape = 'f32[128,256]{1,0:T(8,128)}', space=vmem, size = 0x20000, scoped, tag = 'scratch operand']
  %s0 = inlined_call_operand.vmem [shape: bf16[128,256], index: 0, kind: input, shape index: {}]
  %s1 = inlined_call_operand.vmem [shape: bf16[256,256], index: 1, kind: input, shape index: {}]
  %s2 = inlined_call_operand.hbm [shape: f32[128,256], index: 2, kind: output, shape index: {}]
  %s3 = sld [smem:[#allocation0]]
  $region26: #{mla_forward.5} parent=0
    _
  %s5 = ssub.s32 1, %s3
  %s6 = scalar_select 0, %s5, %s3
  $region1: #{mla_forward.5} parent=0
    #allocation3 [shape = 'u8[131072]{0}', space=vmem, size = 0x20000, scoped, tag = 'output window, operand 0, single buffered']
    #allocation4 [shape = 's32[1]{0}', space=sflag, size = 0x4, scoped, tag = 'scoped memory for mla_forward.5']
    %7 = vsyncpa [#allocation4], 0
    // Predicated region
    $region2: #{mla_forward.5} parent=1 // pred_check
      _
    $region3: #{mla_forward.5} parent=1 // pred_check_branch
      %9 = sbr.rel (0) target = $region5
    $region4: #{mla_forward.5} parent=1 // pred_region
      _
    $region5: #{mla_forward.5} parent=1 // pred_fallthru
      _
    // Predicated region
    $region6: #{mla_forward.5} parent=1 // pred_check
      _
    $region7: #{mla_forward.5} parent=1 // pred_check_branch
      %11 = sbr.rel (0) target = $region9
    $region8: #{mla_forward.5} parent=1 // pred_region
      _
    $region9: #{mla_forward.5} parent=1 // pred_fallthru
      _
    %p12 = scmp.eq.s32.totalorder 0, 0
    // Predicated region
    $region10: #{mla_forward.5} parent=1 // pred_check
      %p13 = pneg %p12
    $region11: #{mla_forward.5} parent=1 // pred_check_branch
      %15 = sbr.rel (%p13) target = $region13
    $region12: #{mla_forward.5} parent=1 // pred_region
      %16 = vst [vmem:[#allocation2] sm:$0xff] 0.0
      %17 = vst [vmem:[#allocation2 + $0x8] sm:$0xff] 0.0
      %18 = vst [vmem:[#allocation2 + $0x10] sm:$0xff] 0.0
      %19 = vst [vmem:[#allocation2 + $0x18] sm:$0xff] 0.0
      %20 = vst [vmem:[#allocation2 + $0x20] sm:$0xff] 0.0
      %21 = vst [vmem:[#allocation2 + $0x28] sm:$0xff] 0.0
      %22 = vst [vmem:[#allocation2 + $0x30] sm:$0xff] 0.0
      %23 = vst [vmem:[#allocation2 + $0x38] sm:$0xff] 0.0
      %24 = vst [vmem:[#allocation2 + $0x40] sm:$0xff] 0.0
      %25 = vst [vmem:[#allocation2 + $0x48] sm:$0xff] 0.0
      %26 = vst [vmem:[#allocation2 + $0x50] sm:$0xff] 0.0
      %27 = vst [vmem:[#allocation2 + $0x58] sm:$0xff] 0.0
      %28 = vst [vmem:[#allocation2 + $0x60] sm:$0xff] 0.0
      %29 = vst [vmem:[#allocation2 + $0x68] sm:$0xff] 0.0
      %30 = vst [vmem:[#allocation2 + $0x70] sm:$0xff] 0.0
      %31 = vst [vmem:[#allocation2 + $0x78] sm:$0xff] 0.0
      %32 = vst [vmem:[#allocation2 + $0x80] sm:$0xff] 0.0
      %33 = vst [vmem:[#allocation2 + $0x88] sm:$0xff] 0.0
      %34 = vst [vmem:[#allocation2 + $0x90] sm:$0xff] 0.0
      %35 = vst [vmem:[#allocation2 + $0x98] sm:$0xff] 0.0
      %36 = vst [vmem:[#allocation2 + $0xa0] sm:$0xff] 0.0
      %37 = vst [vmem:[#allocation2 + $0xa8] sm:$0xff] 0.0
      %38 = vst [vmem:[#allocation2 + $0xb0] sm:$0xff] 0.0
      %39 = vst [vmem:[#allocation2 + $0xb8] sm:$0xff] 0.0
      %40 = vst [vmem:[#allocation2 + $0xc0] sm:$0xff] 0.0
      %41 = vst [vmem:[#allocation2 + $0xc8] sm:$0xff] 0.0
      %42 = vst [vmem:[#allocation2 + $0xd0] sm:$0xff] 0.0
      %43 = vst [vmem:[#allocation2 + $0xd8] sm:$0xff] 0.0
      %44 = vst [vmem:[#allocation2 + $0xe0] sm:$0xff] 0.0
      %45 = vst [vmem:[#allocation2 + $0xe8] sm:$0xff] 0.0
      %46 = vst [vmem:[#allocation2 + $0xf0] sm:$0xff] 0.0
      %47 = vst [vmem:[#allocation2 + $0xf8] sm:$0xff] 0.0
    $region13: #{mla_forward.5} parent=1 // pred_fallthru
      _
    %v48 = vld [vmem:[#allocation2] sm:$0xff]
    %v49 = vld [vmem:[#allocation2 + $0x8] sm:$0xff]
    %v50 = vld [vmem:[#allocation2 + $0x10] sm:$0xff]
    %v51 = vld [vmem:[#allocation2 + $0x18] sm:$0xff]
    %v52 = vld [vmem:[#allocation2 + $0x20] sm:$0xff]
    %v53 = vld [vmem:[#allocation2 + $0x28] sm:$0xff]
    %v54 = vld [vmem:[#allocation2 + $0x30] sm:$0xff]
    %v55 = vld [vmem:[#allocation2 + $0x38] sm:$0xff]
    %v56 = vld [vmem:[#allocation2 + $0x40] sm:$0xff]
    %v57 = vld [vmem:[#allocation2 + $0x48] sm:$0xff]
    %v58 = vld [vmem:[#allocation2 + $0x50] sm:$0xff]
    %v59 = vld [vmem:[#allocation2 + $0x58] sm:$0xff]
    %v60 = vld [vmem:[#allocation2 + $0x60] sm:$0xff]
    %v61 = vld [vmem:[#allocation2 + $0x68] sm:$0xff]
    %v62 = vld [vmem:[#allocation2 + $0x70] sm:$0xff]
    %v63 = vld [vmem:[#allocation2 + $0x78] sm:$0xff]
    %v64 = vld [vmem:[#allocation2 + $0x80] sm:$0xff]
    %v65 = vld [vmem:[#allocation2 + $0x88] sm:$0xff]
    %v66 = vld [vmem:[#allocation2 + $0x90] sm:$0xff]
    %v67 = vld [vmem:[#allocation2 + $0x98] sm:$0xff]
    %v68 = vld [vmem:[#allocation2 + $0xa0] sm:$0xff]
    %v69 = vld [vmem:[#allocation2 + $0xa8] sm:$0xff]
    %v70 = vld [vmem:[#allocation2 + $0xb0] sm:$0xff]
    %v71 = vld [vmem:[#allocation2 + $0xb8] sm:$0xff]
    %v72 = vld [vmem:[#allocation2 + $0xc0] sm:$0xff]
    %v73 = vld [vmem:[#allocation2 + $0xc8] sm:$0xff]
    %v74 = vld [vmem:[#allocation2 + $0xd0] sm:$0xff]
    %v75 = vld [vmem:[#allocation2 + $0xd8] sm:$0xff]
    %v76 = vld [vmem:[#allocation2 + $0xe0] sm:$0xff]
    %v77 = vld [vmem:[#allocation2 + $0xe8] sm:$0xff]
    %v78 = vld [vmem:[#allocation2 + $0xf0] sm:$0xff]
    %v79 = vld [vmem:[#allocation2 + $0xf8] sm:$0xff]
    %v80 = vld [vmem:[%s0] sm:$0xff]
    %v81 = vld [vmem:[%s0 + $0x8] sm:$0xff]
    %v82 = vld [vmem:[%s0 + $0x10] sm:$0xff]
    %v83 = vld [vmem:[%s0 + $0x18] sm:$0xff]
    %v84 = vld [vmem:[%s0 + $0x20] sm:$0xff]
    %v85 = vld [vmem:[%s0 + $0x28] sm:$0xff]
    %v86 = vld [vmem:[%s0 + $0x30] sm:$0xff]
    %v87 = vld [vmem:[%s0 + $0x38] sm:$0xff]
    %v88 = vld [vmem:[%s0 + $0x40] sm:$0xff]
    %v89 = vld [vmem:[%s0 + $0x48] sm:$0xff]
    %v90 = vld [vmem:[%s0 + $0x50] sm:$0xff]
    %v91 = vld [vmem:[%s0 + $0x58] sm:$0xff]
    %v92 = vld [vmem:[%s0 + $0x60] sm:$0xff]
    %v93 = vld [vmem:[%s0 + $0x68] sm:$0xff]
    %v94 = vld [vmem:[%s0 + $0x70] sm:$0xff]
    %v95 = vld [vmem:[%s0 + $0x78] sm:$0xff]
    %v96 = vld [vmem:[%s1] sm:$0xff]
    %v97 = vld [vmem:[%s1 + $0x8] sm:$0xff]
    %v98 = vld [vmem:[%s1 + $0x10] sm:$0xff]
    %v99 = vld [vmem:[%s1 + $0x18] sm:$0xff]
    %v100 = vld [vmem:[%s1 + $0x20] sm:$0xff]
    %v101 = vld [vmem:[%s1 + $0x28] sm:$0xff]
    %v102 = vld [vmem:[%s1 + $0x30] sm:$0xff]
    %v103 = vld [vmem:[%s1 + $0x38] sm:$0xff]
    %v104 = vld [vmem:[%s1 + $0x40] sm:$0xff]
    %v105 = vld [vmem:[%s1 + $0x48] sm:$0xff]
    %v106 = vld [vmem:[%s1 + $0x50] sm:$0xff]
    %v107 = vld [vmem:[%s1 + $0x58] sm:$0xff]
    %v108 = vld [vmem:[%s1 + $0x60] sm:$0xff]
    %v109 = vld [vmem:[%s1 + $0x68] sm:$0xff]
    %v110 = vld [vmem:[%s1 + $0x70] sm:$0xff]
    %v111 = vld [vmem:[%s1 + $0x78] sm:$0xff]
    %v112 = vld [vmem:[%s1 + $0x80] sm:$0xff]
    %v113 = vld [vmem:[%s1 + $0x88] sm:$0xff]
    %v114 = vld [vmem:[%s1 + $0x90] sm:$0xff]
    %v115 = vld [vmem:[%s1 + $0x98] sm:$0xff]
    %v116 = vld [vmem:[%s1 + $0xa0] sm:$0xff]
    %v117 = vld [vmem:[%s1 + $0xa8] sm:$0xff]
    %v118 = vld [vmem:[%s1 + $0xb0] sm:$0xff]
    %v119 = vld [vmem:[%s1 + $0xb8] sm:$0xff]
    %v120 = vld [vmem:[%s1 + $0xc0] sm:$0xff]
    %v121 = vld [vmem:[%s1 + $0xc8] sm:$0xff]
    %v122 = vld [vmem:[%s1 + $0xd0] sm:$0xff]
    %v123 = vld [vmem:[%s1 + $0xd8] sm:$0xff]
    %v124 = vld [vmem:[%s1 + $0xe0] sm:$0xff]
    %v125 = vld [vmem:[%s1 + $0xe8] sm:$0xff]
    %v126 = vld [vmem:[%s1 + $0xf0] sm:$0xff]
    %v127 = vld [vmem:[%s1 + $0xf8] sm:$0xff]
    %v144 = vunpack.c.l.b16 %v80
    %v145 = vunpack.c.h.b16 %v80
    %v146 = vunpack.c.l.b16 %v81
    %v147 = vunpack.c.h.b16 %v81
    %v148 = vunpack.c.l.b16 %v82
    %v149 = vunpack.c.h.b16 %v82
    %v150 = vunpack.c.l.b16 %v83
    %v151 = vunpack.c.h.b16 %v83
    %v152 = vunpack.c.l.b16 %v84
    %v153 = vunpack.c.h.b16 %v84
    %v154 = vunpack.c.l.b16 %v85
    %v155 = vunpack.c.h.b16 %v85
    %v156 = vunpack.c.l.b16 %v86
    %v157 = vunpack.c.h.b16 %v86
    %v158 = vunpack.c.l.b16 %v87
    %v159 = vunpack.c.h.b16 %v87
    %v160 = vunpack.c.l.b16 %v88
    %v161 = vunpack.c.h.b16 %v88
    %v162 = vunpack.c.l.b16 %v89
    %v163 = vunpack.c.h.b16 %v89
    %v164 = vunpack.c.l.b16 %v90
    %v165 = vunpack.c.h.b16 %v90
    %v166 = vunpack.c.l.b16 %v91
    %v167 = vunpack.c.h.b16 %v91
    %v168 = vunpack.c.l.b16 %v92
    %v169 = vunpack.c.h.b16 %v92
    %v170 = vunpack.c.l.b16 %v93
    %v171 = vunpack.c.h.b16 %v93
    %v172 = vunpack.c.l.b16 %v94
    %v173 = vunpack.c.h.b16 %v94
    %v174 = vunpack.c.l.b16 %v95
    %v175 = vunpack.c.h.b16 %v95
    %v176 = vpack.c.b16 %v146, %v144
    %v177 = vpack.c.b16 %v147, %v145
    %v178 = vpack.c.b16 %v150, %v148
    %v179 = vpack.c.b16 %v151, %v149
    %v180 = vpack.c.b16 %v154, %v152
    %v181 = vpack.c.b16 %v155, %v153
    %v182 = vpack.c.b16 %v158, %v156
    %v183 = vpack.c.b16 %v159, %v157
    %v184 = vpack.c.b16 %v162, %v160
    %v185 = vpack.c.b16 %v163, %v161
    %v186 = vpack.c.b16 %v166, %v164
    %v187 = vpack.c.b16 %v167, %v165
    %v188 = vpack.c.b16 %v170, %v168
    %v189 = vpack.c.b16 %v171, %v169
    %v190 = vpack.c.b16 %v174, %v172
    %v191 = vpack.c.b16 %v175, %v173
    %v240 = vunpack.c.l.b16 %v96
    %v241 = vunpack.c.h.b16 %v96
    %v242 = vunpack.c.l.b16 %v97
    %v243 = vunpack.c.h.b16 %v97
    %v244 = vunpack.c.l.b16 %v98
    %v245 = vunpack.c.h.b16 %v98
    %v246 = vunpack.c.l.b16 %v99
    %v247 = vunpack.c.h.b16 %v99
    %v248 = vunpack.c.l.b16 %v100
    %v249 = vunpack.c.h.b16 %v100
    %v250 = vunpack.c.l.b16 %v101
    %v251 = vunpack.c.h.b16 %v101
    %v252 = vunpack.c.l.b16 %v102
    %v253 = vunpack.c.h.b16 %v102
    %v254 = vunpack.c.l.b16 %v103
    %v255 = vunpack.c.h.b16 %v103
    %v256 = vunpack.c.l.b16 %v104
    %v257 = vunpack.c.h.b16 %v104
    %v258 = vunpack.c.l.b16 %v105
    %v259 = vunpack.c.h.b16 %v105
    %v260 = vunpack.c.l.b16 %v106
    %v261 = vunpack.c.h.b16 %v106
    %v262 = vunpack.c.l.b16 %v107
    %v263 = vunpack.c.h.b16 %v107
    %v264 = vunpack.c.l.b16 %v108
    %v265 = vunpack.c.h.b16 %v108
    %v266 = vunpack.c.l.b16 %v109
    %v267 = vunpack.c.h.b16 %v109
    %v268 = vunpack.c.l.b16 %v110
    %v269 = vunpack.c.h.b16 %v110
    %v270 = vunpack.c.l.b16 %v111
    %v271 = vunpack.c.h.b16 %v111
    %v272 = vunpack.c.l.b16 %v112
    %v273 = vunpack.c.h.b16 %v112
    %v274 = vunpack.c.l.b16 %v113
    %v275 = vunpack.c.h.b16 %v113
    %v276 = vunpack.c.l.b16 %v114
    %v277 = vunpack.c.h.b16 %v114
    %v278 = vunpack.c.l.b16 %v115
    %v279 = vunpack.c.h.b16 %v115
    %v280 = vunpack.c.l.b16 %v116
    %v281 = vunpack.c.h.b16 %v116
    %v282 = vunpack.c.l.b16 %v117
    %v283 = vunpack.c.h.b16 %v117
    %v284 = vunpack.c.l.b16 %v118
    %v285 = vunpack.c.h.b16 %v118
    %v286 = vunpack.c.l.b16 %v119
    %v287 = vunpack.c.h.b16 %v119
    %v288 = vunpack.c.l.b16 %v120
    %v289 = vunpack.c.h.b16 %v120
    %v290 = vunpack.c.l.b16 %v121
    %v291 = vunpack.c.h.b16 %v121
    %v292 = vunpack.c.l.b16 %v122
    %v293 = vunpack.c.h.b16 %v122
    %v294 = vunpack.c.l.b16 %v123
    %v295 = vunpack.c.h.b16 %v123
    %v296 = vunpack.c.l.b16 %v124
    %v297 = vunpack.c.h.b16 %v124
    %v298 = vunpack.c.l.b16 %v125
    %v299 = vunpack.c.h.b16 %v125
    %v300 = vunpack.c.l.b16 %v126
    %v301 = vunpack.c.h.b16 %v126
    %v302 = vunpack.c.l.b16 %v127
    %v303 = vunpack.c.h.b16 %v127
    %v304 = vpack.c.b16 %v242, %v240
    %v305 = vpack.c.b16 %v243, %v241
    %v306 = vpack.c.b16 %v246, %v244
    %v307 = vpack.c.b16 %v247, %v245
    %v308 = vpack.c.b16 %v250, %v248
    %v309 = vpack.c.b16 %v251, %v249
    %v310 = vpack.c.b16 %v254, %v252
    %v311 = vpack.c.b16 %v255, %v253
    %v312 = vpack.c.b16 %v258, %v256
    %v313 = vpack.c.b16 %v259, %v257
    %v314 = vpack.c.b16 %v262, %v260
    %v315 = vpack.c.b16 %v263, %v261
    %v316 = vpack.c.b16 %v266, %v264
    %v317 = vpack.c.b16 %v267, %v265
    %v318 = vpack.c.b16 %v270, %v268
    %v319 = vpack.c.b16 %v271, %v269
    %v320 = vpack.c.b16 %v274, %v272
    %v321 = vpack.c.b16 %v275, %v273
    %v322 = vpack.c.b16 %v278, %v276
    %v323 = vpack.c.b16 %v279, %v277
    %v324 = vpack.c.b16 %v282, %v280
    %v325 = vpack.c.b16 %v283, %v281
    %v326 = vpack.c.b16 %v286, %v284
    %v327 = vpack.c.b16 %v287, %v285
    %v328 = vpack.c.b16 %v290, %v288
    %v329 = vpack.c.b16 %v291, %v289
    %v330 = vpack.c.b16 %v294, %v292
    %v331 = vpack.c.b16 %v295, %v293
    %v332 = vpack.c.b16 %v298, %v296
    %v333 = vpack.c.b16 %v299, %v297
    %v334 = vpack.c.b16 %v302, %v300
    %v335 = vpack.c.b16 %v303, %v301
    %368 = vmatprep.subr.bf16.mxu0 %v319
    %369 = vmatpush1.bf16.msra.mxu0 %v318
    %370 = vmatprep.subr.bf16.mxu0 %v317
    %371 = vmatpush1.bf16.msra.mxu0 %v316
    %372 = vmatprep.subr.bf16.mxu0 %v315
    %373 = vmatpush1.bf16.msra.mxu0 %v314
    %374 = vmatprep.subr.bf16.mxu0 %v313
    %375 = vmatpush1.bf16.msra.mxu0 %v312
    %376 = vmatprep.subr.bf16.mxu0 %v311
    %377 = vmatpush1.bf16.msra.mxu0 %v310
    %378 = vmatprep.subr.bf16.mxu0 %v309
    %379 = vmatpush1.bf16.msra.mxu0 %v308
    %380 = vmatprep.subr.bf16.mxu0 %v307
    %381 = vmatpush1.bf16.msra.mxu0 %v306
    %382 = vmatprep.subr.bf16.mxu0 %v305
    %383 = vmatpush1.bf16.msra.mxu0 %v304
    %384 = vmatprep.subr.bf16.mxu0 %v335
    %385 = vmatpush2.bf16.msra.mxu0 %v334
    %386 = vmatprep.subr.bf16.mxu0 %v333
    %387 = vmatpush2.bf16.msra.mxu0 %v332
    %388 = vmatprep.subr.bf16.mxu0 %v331
    %389 = vmatpush2.bf16.msra.mxu0 %v330
    %390 = vmatprep.subr.bf16.mxu0 %v329
    %391 = vmatpush2.bf16.msra.mxu0 %v328
    %392 = vmatprep.subr.bf16.mxu0 %v327
    %393 = vmatpush2.bf16.msra.mxu0 %v326
    %394 = vmatprep.subr.bf16.mxu0 %v325
    %395 = vmatpush2.bf16.msra.mxu0 %v324
    %396 = vmatprep.subr.bf16.mxu0 %v323
    %397 = vmatpush2.bf16.msra.mxu0 %v322
    %398 = vmatprep.subr.bf16.mxu0 %v321
    %399 = vmatpush2.bf16.msra.mxu0 %v320
    %400 = vmatprep.mubr.bf16.mxu0 %v177
    %401 = vmatmul.mubr.bf16.gmra.mxu0 %v176
    %v402 = vpop.f32.mrf.mxu0
    %v403 = vadd.f32 0.0, %v402
    %v404 = vpop.f32.mrf.mxu0
    %v405 = vadd.f32 0.0, %v404
    %v406 = vpop.f32.mrf.mxu0
    %v407 = vadd.f32 0.0, %v406
    %v408 = vpop.f32.mrf.mxu0
    %v409 = vadd.f32 0.0, %v408
    %410 = vmatprep.mubr.bf16.mxu0 %v179
    %411 = vmatmul.mubr.bf16.gmra.mxu0 %v178
    %v412 = vpop.f32.mrf.mxu0
    %v413 = vadd.f32 0.0, %v412
    %v414 = vpop.f32.mrf.mxu0
    %v415 = vadd.f32 0.0, %v414
    %v416 = vpop.f32.mrf.mxu0
    %v417 = vadd.f32 0.0, %v416
    %v418 = vpop.f32.mrf.mxu0
    %v419 = vadd.f32 0.0, %v418
    %420 = vmatprep.mubr.bf16.mxu0 %v181
    %421 = vmatmul.mubr.bf16.gmra.mxu0 %v180
    %v422 = vpop.f32.mrf.mxu0
    %v423 = vadd.f32 0.0, %v422
    %v424 = vpop.f32.mrf.mxu0
    %v425 = vadd.f32 0.0, %v424
    %v426 = vpop.f32.mrf.mxu0
    %v427 = vadd.f32 0.0, %v426
    %v428 = vpop.f32.mrf.mxu0
    %v429 = vadd.f32 0.0, %v428
    %430 = vmatprep.mubr.bf16.mxu0 %v183
    %431 = vmatmul.mubr.bf16.gmra.mxu0 %v182
    %v432 = vpop.f32.mrf.mxu0
    %v433 = vadd.f32 0.0, %v432
    %v434 = vpop.f32.mrf.mxu0
    %v435 = vadd.f32 0.0, %v434
    %v436 = vpop.f32.mrf.mxu0
    %v437 = vadd.f32 0.0, %v436
    %v438 = vpop.f32.mrf.mxu0
    %v439 = vadd.f32 0.0, %v438
    %440 = vmatprep.mubr.bf16.mxu0 %v185
    %441 = vmatmul.mubr.bf16.gmra.mxu0 %v184
    %v442 = vpop.f32.mrf.mxu0
    %v443 = vadd.f32 0.0, %v442
    %v444 = vpop.f32.mrf.mxu0
    %v445 = vadd.f32 0.0, %v444
    %v446 = vpop.f32.mrf.mxu0
    %v447 = vadd.f32 0.0, %v446
    %v448 = vpop.f32.mrf.mxu0
    %v449 = vadd.f32 0.0, %v448
    %450 = vmatprep.mubr.bf16.mxu0 %v187
    %451 = vmatmul.mubr.bf16.gmra.mxu0 %v186
    %v452 = vpop.f32.mrf.mxu0
    %v453 = vadd.f32 0.0, %v452
    %v454 = vpop.f32.mrf.mxu0
    %v455 = vadd.f32 0.0, %v454
    %v456 = vpop.f32.mrf.mxu0
    %v457 = vadd.f32 0.0, %v456
    %v458 = vpop.f32.mrf.mxu0
    %v459 = vadd.f32 0.0, %v458
    %460 = vmatprep.mubr.bf16.mxu0 %v189
    %461 = vmatmul.mubr.bf16.gmra.mxu0 %v188
    %v462 = vpop.f32.mrf.mxu0
    %v463 = vadd.f32 0.0, %v462
    %v464 = vpop.f32.mrf.mxu0
    %v465 = vadd.f32 0.0, %v464
    %v466 = vpop.f32.mrf.mxu0
    %v467 = vadd.f32 0.0, %v466
    %v468 = vpop.f32.mrf.mxu0
    %v469 = vadd.f32 0.0, %v468
    %470 = vmatprep.mubr.bf16.mxu0 %v191
    %471 = vmatmul.mubr.bf16.gmra.mxu0 %v190
    %v472 = vpop.f32.mrf.mxu0
    %v473 = vadd.f32 0.0, %v472
    %v474 = vpop.f32.mrf.mxu0
    %v475 = vadd.f32 0.0, %v474
    %v476 = vpop.f32.mrf.mxu0
    %v477 = vadd.f32 0.0, %v476
    %v478 = vpop.f32.mrf.mxu0
    %v479 = vadd.f32 0.0, %v478
    %480 = vdwg.mxu0
    %v481 = vadd.f32 %v48, %v403
    %v482 = vadd.f32 %v49, %v405
    %v483 = vadd.f32 %v50, %v407
    %v484 = vadd.f32 %v51, %v409
    %v485 = vadd.f32 %v52, %v413
    %v486 = vadd.f32 %v53, %v415
    %v487 = vadd.f32 %v54, %v417
    %v488 = vadd.f32 %v55, %v419
    %v489 = vadd.f32 %v56, %v423
    %v490 = vadd.f32 %v57, %v425
    %v491 = vadd.f32 %v58, %v427
    %v492 = vadd.f32 %v59, %v429
    %v493 = vadd.f32 %v60, %v433
    %v494 = vadd.f32 %v61, %v435
    %v495 = vadd.f32 %v62, %v437
    %v496 = vadd.f32 %v63, %v439
    %v497 = vadd.f32 %v64, %v443
    %v498 = vadd.f32 %v65, %v445
    %v499 = vadd.f32 %v66, %v447
    %v500 = vadd.f32 %v67, %v449
    %v501 = vadd.f32 %v68, %v453
    %v502 = vadd.f32 %v69, %v455
    %v503 = vadd.f32 %v70, %v457
    %v504 = vadd.f32 %v71, %v459
    %v505 = vadd.f32 %v72, %v463
    %v506 = vadd.f32 %v73, %v465
    %v507 = vadd.f32 %v74, %v467
    %v508 = vadd.f32 %v75, %v469
    %v509 = vadd.f32 %v76, %v473
    %v510 = vadd.f32 %v77, %v475
    %v511 = vadd.f32 %v78, %v477
    %v512 = vadd.f32 %v79, %v479
    %513 = vst [vmem:[#allocation2] sm:$0xff] %v481
    %514 = vst [vmem:[#allocation2 + $0x8] sm:$0xff] %v482
    %515 = vst [vmem:[#allocation2 + $0x10] sm:$0xff] %v483
    %516 = vst [vmem:[#allocation2 + $0x18] sm:$0xff] %v484
    %517 = vst [vmem:[#allocation2 + $0x20] sm:$0xff] %v485
    %518 = vst [vmem:[#allocation2 + $0x28] sm:$0xff] %v486
    %519 = vst [vmem:[#allocation2 + $0x30] sm:$0xff] %v487
    %520 = vst [vmem:[#allocation2 + $0x38] sm:$0xff] %v488
    %521 = vst [vmem:[#allocation2 + $0x40] sm:$0xff] %v489
    %522 = vst [vmem:[#allocation2 + $0x48] sm:$0xff] %v490
    %523 = vst [vmem:[#allocation2 + $0x50] sm:$0xff] %v491
    %524 = vst [vmem:[#allocation2 + $0x58] sm:$0xff] %v492
    %525 = vst [vmem:[#allocation2 + $0x60] sm:$0xff] %v493
    %526 = vst [vmem:[#allocation2 + $0x68] sm:$0xff] %v494
    %527 = vst [vmem:[#allocation2 + $0x70] sm:$0xff] %v495
    %528 = vst [vmem:[#allocation2 + $0x78] sm:$0xff] %v496
    %529 = vst [vmem:[#allocation2 + $0x80] sm:$0xff] %v497
    %530 = vst [vmem:[#allocation2 + $0x88] sm:$0xff] %v498
    %531 = vst [vmem:[#allocation2 + $0x90] sm:$0xff] %v499
    %532 = vst [vmem:[#allocation2 + $0x98] sm:$0xff] %v500
    %533 = vst [vmem:[#allocation2 + $0xa0] sm:$0xff] %v501
    %534 = vst [vmem:[#allocation2 + $0xa8] sm:$0xff] %v502
    %535 = vst [vmem:[#allocation2 + $0xb0] sm:$0xff] %v503
    %536 = vst [vmem:[#allocation2 + $0xb8] sm:$0xff] %v504
    %537 = vst [vmem:[#allocation2 + $0xc0] sm:$0xff] %v505
    %538 = vst [vmem:[#allocation2 + $0xc8] sm:$0xff] %v506
    %539 = vst [vmem:[#allocation2 + $0xd0] sm:$0xff] %v507
    %540 = vst [vmem:[#allocation2 + $0xd8] sm:$0xff] %v508
    %541 = vst [vmem:[#allocation2 + $0xe0] sm:$0xff] %v509
    %542 = vst [vmem:[#allocation2 + $0xe8] sm:$0xff] %v510
    %543 = vst [vmem:[#allocation2 + $0xf0] sm:$0xff] %v511
    %544 = vst [vmem:[#allocation2 + $0xf8] sm:$0xff] %v512
    // Predicated region
    $region14: #{mla_forward.5} parent=1 // pred_check
      %p545 = pneg %p12
    $region15: #{mla_forward.5} parent=1 // pred_check_branch
      %547 = sbr.rel (%p545) target = $region17
    $region16: #{mla_forward.5} parent=1 // pred_region
      %v548 = vld [vmem:[#allocation2] sm:$0xff]
      %v549 = vld [vmem:[#allocation2 + $0x8] sm:$0xff]
      %v550 = vld [vmem:[#allocation2 + $0x10] sm:$0xff]
      %v551 = vld [vmem:[#allocation2 + $0x18] sm:$0xff]
      %v552 = vld [vmem:[#allocation2 + $0x20] sm:$0xff]
      %v553 = vld [vmem:[#allocation2 + $0x28] sm:$0xff]
      %v554 = vld [vmem:[#allocation2 + $0x30] sm:$0xff]
      %v555 = vld [vmem:[#allocation2 + $0x38] sm:$0xff]
      %v556 = vld [vmem:[#allocation2 + $0x40] sm:$0xff]
      %v557 = vld [vmem:[#allocation2 + $0x48] sm:$0xff]
      %v558 = vld [vmem:[#allocation2 + $0x50] sm:$0xff]
      %v559 = vld [vmem:[#allocation2 + $0x58] sm:$0xff]
      %v560 = vld [vmem:[#allocation2 + $0x60] sm:$0xff]
      %v561 = vld [vmem:[#allocation2 + $0x68] sm:$0xff]
      %v562 = vld [vmem:[#allocation2 + $0x70] sm:$0xff]
      %v563 = vld [vmem:[#allocation2 + $0x78] sm:$0xff]
      %v564 = vld [vmem:[#allocation2 + $0x80] sm:$0xff]
      %v565 = vld [vmem:[#allocation2 + $0x88] sm:$0xff]
      %v566 = vld [vmem:[#allocation2 + $0x90] sm:$0xff]
      %v567 = vld [vmem:[#allocation2 + $0x98] sm:$0xff]
      %v568 = vld [vmem:[#allocation2 + $0xa0] sm:$0xff]
      %v569 = vld [vmem:[#allocation2 + $0xa8] sm:$0xff]
      %v570 = vld [vmem:[#allocation2 + $0xb0] sm:$0xff]
      %v571 = vld [vmem:[#allocation2 + $0xb8] sm:$0xff]
      %v572 = vld [vmem:[#allocation2 + $0xc0] sm:$0xff]
      %v573 = vld [vmem:[#allocation2 + $0xc8] sm:$0xff]
      %v574 = vld [vmem:[#allocation2 + $0xd0] sm:$0xff]
      %v575 = vld [vmem:[#allocation2 + $0xd8] sm:$0xff]
      %v576 = vld [vmem:[#allocation2 + $0xe0] sm:$0xff]
      %v577 = vld [vmem:[#allocation2 + $0xe8] sm:$0xff]
      %v578 = vld [vmem:[#allocation2 + $0xf0] sm:$0xff]
      %v579 = vld [vmem:[#allocation2 + $0xf8] sm:$0xff]
      %580 = vst [vmem:[#allocation3] sm:$0xff] %v548
      %581 = vst [vmem:[#allocation3 + $0x8] sm:$0xff] %v549
      %582 = vst [vmem:[#allocation3 + $0x10] sm:$0xff] %v550
      %583 = vst [vmem:[#allocation3 + $0x18] sm:$0xff] %v551
      %584 = vst [vmem:[#allocation3 + $0x20] sm:$0xff] %v552
      %585 = vst [vmem:[#allocation3 + $0x28] sm:$0xff] %v553
      %586 = vst [vmem:[#allocation3 + $0x30] sm:$0xff] %v554
      %587 = vst [vmem:[#allocation3 + $0x38] sm:$0xff] %v555
      %588 = vst [vmem:[#allocation3 + $0x40] sm:$0xff] %v556
      %589 = vst [vmem:[#allocation3 + $0x48] sm:$0xff] %v557
      %590 = vst [vmem:[#allocation3 + $0x50] sm:$0xff] %v558
      %591 = vst [vmem:[#allocation3 + $0x58] sm:$0xff] %v559
      %592 = vst [vmem:[#allocation3 + $0x60] sm:$0xff] %v560
      %593 = vst [vmem:[#allocation3 + $0x68] sm:$0xff] %v561
      %594 = vst [vmem:[#allocation3 + $0x70] sm:$0xff] %v562
      %595 = vst [vmem:[#allocation3 + $0x78] sm:$0xff] %v563
      %596 = vst [vmem:[#allocation3 + $0x80] sm:$0xff] %v564
      %597 = vst [vmem:[#allocation3 + $0x88] sm:$0xff] %v565
      %598 = vst [vmem:[#allocation3 + $0x90] sm:$0xff] %v566
      %599 = vst [vmem:[#allocation3 + $0x98] sm:$0xff] %v567
      %600 = vst [vmem:[#allocation3 + $0xa0] sm:$0xff] %v568
      %601 = vst [vmem:[#allocation3 + $0xa8] sm:$0xff] %v569
      %602 = vst [vmem:[#allocation3 + $0xb0] sm:$0xff] %v570
      %603 = vst [vmem:[#allocation3 + $0xb8] sm:$0xff] %v571
      %604 = vst [vmem:[#allocation3 + $0xc0] sm:$0xff] %v572
      %605 = vst [vmem:[#allocation3 + $0xc8] sm:$0xff] %v573
      %606 = vst [vmem:[#allocation3 + $0xd0] sm:$0xff] %v574
      %607 = vst [vmem:[#allocation3 + $0xd8] sm:$0xff] %v575
      %608 = vst [vmem:[#allocation3 + $0xe0] sm:$0xff] %v576
      %609 = vst [vmem:[#allocation3 + $0xe8] sm:$0xff] %v577
      %610 = vst [vmem:[#allocation3 + $0xf0] sm:$0xff] %v578
      %611 = vst [vmem:[#allocation3 + $0xf8] sm:$0xff] %v579
    $region17: #{mla_forward.5} parent=1 // pred_fallthru
      _
    // Predicated region
    $region18: #{mla_forward.5} parent=1 // pred_check
      _
    $region19: #{mla_forward.5} parent=1 // pred_check_branch
      %613 = sbr.rel (0) target = $region21
    $region20: #{mla_forward.5} parent=1 // pred_region
      %s615 = ssub.s32 4096, 4096
      %616 = vsyncadd [#allocation4], %s615
      %s617 = sshll.u32 [#allocation3], 4
      %s618 = int_to_ptr.vmem [resolvable:$true] %s617
      %623 = dma.vmem_to_hbm [thread:$0]  %s618, 4096, %s2, [#allocation4], 256, 256, 16
    $region21: #{mla_forward.5} parent=1 // pred_fallthru
      _
    // Predicated region
    $region22: #{mla_forward.5} parent=1 // pred_check
      _
    $region23: #{mla_forward.5} parent=1 // pred_check_branch
      %625 = sbr.rel (0) target = $region25
    $region24: #{mla_forward.5} parent=1 // pred_region
      %626 = dma.done [#allocation4], 4096
    $region25: #{mla_forward.5} parent=1 // pred_fallthru
      _
    %627 = vsyncpa [#allocation4], 1

// kernel: mla_forward.4
$region0: #{mla_forward.4}
  #allocation0 [shape = 'u32[]', space=smem, size = 0x4, offset = 0x4, fixed_abs, tag = 'smem constant byte address 0x4 - core index']
  #allocation1 [shape = 'u32[144,128]{1,0:T(1,128)}', space=vmem, size = 0x12000, scoped, tag = 'internal scratch']
  #allocation2 [shape = 'f32[2,32,1]{2,1,0:T(8,128)}', space=vmem, size = 0x8000, scoped, tag = 'scratch operand']
  #allocation3 [shape = 'f32[2,32,1]{2,1,0:T(8,128)}', space=vmem, size = 0x8000, scoped, tag = 'scratch operand']
  #allocation4 [shape = 'f32[2,32,128]{2,1,0:T(8,128)}', space=vmem, size = 0x8000, scoped, tag = 'scratch operand']
  %s0 = inlined_call_operand.vmem [shape: bf16[2,64,256], index: 0, kind: input, shape index: {}]
  %s1 = inlined_call_operand.vmem [shape: bf16[2,64,256], index: 1, kind: input, shape index: {}]
  %s2 = inlined_call_operand.vmem [shape: bf16[2,64,256], index: 2, kind: input, shape index: {}]
  %s3 = inlined_call_operand.vmem [shape: bf16[2,64,256], index: 3, kind: output, shape index: {}]
  %s4 = sld [smem:[#allocation0]]
  $region53: #{mla_forward.4} parent=0
    _
  %s6 = ssub.s32 1, %s4
  %s7 = scalar_select 0, %s6, %s4
  loop: start=0, step=1, limit=10
  $region2: #{mla_forward.4} parent=0 // loop_pre_header
    _
  $region3: #{mla_forward.4} parent=0 // loop_header
    %s9 = sphi 0, %s13
    %p10 = scmp.ge.s32.totalorder %s9, 10
    %s16 = sphi 0, %s35
    %s17 = sphi 0, %s31
    %s18 = sphi 0, %s27
    %s19 = sphi 0, %s16
    %s20 = sphi 0, %s17
    %s21 = sphi 0, %s18
    %s22 = sphi 0, %s19
    %s23 = sphi 0, %s20
    %s24 = sphi 0, %s21
    %s40 = sphi 0, %s42
    %s43 = sphi 0, %s40
    %s44 = sphi 0, %s43
    %s60 = sphi 0, %s44
    %s68 = sphi 0, %s70
    %s71 = sphi 0, %s68
    %s72 = sphi 0, %s71
    %s88 = sphi 0, %s72
    %s96 = sphi 0, %s98
    %s99 = sphi 0, %s96
    %s100 = sphi 0, %s99
    %s116 = sphi 0, %s100
    %s124 = sphi 0, %s126
    %s127 = sphi 0, %s124
    %s128 = sphi 0, %s127
    %s144 = sphi 0, %s128
  $region4: #{mla_forward.4} parent=0 // loop_header_branch
    %12 = sbr.rel (%p10) target = $region8
  $region5: #{mla_forward.4} parent=0 // loop_body
    %s14 = ssub.s32 %s9, 1
    %s15 = ssub.s32 %s9, 2
    %s25 = sadd.s32 1, %s18
    %p26 = scmp.ge.s32.totalorder %s25, 2
    %s27 = scalar_select %p26, 0, %s25
    %s28 = sadd.s32 1, %s17
    %s29 = scalar_select %p26, %s28, %s17
    %p30 = scmp.ge.s32.totalorder %s29, 2
    %s31 = scalar_select %p30, 0, %s29
    %s32 = sadd.s32 1, %s16
    %s33 = scalar_select %p30, %s32, %s16
    %p34 = scmp.ge.s32.totalorder %s33, 2
    %s35 = scalar_select %p34, 0, %s33
    %s36 = ssub.s32 %s16, %s35
    %s37 = ssub.s32 %s17, %s31
    %s38 = sor.u32 %s36, %s37
    %p39 = scmp.eq.s32.totalorder %s38, 0
    %s41 = sadd.s32 %s40, 1
    %s42 = scalar_select %p39, %s40, %s41
    %p45 = pneg %p39
    %p46 = scmp.eq.s32.totalorder %s9, 7
    %p47 = por %p45, %p46
    %p48 = scmp.ne.s32.totalorder %s40, %s43
    %p49 = scmp.eq.s32.totalorder %s9, 0
    %p50 = por %p48, %p49
    %p51 = scmp.ne.s32.totalorder %s40, %s43
    %p52 = scmp.eq.s32.totalorder %s14, 7
    %p53 = por %p51, %p52
    %p54 = scmp.ne.s32.totalorder %s43, %s44
    %p55 = scmp.eq.s32.totalorder %s14, 0
    %p56 = por %p54, %p55
    %p57 = scmp.ne.s32.totalorder %s43, %s44
    %p58 = scmp.eq.s32.totalorder %s15, 7
    %p59 = por %p57, %p58
    %p61 = scmp.ne.s32.totalorder %s44, %s60
    %p62 = scmp.eq.s32.totalorder %s15, 0
    %p63 = por %p61, %p62
    %s64 = ssub.s32 %s16, %s35
    %s65 = ssub.s32 %s18, %s27
    %s66 = sor.u32 %s64, %s65
    %p67 = scmp.eq.s32.totalorder %s66, 0
    %s69 = sadd.s32 %s68, 1
    %s70 = scalar_select %p67, %s68, %s69
    %p73 = pneg %p67
    %p74 = scmp.eq.s32.totalorder %s9, 7
    %p75 = por %p73, %p74
    %p76 = scmp.ne.s32.totalorder %s68, %s71
    %p77 = scmp.eq.s32.totalorder %s9, 0
    %p78 = por %p76, %p77
    %p79 = scmp.ne.s32.totalorder %s68, %s71
    %p80 = scmp.eq.s32.totalorder %s14, 7
    %p81 = por %p79, %p80
    %p82 = scmp.ne.s32.totalorder %s71, %s72
    %p83 = scmp.eq.s32.totalorder %s14, 0
    %p84 = por %p82, %p83
    %p85 = scmp.ne.s32.totalorder %s71, %s72
    %p86 = scmp.eq.s32.totalorder %s15, 7
    %p87 = por %p85, %p86
    %p89 = scmp.ne.s32.totalorder %s72, %s88
    %p90 = scmp.eq.s32.totalorder %s15, 0
    %p91 = por %p89, %p90
    %s92 = ssub.s32 %s16, %s35
    %s93 = ssub.s32 %s18, %s27
    %s94 = sor.u32 %s92, %s93
    %p95 = scmp.eq.s32.totalorder %s94, 0
    %s97 = sadd.s32 %s96, 1
    %s98 = scalar_select %p95, %s96, %s97
    %p101 = pneg %p95
    %p102 = scmp.eq.s32.totalorder %s9, 7
    %p103 = por %p101, %p102
    %p104 = scmp.ne.s32.totalorder %s96, %s99
    %p105 = scmp.eq.s32.totalorder %s9, 0
    %p106 = por %p104, %p105
    %p107 = scmp.ne.s32.totalorder %s96, %s99
    %p108 = scmp.eq.s32.totalorder %s14, 7
    %p109 = por %p107, %p108
    %p110 = scmp.ne.s32.totalorder %s99, %s100
    %p111 = scmp.eq.s32.totalorder %s14, 0
    %p112 = por %p110, %p111
    %p113 = scmp.ne.s32.totalorder %s99, %s100
    %p114 = scmp.eq.s32.totalorder %s15, 7
    %p115 = por %p113, %p114
    %p117 = scmp.ne.s32.totalorder %s100, %s116
    %p118 = scmp.eq.s32.totalorder %s15, 0
    %p119 = por %p117, %p118
    %s120 = ssub.s32 %s16, %s35
    %s121 = ssub.s32 %s17, %s31
    %s122 = sor.u32 %s120, %s121
    %p123 = scmp.eq.s32.totalorder %s122, 0
    %s125 = sadd.s32 %s124, 1
    %s126 = scalar_select %p123, %s124, %s125
    %p129 = pneg %p123
    %p130 = scmp.eq.s32.totalorder %s9, 7
    %p131 = por %p129, %p130
    %p132 = scmp.ne.s32.totalorder %s124, %s127
    %p133 = scmp.eq.s32.totalorder %s9, 0
    %p134 = por %p132, %p133
    %p135 = scmp.ne.s32.totalorder %s124, %s127
    %p136 = scmp.eq.s32.totalorder %s14, 7
    %p137 = por %p135, %p136
    %p138 = scmp.ne.s32.totalorder %s127, %s128
    %p139 = scmp.eq.s32.totalorder %s14, 0
    %p140 = por %p138, %p139
    %p141 = scmp.ne.s32.totalorder %s127, %s128
    %p142 = scmp.eq.s32.totalorder %s15, 7
    %p143 = por %p141, %p142
    %p145 = scmp.ne.s32.totalorder %s128, %s144
    %p146 = scmp.eq.s32.totalorder %s15, 0
    %p147 = por %p145, %p146
    %p148 = scmp.le.s32.totalorder 1, %s9
    %p149 = scmp.lt.s32.totalorder %s9, 9
    %p150 = pnand %p148, %p149
    %p151 = pneg %p150
    // Predicated region
    $region9: #{mla_forward.4} parent=5 // pred_check
      _
    $region10: #{mla_forward.4} parent=5 // pred_check_branch
      %153 = sbr.rel (%p150) target = $region12
    $region11: #{mla_forward.4} parent=5 // pred_region
      %s154 = ssub.s32 %s9, 1
    $region12: #{mla_forward.4} parent=5 // pred_fallthru
      _
    %p155 = scmp.lt.s32.totalorder %s9, 8
    // Predicated region
    $region13: #{mla_forward.4} parent=5 // pred_check
      %p156 = pneg %p155
    $region14: #{mla_forward.4} parent=5 // pred_check_branch
      %158 = sbr.rel (%p156) target = $region16
    $region15: #{mla_forward.4} parent=5 // pred_region
      // Predicated region
      $region17: #{mla_forward.4} parent=15 // pred_check
        %p159 = pneg %p50
      $region18: #{mla_forward.4} parent=15 // pred_check_branch
        %161 = sbr.rel (%p159) target = $region20
      $region19: #{mla_forward.4} parent=15 // pred_region
        %s162 = smul.u32 4, %s17
        %p163 = scmp.lt.s32.totalorder %s16, 1
        %s164 = scalar_select %p163, %s16, 1
        %p165 = scmp.lt.s32.totalorder %s162, 7
        %s166 = scalar_select %p165, %s162, 7
        %s167 = smul.addr %s166, 2
        %s168 = smul.addr %s164, 16
        %s169 = sadd.s32 %s167, %s168
        %s170 = smul.addr %s169, 4
        %s171 = scalar_lea.vmem %s0, %s170
        %s172 = smul.u32 4, %s17
      $region20: #{mla_forward.4} parent=15 // pred_fallthru
        _
      // Predicated region
      $region21: #{mla_forward.4} parent=15 // pred_check
        %p173 = pneg %p78
      $region22: #{mla_forward.4} parent=15 // pred_check_branch
        %175 = sbr.rel (%p173) target = $region24
      $region23: #{mla_forward.4} parent=15 // pred_region
        %s176 = smul.u32 4, %s18
        %p177 = scmp.lt.s32.totalorder %s16, 1
        %s178 = scalar_select %p177, %s16, 1
        %p179 = scmp.lt.s32.totalorder %s176, 7
        %s180 = scalar_select %p179, %s176, 7
        %s181 = smul.addr %s180, 2
        %s182 = smul.addr %s178, 16
        %s183 = sadd.s32 %s181, %s182
        %s184 = smul.addr %s183, 4
        %s185 = scalar_lea.vmem %s1, %s184
        %s186 = smul.u32 4, %s18
      $region24: #{mla_forward.4} parent=15 // pred_fallthru
        _
      // Predicated region
      $region25: #{mla_forward.4} parent=15 // pred_check
        %p187 = pneg %p106
      $region26: #{mla_forward.4} parent=15 // pred_check_branch
        %189 = sbr.rel (%p187) target = $region28
      $region27: #{mla_forward.4} parent=15 // pred_region
        %s190 = smul.u32 4, %s18
        %p191 = scmp.lt.s32.totalorder %s16, 1
        %s192 = scalar_select %p191, %s16, 1
        %p193 = scmp.lt.s32.totalorder %s190, 7
        %s194 = scalar_select %p193, %s190, 7
        %s195 = smul.addr %s194, 2
        %s196 = smul.addr %s192, 16
        %s197 = sadd.s32 %s195, %s196
        %s198 = smul.addr %s197, 4
        %s199 = scalar_lea.vmem %s2, %s198
        %s200 = smul.u32 4, %s18
      $region28: #{mla_forward.4} parent=15 // pred_fallthru
        _
    $region16: #{mla_forward.4} parent=5 // pred_fallthru
      _
    %p201 = scmp.le.s32.totalorder 1, %s9
    %p202 = scmp.lt.s32.totalorder %s9, 9
    %p203 = pnand %p201, %p202
    %p204 = pneg %p203
    // Predicated region
    $region29: #{mla_forward.4} parent=5 // pred_check
      _
    $region30: #{mla_forward.4} parent=5 // pred_check_branch
      %206 = sbr.rel (%p203) target = $region32
    $region31: #{mla_forward.4} parent=5 // pred_region
      %s207 = ssub.s32 %s9, 1
      %s208 = smul.u32 4, %s20
      %p209 = scmp.lt.s32.totalorder %s19, 1
      %s210 = scalar_select %p209, %s19, 1
      %p211 = scmp.lt.s32.totalorder %s208, 7
      %s212 = scalar_select %p211, %s208, 7
      %s213 = smul.addr %s212, 2
      %s214 = smul.addr %s210, 16
      %s215 = sadd.s32 %s213, %s214
      %s216 = smul.addr %s215, 4
      %s217 = scalar_lea.vmem %s0, %s216
      %p218 = pneg %p56
      %p219 = pneg %p53
      %s220 = smul.u32 4, %s21
      %p221 = scmp.lt.s32.totalorder %s19, 1
      %s222 = scalar_select %p221, %s19, 1
      %p223 = scmp.lt.s32.totalorder %s220, 7
      %s224 = scalar_select %p223, %s220, 7
      %s225 = smul.addr %s224, 2
      %s226 = smul.addr %s222, 16
      %s227 = sadd.s32 %s225, %s226
      %s228 = smul.addr %s227, 4
      %s229 = scalar_lea.vmem %s1, %s228
      %p230 = pneg %p84
      %p231 = pneg %p81
      %s232 = smul.u32 4, %s21
      %p233 = scmp.lt.s32.totalorder %s19, 1
      %s234 = scalar_select %p233, %s19, 1
      %p235 = scmp.lt.s32.totalorder %s232, 7
      %s236 = scalar_select %p235, %s232, 7
      %s237 = smul.addr %s236, 2
      %s238 = smul.addr %s234, 16
      %s239 = sadd.s32 %s237, %s238
      %s240 = smul.addr %s239, 4
      %s241 = scalar_lea.vmem %s2, %s240
      %p242 = pneg %p112
      %p243 = pneg %p109
      %p244 = pneg %p140
      %p245 = pneg %p137
      %s246 = smul.u32 4, %s20
      %p247 = scmp.lt.s32.totalorder %s19, 1
      %s248 = scalar_select %p247, %s19, 1
      %p249 = scmp.lt.s32.totalorder %s246, 7
      %s250 = scalar_select %p249, %s246, 7
      %s251 = smul.addr %s250, 2
      %s252 = smul.addr %s248, 16
      %s253 = sadd.s32 %s251, %s252
      %s254 = smul.addr %s253, 4
      %s255 = scalar_lea.vmem %s3, %s254
      %s256 = smul.u32 4, %s20
      %p257 = scmp.lt.s32.totalorder %s19, 1
      %s258 = scalar_select %p257, %s19, 1
      %p259 = scmp.lt.s32.totalorder %s256, 7
      %s260 = scalar_select %p259, %s256, 7
      %s261 = smul.addr %s260, 2
      %s262 = smul.addr %s258, 16
      %s263 = sadd.s32 %s261, %s262
      %s264 = smul.addr %s263, 4
      %s265 = scalar_lea.vmem %s0, %s264
      %s266 = smul.u32 4, %s20
      %s267 = smul.u32 4, %s21
      %p268 = scmp.lt.s32.totalorder %s19, 1
      %s269 = scalar_select %p268, %s19, 1
      %p270 = scmp.lt.s32.totalorder %s267, 7
      %s271 = scalar_select %p270, %s267, 7
      %s272 = smul.addr %s271, 2
      %s273 = smul.addr %s269, 16
      %s274 = sadd.s32 %s272, %s273
      %s275 = smul.addr %s274, 4
      %s276 = scalar_lea.vmem %s1, %s275
      %s277 = smul.u32 4, %s21
      %s278 = smul.u32 4, %s21
      %p279 = scmp.lt.s32.totalorder %s19, 1
      %s280 = scalar_select %p279, %s19, 1
      %p281 = scmp.lt.s32.totalorder %s278, 7
      %s282 = scalar_select %p281, %s278, 7
      %s283 = smul.addr %s282, 2
      %s284 = smul.addr %s280, 16
      %s285 = sadd.s32 %s283, %s284
      %s286 = smul.addr %s285, 4
      %s287 = scalar_lea.vmem %s2, %s286
      %s288 = smul.u32 4, %s21
      %s289 = smul.u32 4, %s20
      %p290 = scmp.lt.s32.totalorder %s19, 1
      %s291 = scalar_select %p290, %s19, 1
      %p292 = scmp.lt.s32.totalorder %s289, 7
      %s293 = scalar_select %p292, %s289, 7
      %s294 = smul.addr %s293, 2
      %s295 = smul.addr %s291, 16
      %s296 = sadd.s32 %s294, %s295
      %s297 = smul.addr %s296, 4
      %s298 = scalar_lea.vmem %s3, %s297
      %s299 = smul.u32 4, %s20
      %p301 = scmp.eq.s32.totalorder %s21, 0
      // Predicated region
      $region33: #{mla_forward.4} parent=31 // pred_check
        %p302 = pneg %p301
      $region34: #{mla_forward.4} parent=31 // pred_check_branch
        %304 = sbr.rel (%p302) target = $region36
      $region35: #{mla_forward.4} parent=31 // pred_region
        %vm305 = vcmask 7168
        %306 = vst.msk [vmem:[#allocation2] sm:$0xff] %vm305, -inf
        %307 = vst.msk [vmem:[#allocation2 + $0x8] sm:$0xff] %vm305, -inf
        %308 = vst.msk [vmem:[#allocation2 + $0x10] sm:$0xff] %vm305, -inf
        %309 = vst.msk [vmem:[#allocation2 + $0x18] sm:$0xff] %vm305, -inf
        %310 = vst.msk [vmem:[#allocation2 + $0x20] sm:$0xff] %vm305, -inf
        %311 = vst.msk [vmem:[#allocation2 + $0x28] sm:$0xff] %vm305, -inf
        %312 = vst.msk [vmem:[#allocation2 + $0x30] sm:$0xff] %vm305, -inf
        %313 = vst.msk [vmem:[#allocation2 + $0x38] sm:$0xff] %vm305, -inf
        %314 = vst.msk [vmem:[#allocation3] sm:$0xff] %vm305, 0.0
        %315 = vst.msk [vmem:[#allocation3 + $0x8] sm:$0xff] %vm305, 0.0
        %316 = vst.msk [vmem:[#allocation3 + $0x10] sm:$0xff] %vm305, 0.0
        %317 = vst.msk [vmem:[#allocation3 + $0x18] sm:$0xff] %vm305, 0.0
        %318 = vst.msk [vmem:[#allocation3 + $0x20] sm:$0xff] %vm305, 0.0
        %319 = vst.msk [vmem:[#allocation3 + $0x28] sm:$0xff] %vm305, 0.0
        %320 = vst.msk [vmem:[#allocation3 + $0x30] sm:$0xff] %vm305, 0.0
        %321 = vst.msk [vmem:[#allocation3 + $0x38] sm:$0xff] %vm305, 0.0
        %322 = vst [vmem:[#allocation4] sm:$0xff] 0.0
        %323 = vst [vmem:[#allocation4 + $0x8] sm:$0xff] 0.0
        %324 = vst [vmem:[#allocation4 + $0x10] sm:$0xff] 0.0
        %325 = vst [vmem:[#allocation4 + $0x18] sm:$0xff] 0.0
        %326 = vst [vmem:[#allocation4 + $0x20] sm:$0xff] 0.0
        %327 = vst [vmem:[#allocation4 + $0x28] sm:$0xff] 0.0
        %328 = vst [vmem:[#allocation4 + $0x30] sm:$0xff] 0.0
        %329 = vst [vmem:[#allocation4 + $0x38] sm:$0xff] 0.0
      $region36: #{mla_forward.4} parent=31 // pred_fallthru
        _
      %v330 = vld [vmem:[%s265] sm:$0xf]
      %v331 = vld [vmem:[%s265 + $0x8] sm:$0xf]
      %v332 = vld [vmem:[%s265 + $0x10] sm:$0xf]
      %v333 = vld [vmem:[%s265 + $0x18] sm:$0xf]
      %v334 = vld [vmem:[%s276] sm:$0xf]
      %v335 = vld [vmem:[%s276 + $0x8] sm:$0xf]
      %v336 = vld [vmem:[%s276 + $0x10] sm:$0xf]
      %v337 = vld [vmem:[%s276 + $0x18] sm:$0xf]
      %v342 = vunpack.c.l.b16 %v330
      %v343 = vunpack.c.l.b16 %v331
      %v344 = vunpack.c.l.b16 %v332
      %v345 = vunpack.c.l.b16 %v333
      %v346 = vpack.c.b16 %v343, %v342
      %v347 = vpack.c.b16 %v345, %v344
      %v354 = vunpack.c.l.b16 %v334
      %v355 = vunpack.c.l.b16 %v335
      %v356 = vunpack.c.l.b16 %v336
      %v357 = vunpack.c.l.b16 %v337
      %v358 = vpack.c.b16 %v355, %v354
      %v359 = vpack.c.b16 %v357, %v356
      %362 = vmatprep.subr.bf16.mxu0 0
      %363 = vmatpush1.bf16.xpose.msra.mxu0 0
      %364 = vmatprep.subr.bf16.mxu0 0
      %365 = vmatpush1.bf16.xpose.msra.mxu0 0
      %366 = vmatprep.subr.bf16.mxu0 0
      %367 = vmatpush1.bf16.xpose.msra.mxu0 0
      %368 = vmatprep.subr.bf16.mxu0 0
      %369 = vmatpush1.bf16.xpose.msra.mxu0 0
      %370 = vmatprep.subr.bf16.mxu0 0
      %371 = vmatpush1.bf16.xpose.msra.mxu0 0
      %372 = vmatprep.subr.bf16.mxu0 0
      %373 = vmatpush1.bf16.xpose.msra.mxu0 0
      %374 = vmatprep.subr.bf16.mxu0 0
      %375 = vmatpush1.bf16.xpose.msra.mxu0 %v359
      %376 = vmatprep.subr.bf16.mxu0 0
      %377 = vmatpush1.bf16.xpose.msra.mxu0 %v358
      %378 = vmatprep.subr.bf16.mxu0 0
      %379 = vmatpush2.bf16.xpose.msra.mxu0 0
      %380 = vmatprep.subr.bf16.mxu0 0
      %381 = vmatpush2.bf16.xpose.msra.mxu0 0
      %382 = vmatprep.subr.bf16.mxu0 0
      %383 = vmatpush2.bf16.xpose.msra.mxu0 0
      %384 = vmatprep.subr.bf16.mxu0 0
      %385 = vmatpush2.bf16.xpose.msra.mxu0 0
      %386 = vmatprep.subr.bf16.mxu0 0
      %387 = vmatpush2.bf16.xpose.msra.mxu0 0
      %388 = vmatprep.subr.bf16.mxu0 0
      %389 = vmatpush2.bf16.xpose.msra.mxu0 0
      %390 = vmatprep.subr.bf16.mxu0 0
      %391 = vmatpush2.bf16.xpose.msra.mxu0 0
      %392 = vmatprep.subr.bf16.mxu0 0
      %393 = vmatpush2.bf16.xpose.msra.mxu0 0
      %394 = vmatprep.mubr.bf16.mxu0 0
      %395 = vmatmul.mubr.bf16.gmra.mxu0 %v346
      %v396 = vpop.f32.mrf.mxu0
      %v397 = vadd.f32 0.0, %v396
      %v398 = vpop.f32.mrf.mxu0
      %v399 = vpop.f32.mrf.mxu0
      %v400 = vadd.f32 0.0, %v399
      %v401 = vpop.f32.mrf.mxu0
      %402 = vmatprep.mubr.bf16.mxu0 0
      %403 = vmatmul.mubr.bf16.gmra.mxu0 %v347
      %v404 = vpop.f32.mrf.mxu0
      %v405 = vadd.f32 0.0, %v404
      %v406 = vpop.f32.mrf.mxu0
      %v407 = vpop.f32.mrf.mxu0
      %v408 = vadd.f32 0.0, %v407
      %v409 = vpop.f32.mrf.mxu0
      %410 = vdwg.mxu0
      %v411 = vld [vmem:[#allocation2] sm:$0xff]
      %v412 = vld [vmem:[#allocation2 + $0x8] sm:$0xff]
      %v413 = vld [vmem:[#allocation2 + $0x10] sm:$0xff]
      %v414 = vld [vmem:[#allocation2 + $0x18] sm:$0xff]
      %vm415 = vcmask 261120
      %v416 = vsel %vm415, %v397, -inf
      %417 = vmax.xlane.f32.xlu0 %v416
      %v418 = vpop.xlane.xlu0 %417
      %v419 = vsel %vm415, %v400, -inf
      %420 = vmax.xlane.f32.xlu0 %v419
      %v421 = vpop.xlane.xlu0 %420
      %v422 = vsel %vm415, %v405, -inf
      %423 = vmax.xlane.f32.xlu0 %v422
      %v424 = vpop.xlane.xlu0 %423
      %v425 = vsel %vm415, %v408, -inf
      %426 = vmax.xlane.f32.xlu0 %v425
      %v427 = vpop.xlane.xlu0 %426
      %v428 = vmax.f32 %v411, %v418
      %v429 = vmax.f32 %v412, %v421
      %v430 = vmax.f32 %v413, %v424
      %v431 = vmax.f32 %v414, %v427
      %v432 = vsub.f32 %v411, %v428
      %v433 = vsub.f32 %v412, %v429
      %v434 = vsub.f32 %v413, %v430
      %v435 = vsub.f32 %v414, %v431
      %v436 = vmul.f32 %v432, 1.442695
      %v437 = vpow.pop %v436
      %v438 = vmul.f32 %v433, 1.442695
      %v439 = vpow.pop %v438
      %v440 = vmul.f32 %v434, 1.442695
      %v441 = vpow.pop %v440
      %v442 = vmul.f32 %v435, 1.442695
      %v443 = vpow.pop %v442
      %445 = vset.pattern.permute.xlu0 0
      %446 = vperm.xlu0 %445, %v428
      %v447 = vpop.permute.xlu0 %446
      %450 = vset.pattern.permute.xlu0 0
      %451 = vperm.xlu0 %450, %v429
      %v452 = vpop.permute.xlu0 %451
      %455 = vset.pattern.permute.xlu0 0
      %456 = vperm.xlu0 %455, %v430
      %v457 = vpop.permute.xlu0 %456
      %460 = vset.pattern.permute.xlu0 0
      %461 = vperm.xlu0 %460, %v431
      %v462 = vpop.permute.xlu0 %461
      %v464 = vsub.f32 %v397, %v447
      %v465 = vsub.f32 %v400, %v452
      %v466 = vsub.f32 %v405, %v457
      %v467 = vsub.f32 %v408, %v462
      %v468 = vmul.f32 %v464, 1.442695
      %v469 = vpow.pop %v468
      %v470 = vmul.f32 %v465, 1.442695
      %v471 = vpow.pop %v470
      %v472 = vmul.f32 %v466, 1.442695
      %v473 = vpow.pop %v472
      %v474 = vmul.f32 %v467, 1.442695
      %v475 = vpow.pop %v474
      %v476 = vld [vmem:[#allocation3] sm:$0xff]
      %v477 = vld [vmem:[#allocation3 + $0x8] sm:$0xff]
      %v478 = vld [vmem:[#allocation3 + $0x10] sm:$0xff]
      %v479 = vld [vmem:[#allocation3 + $0x18] sm:$0xff]
      %v480 = vmul.f32 %v437, %v476
      %v481 = vmul.f32 %v439, %v477
      %v482 = vmul.f32 %v441, %v478
      %v483 = vmul.f32 %v443, %v479
      %v484 = vsel %vm415, %v469, 0.0
      %485 = vadd.xlane.f32.xlu0 %v484
      %v486 = vpop.xlane.xlu0 %485
      %v487 = vsel %vm415, %v471, 0.0
      %488 = vadd.xlane.f32.xlu0 %v487
      %v489 = vpop.xlane.xlu0 %488
      %v490 = vsel %vm415, %v473, 0.0
      %491 = vadd.xlane.f32.xlu0 %v490
      %v492 = vpop.xlane.xlu0 %491
      %v493 = vsel %vm415, %v475, 0.0
      %494 = vadd.xlane.f32.xlu0 %v493
      %v495 = vpop.xlane.xlu0 %494
      %v496 = vadd.f32 %v480, %v486
      %v497 = vadd.f32 %v481, %v489
      %v498 = vadd.f32 %v482, %v492
      %v499 = vadd.f32 %v483, %v495
      %vm500 = vcmask 7168
      %501 = vst.msk [vmem:[#allocation3] sm:$0xff] %vm500, %v496
      %502 = vst.msk [vmem:[#allocation3 + $0x8] sm:$0xff] %vm500, %v497
      %503 = vst.msk [vmem:[#allocation3 + $0x10] sm:$0xff] %vm500, %v498
      %504 = vst.msk [vmem:[#allocation3 + $0x18] sm:$0xff] %vm500, %v499
      %v505 = vld [vmem:[#allocation4] sm:$0xff]
      %v506 = vld [vmem:[#allocation4 + $0x8] sm:$0xff]
      %v507 = vld [vmem:[#allocation4 + $0x10] sm:$0xff]
      %v508 = vld [vmem:[#allocation4 + $0x18] sm:$0xff]
      %510 = vset.pattern.permute.xlu0 0
      %511 = vperm.xlu0 %510, %v437
      %v512 = vpop.permute.xlu0 %511
      %515 = vset.pattern.permute.xlu0 0
      %516 = vperm.xlu0 %515, %v439
      %v517 = vpop.permute.xlu0 %516
      %520 = vset.pattern.permute.xlu0 0
      %521 = vperm.xlu0 %520, %v441
      %v522 = vpop.permute.xlu0 %521
      %525 = vset.pattern.permute.xlu0 0
      %526 = vperm.xlu0 %525, %v443
      %v527 = vpop.permute.xlu0 %526
      %v529 = vmul.f32 %v512, %v505
      %v530 = vmul.f32 %v517, %v506
      %v531 = vmul.f32 %v522, %v507
      %v532 = vmul.f32 %v527, %v508
      %v533 = vpack.c.bf16 %v471, %v469
      %v534 = vpack.c.bf16 %v475, %v473
      %v535 = vld [vmem:[%s287] sm:$0xf]
      %v536 = vld [vmem:[%s287 + $0x8] sm:$0xf]
      %v537 = vld [vmem:[%s287 + $0x10] sm:$0xf]
      %v538 = vld [vmem:[%s287 + $0x18] sm:$0xf]
      %v543 = vunpack.c.l.b16 %v535
      %v544 = vunpack.c.l.b16 %v536
      %v545 = vunpack.c.l.b16 %v537
      %v546 = vunpack.c.l.b16 %v538
      %v547 = vpack.c.b16 %v544, %v543
      %v548 = vpack.c.b16 %v546, %v545
      %v552 = vsel %vm415, %v533, 0
      %v555 = vsel %vm415, %v534, 0
      %557 = vmatprep.subr.bf16.mxu0 0
      %558 = vmatpush1.bf16.msra.mxu0 0
      %559 = vmatprep.subr.bf16.mxu0 0
      %560 = vmatpush1.bf16.msra.mxu0 0
      %561 = vmatprep.subr.bf16.mxu0 0
      %562 = vmatpush1.bf16.msra.mxu0 0
      %563 = vmatprep.subr.bf16.mxu0 0
      %564 = vmatpush1.bf16.msra.mxu0 0
      %565 = vmatprep.subr.bf16.mxu0 0
      %566 = vmatpush1.bf16.msra.mxu0 0
      %567 = vmatprep.subr.bf16.mxu0 0
      %568 = vmatpush1.bf16.msra.mxu0 0
      %569 = vmatprep.subr.bf16.mxu0 0
      %570 = vmatpush1.bf16.msra.mxu0 %v548
      %571 = vmatprep.subr.bf16.mxu0 0
      %572 = vmatpush1.bf16.msra.mxu0 %v547
      %573 = vmatprep.subr.bf16.mxu0 0
      %574 = vmatpush2.bf16.msra.mxu0 0
      %575 = vmatprep.subr.bf16.mxu0 0
      %576 = vmatpush2.bf16.msra.mxu0 0
      %577 = vmatprep.subr.bf16.mxu0 0
      %578 = vmatpush2.bf16.msra.mxu0 0
      %579 = vmatprep.subr.bf16.mxu0 0
      %580 = vmatpush2.bf16.msra.mxu0 0
      %581 = vmatprep.subr.bf16.mxu0 0
      %582 = vmatpush2.bf16.msra.mxu0 0
      %583 = vmatprep.subr.bf16.mxu0 0
      %584 = vmatpush2.bf16.msra.mxu0 0
      %585 = vmatprep.subr.bf16.mxu0 0
      %586 = vmatpush2.bf16.msra.mxu0 0
      %587 = vmatprep.subr.bf16.mxu0 0
      %588 = vmatpush2.bf16.msra.mxu0 0
      %589 = vmatprep.mubr.bf16.mxu0 0
      %590 = vmatmul.mubr.bf16.gmra.mxu0 %v552
      %v591 = vpop.f32.mrf.mxu0
      %v592 = vadd.f32 0.0, %v591
      %v593 = vpop.f32.mrf.mxu0
      %v594 = vpop.f32.mrf.mxu0
      %v595 = vadd.f32 0.0, %v594
      %v596 = vpop.f32.mrf.mxu0
      %597 = vmatprep.mubr.bf16.mxu0 0
      %598 = vmatmul.mubr.bf16.gmra.mxu0 %v555
      %v599 = vpop.f32.mrf.mxu0
      %v600 = vadd.f32 0.0, %v599
      %v601 = vpop.f32.mrf.mxu0
      %v602 = vpop.f32.mrf.mxu0
      %v603 = vadd.f32 0.0, %v602
      %v604 = vpop.f32.mrf.mxu0
      %605 = vdwg.mxu0
      %v606 = vadd.f32 %v529, %v592
      %v607 = vadd.f32 %v530, %v595
      %v608 = vadd.f32 %v531, %v600
      %v609 = vadd.f32 %v532, %v603
      %610 = vst [vmem:[#allocation4] sm:$0xff] %v606
      %611 = vst [vmem:[#allocation4 + $0x8] sm:$0xff] %v607
      %612 = vst [vmem:[#allocation4 + $0x10] sm:$0xff] %v608
      %613 = vst [vmem:[#allocation4 + $0x18] sm:$0xff] %v609
      %614 = vst.msk [vmem:[#allocation2] sm:$0xff] %vm500, %v428
      %615 = vst.msk [vmem:[#allocation2 + $0x8] sm:$0xff] %vm500, %v429
      %616 = vst.msk [vmem:[#allocation2 + $0x10] sm:$0xff] %vm500, %v430
      %617 = vst.msk [vmem:[#allocation2 + $0x18] sm:$0xff] %vm500, %v431
      %v618 = vld [vmem:[%s265 + $0x4] sm:$0xf]
      %v619 = vld [vmem:[%s265 + $0xc] sm:$0xf]
      %v620 = vld [vmem:[%s265 + $0x14] sm:$0xf]
      %v621 = vld [vmem:[%s265 + $0x1c] sm:$0xf]
      %v622 = vld [vmem:[%s276 + $0x4] sm:$0xf]
      %v623 = vld [vmem:[%s276 + $0xc] sm:$0xf]
      %v624 = vld [vmem:[%s276 + $0x14] sm:$0xf]
      %v625 = vld [vmem:[%s276 + $0x1c] sm:$0xf]
      %v630 = vunpack.c.l.b16 %v618
      %v631 = vunpack.c.l.b16 %v619
      %v632 = vunpack.c.l.b16 %v620
      %v633 = vunpack.c.l.b16 %v621
      %v634 = vpack.c.b16 %v631, %v630
      %v635 = vpack.c.b16 %v633, %v632
      %v642 = vunpack.c.l.b16 %v622
      %v643 = vunpack.c.l.b16 %v623
      %v644 = vunpack.c.l.b16 %v624
      %v645 = vunpack.c.l.b16 %v625
      %v646 = vpack.c.b16 %v643, %v642
      %v647 = vpack.c.b16 %v645, %v644
      %650 = vmatprep.subr.bf16.mxu0 0
      %651 = vmatpush1.bf16.xpose.msra.mxu0 0
      %652 = vmatprep.subr.bf16.mxu0 0
      %653 = vmatpush1.bf16.xpose.msra.mxu0 0
      %654 = vmatprep.subr.bf16.mxu0 0
      %655 = vmatpush1.bf16.xpose.msra.mxu0 0
      %656 = vmatprep.subr.bf16.mxu0 0
      %657 = vmatpush1.bf16.xpose.msra.mxu0 0
      %658 = vmatprep.subr.bf16.mxu0 0
      %659 = vmatpush1.bf16.xpose.msra.mxu0 0
      %660 = vmatprep.subr.bf16.mxu0 0
      %661 = vmatpush1.bf16.xpose.msra.mxu0 0
      %662 = vmatprep.subr.bf16.mxu0 0
      %663 = vmatpush1.bf16.xpose.msra.mxu0 %v647
      %664 = vmatprep.subr.bf16.mxu0 0
      %665 = vmatpush1.bf16.xpose.msra.mxu0 %v646
      %666 = vmatprep.subr.bf16.mxu0 0
      %667 = vmatpush2.bf16.xpose.msra.mxu0 0
      %668 = vmatprep.subr.bf16.mxu0 0
      %669 = vmatpush2.bf16.xpose.msra.mxu0 0
      %670 = vmatprep.subr.bf16.mxu0 0
      %671 = vmatpush2.bf16.xpose.msra.mxu0 0
      %672 = vmatprep.subr.bf16.mxu0 0
      %673 = vmatpush2.bf16.xpose.msra.mxu0 0
      %674 = vmatprep.subr.bf16.mxu0 0
      %675 = vmatpush2.bf16.xpose.msra.mxu0 0
      %676 = vmatprep.subr.bf16.mxu0 0
      %677 = vmatpush2.bf16.xpose.msra.mxu0 0
      %678 = vmatprep.subr.bf16.mxu0 0
      %679 = vmatpush2.bf16.xpose.msra.mxu0 0
      %680 = vmatprep.subr.bf16.mxu0 0
      %681 = vmatpush2.bf16.xpose.msra.mxu0 0
      %682 = vmatprep.mubr.bf16.mxu0 0
      %683 = vmatmul.mubr.bf16.gmra.mxu0 %v634
      %v684 = vpop.f32.mrf.mxu0
      %v685 = vadd.f32 0.0, %v684
      %v686 = vpop.f32.mrf.mxu0
      %v687 = vpop.f32.mrf.mxu0
      %v688 = vadd.f32 0.0, %v687
      %v689 = vpop.f32.mrf.mxu0
      %690 = vmatprep.mubr.bf16.mxu0 0
      %691 = vmatmul.mubr.bf16.gmra.mxu0 %v635
      %v692 = vpop.f32.mrf.mxu0
      %v693 = vadd.f32 0.0, %v692
      %v694 = vpop.f32.mrf.mxu0
      %v695 = vpop.f32.mrf.mxu0
      %v696 = vadd.f32 0.0, %v695
      %v697 = vpop.f32.mrf.mxu0
      %698 = vdwg.mxu0
      %s699 = scalar_lea.vmem [#allocation2], 32
      %v700 = vld [vmem:[%s699] sm:$0xff]
      %v701 = vld [vmem:[%s699 + $0x8] sm:$0xff]
      %v702 = vld [vmem:[%s699 + $0x10] sm:$0xff]
      %v703 = vld [vmem:[%s699 + $0x18] sm:$0xff]
      %v704 = vsel %vm415, %v685, -inf
      %705 = vmax.xlane.f32.xlu0 %v704
      %v706 = vpop.xlane.xlu0 %705
      %v707 = vsel %vm415, %v688, -inf
      %708 = vmax.xlane.f32.xlu0 %v707
      %v709 = vpop.xlane.xlu0 %708
      %v710 = vsel %vm415, %v693, -inf
      %711 = vmax.xlane.f32.xlu0 %v710
      %v712 = vpop.xlane.xlu0 %711
      %v713 = vsel %vm415, %v696, -inf
      %714 = vmax.xlane.f32.xlu0 %v713
      %v715 = vpop.xlane.xlu0 %714
      %v716 = vmax.f32 %v700, %v706
      %v717 = vmax.f32 %v701, %v709
      %v718 = vmax.f32 %v702, %v712
      %v719 = vmax.f32 %v703, %v715
      %v720 = vsub.f32 %v700, %v716
      %v721 = vsub.f32 %v701, %v717
      %v722 = vsub.f32 %v702, %v718
      %v723 = vsub.f32 %v703, %v719
      %v724 = vmul.f32 %v720, 1.442695
      %v725 = vpow.pop %v724
      %v726 = vmul.f32 %v721, 1.442695
      %v727 = vpow.pop %v726
      %v728 = vmul.f32 %v722, 1.442695
      %v729 = vpow.pop %v728
      %v730 = vmul.f32 %v723, 1.442695
      %v731 = vpow.pop %v730
      %733 = vset.pattern.permute.xlu0 0
      %734 = vperm.xlu0 %733, %v716
      %v735 = vpop.permute.xlu0 %734
      %738 = vset.pattern.permute.xlu0 0
      %739 = vperm.xlu0 %738, %v717
      %v740 = vpop.permute.xlu0 %739
      %743 = vset.pattern.permute.xlu0 0
      %744 = vperm.xlu0 %743, %v718
      %v745 = vpop.permute.xlu0 %744
      %748 = vset.pattern.permute.xlu0 0
      %749 = vperm.xlu0 %748, %v719
      %v750 = vpop.permute.xlu0 %749
      %v752 = vsub.f32 %v685, %v735
      %v753 = vsub.f32 %v688, %v740
      %v754 = vsub.f32 %v693, %v745
      %v755 = vsub.f32 %v696, %v750
      %v756 = vmul.f32 %v752, 1.442695
      %v757 = vpow.pop %v756
      %v758 = vmul.f32 %v753, 1.442695
      %v759 = vpow.pop %v758
      %v760 = vmul.f32 %v754, 1.442695
      %v761 = vpow.pop %v760
      %v762 = vmul.f32 %v755, 1.442695
      %v763 = vpow.pop %v762
      %s764 = scalar_lea.vmem [#allocation3], 32
      %v765 = vld [vmem:[%s764] sm:$0xff]
      %v766 = vld [vmem:[%s764 + $0x8] sm:$0xff]
      %v767 = vld [vmem:[%s764 + $0x10] sm:$0xff]
      %v768 = vld [vmem:[%s764 + $0x18] sm:$0xff]
      %v769 = vmul.f32 %v725, %v765
      %v770 = vmul.f32 %v727, %v766
      %v771 = vmul.f32 %v729, %v767
      %v772 = vmul.f32 %v731, %v768
      %v773 = vsel %vm415, %v757, 0.0
      %774 = vadd.xlane.f32.xlu0 %v773
      %v775 = vpop.xlane.xlu0 %774
      %v776 = vsel %vm415, %v759, 0.0
      %777 = vadd.xlane.f32.xlu0 %v776
      %v778 = vpop.xlane.xlu0 %777
      %v779 = vsel %vm415, %v761, 0.0
      %780 = vadd.xlane.f32.xlu0 %v779
      %v781 = vpop.xlane.xlu0 %780
      %v782 = vsel %vm415, %v763, 0.0
      %783 = vadd.xlane.f32.xlu0 %v782
      %v784 = vpop.xlane.xlu0 %783
      %v785 = vadd.f32 %v769, %v775
      %v786 = vadd.f32 %v770, %v778
      %v787 = vadd.f32 %v771, %v781
      %v788 = vadd.f32 %v772, %v784
      %789 = vst.msk [vmem:[%s764] sm:$0xff] %vm500, %v785
      %790 = vst.msk [vmem:[%s764 + $0x8] sm:$0xff] %vm500, %v786
      %791 = vst.msk [vmem:[%s764 + $0x10] sm:$0xff] %vm500, %v787
      %792 = vst.msk [vmem:[%s764 + $0x18] sm:$0xff] %vm500, %v788
      %s793 = scalar_lea.vmem [#allocation4], 32
      %v794 = vld [vmem:[%s793] sm:$0xff]
      %v795 = vld [vmem:[%s793 + $0x8] sm:$0xff]
      %v796 = vld [vmem:[%s793 + $0x10] sm:$0xff]
      %v797 = vld [vmem:[%s793 + $0x18] sm:$0xff]
      %799 = vset.pattern.permute.xlu0 0
      %800 = vperm.xlu0 %799, %v725
      %v801 = vpop.permute.xlu0 %800
      %804 = vset.pattern.permute.xlu0 0
      %805 = vperm.xlu0 %804, %v727
      %v806 = vpop.permute.xlu0 %805
      %809 = vset.pattern.permute.xlu0 0
      %810 = vperm.xlu0 %809, %v729
      %v811 = vpop.permute.xlu0 %810
      %814 = vset.pattern.permute.xlu0 0
      %815 = vperm.xlu0 %814, %v731
      %v816 = vpop.permute.xlu0 %815
      %v818 = vmul.f32 %v801, %v794
      %v819 = vmul.f32 %v806, %v795
      %v820 = vmul.f32 %v811, %v796
      %v821 = vmul.f32 %v816, %v797
      %v822 = vpack.c.bf16 %v759, %v757
      %v823 = vpack.c.bf16 %v763, %v761
      %v824 = vld [vmem:[%s287 + $0x4] sm:$0xf]
      %v825 = vld [vmem:[%s287 + $0xc] sm:$0xf]
      %v826 = vld [vmem:[%s287 + $0x14] sm:$0xf]
      %v827 = vld [vmem:[%s287 + $0x1c] sm:$0xf]
      %v832 = vunpack.c.l.b16 %v824
      %v833 = vunpack.c.l.b16 %v825
      %v834 = vunpack.c.l.b16 %v826
      %v835 = vunpack.c.l.b16 %v827
      %v836 = vpack.c.b16 %v833, %v832
      %v837 = vpack.c.b16 %v835, %v834
      %v841 = vsel %vm415, %v822, 0
      %v844 = vsel %vm415, %v823, 0
      %846 = vmatprep.subr.bf16.mxu0 0
      %847 = vmatpush1.bf16.msra.mxu0 0
      %848 = vmatprep.subr.bf16.mxu0 0
      %849 = vmatpush1.bf16.msra.mxu0 0
      %850 = vmatprep.subr.bf16.mxu0 0
      %851 = vmatpush1.bf16.msra.mxu0 0
      %852 = vmatprep.subr.bf16.mxu0 0
      %853 = vmatpush1.bf16.msra.mxu0 0
      %854 = vmatprep.subr.bf16.mxu0 0
      %855 = vmatpush1.bf16.msra.mxu0 0
      %856 = vmatprep.subr.bf16.mxu0 0
      %857 = vmatpush1.bf16.msra.mxu0 0
      %858 = vmatprep.subr.bf16.mxu0 0
      %859 = vmatpush1.bf16.msra.mxu0 %v837
      %860 = vmatprep.subr.bf16.mxu0 0
      %861 = vmatpush1.bf16.msra.mxu0 %v836
      %862 = vmatprep.subr.bf16.mxu0 0
      %863 = vmatpush2.bf16.msra.mxu0 0
      %864 = vmatprep.subr.bf16.mxu0 0
      %865 = vmatpush2.bf16.msra.mxu0 0
      %866 = vmatprep.subr.bf16.mxu0 0
      %867 = vmatpush2.bf16.msra.mxu0 0
      %868 = vmatprep.subr.bf16.mxu0 0
      %869 = vmatpush2.bf16.msra.mxu0 0
      %870 = vmatprep.subr.bf16.mxu0 0
      %871 = vmatpush2.bf16.msra.mxu0 0
      %872 = vmatprep.subr.bf16.mxu0 0
      %873 = vmatpush2.bf16.msra.mxu0 0
      %874 = vmatprep.subr.bf16.mxu0 0
      %875 = vmatpush2.bf16.msra.mxu0 0
      %876 = vmatprep.subr.bf16.mxu0 0
      %877 = vmatpush2.bf16.msra.mxu0 0
      %878 = vmatprep.mubr.bf16.mxu0 0
      %879 = vmatmul.mubr.bf16.gmra.mxu0 %v841
      %v880 = vpop.f32.mrf.mxu0
      %v881 = vadd.f32 0.0, %v880
      %v882 = vpop.f32.mrf.mxu0
      %v883 = vpop.f32.mrf.mxu0
      %v884 = vadd.f32 0.0, %v883
      %v885 = vpop.f32.mrf.mxu0
      %886 = vmatprep.mubr.bf16.mxu0 0
      %887 = vmatmul.mubr.bf16.gmra.mxu0 %v844
      %v888 = vpop.f32.mrf.mxu0
      %v889 = vadd.f32 0.0, %v888
      %v890 = vpop.f32.mrf.mxu0
      %v891 = vpop.f32.mrf.mxu0
      %v892 = vadd.f32 0.0, %v891
      %v893 = vpop.f32.mrf.mxu0
      %894 = vdwg.mxu0
      %v895 = vadd.f32 %v818, %v881
      %v896 = vadd.f32 %v819, %v884
      %v897 = vadd.f32 %v820, %v889
      %v898 = vadd.f32 %v821, %v892
      %899 = vst [vmem:[%s793] sm:$0xff] %v895
      %900 = vst [vmem:[%s793 + $0x8] sm:$0xff] %v896
      %901 = vst [vmem:[%s793 + $0x10] sm:$0xff] %v897
      %902 = vst [vmem:[%s793 + $0x18] sm:$0xff] %v898
      %903 = vst.msk [vmem:[%s699] sm:$0xff] %vm500, %v716
      %904 = vst.msk [vmem:[%s699 + $0x8] sm:$0xff] %vm500, %v717
      %905 = vst.msk [vmem:[%s699 + $0x10] sm:$0xff] %vm500, %v718
      %906 = vst.msk [vmem:[%s699 + $0x18] sm:$0xff] %vm500, %v719
      %p907 = scmp.eq.s32.totalorder %s21, 1
      // Predicated region
      $region37: #{mla_forward.4} parent=31 // pred_check
        %p908 = pneg %p907
      $region38: #{mla_forward.4} parent=31 // pred_check_branch
        %910 = sbr.rel (%p908) target = $region40
      $region39: #{mla_forward.4} parent=31 // pred_region
        %v911 = vld [vmem:[#allocation4] sm:$0xff]
        %v912 = vld [vmem:[#allocation4 + $0x8] sm:$0xff]
        %v913 = vld [vmem:[#allocation4 + $0x10] sm:$0xff]
        %v914 = vld [vmem:[#allocation4 + $0x18] sm:$0xff]
        %v915 = vld [vmem:[#allocation3] sm:$0xff]
        %v916 = vld [vmem:[#allocation3 + $0x8] sm:$0xff]
        %v917 = vld [vmem:[#allocation3 + $0x10] sm:$0xff]
        %v918 = vld [vmem:[#allocation3 + $0x18] sm:$0xff]
        %v919 = vrcp.pop %v915
        %v920 = vrcp.pop %v916
        %v921 = vrcp.pop %v917
        %v922 = vrcp.pop %v918
        %924 = vset.pattern.permute.xlu0 0
        %925 = vperm.xlu0 %924, %v919
        %v926 = vpop.permute.xlu0 %925
        %929 = vset.pattern.permute.xlu0 0
        %930 = vperm.xlu0 %929, %v920
        %v931 = vpop.permute.xlu0 %930
        %934 = vset.pattern.permute.xlu0 0
        %935 = vperm.xlu0 %934, %v921
        %v936 = vpop.permute.xlu0 %935
        %939 = vset.pattern.permute.xlu0 0
        %940 = vperm.xlu0 %939, %v922
        %v941 = vpop.permute.xlu0 %940
        %v943 = vmul.f32 %v911, %v926
        %v944 = vmul.f32 %v912, %v931
        %v945 = vmul.f32 %v913, %v936
        %v946 = vmul.f32 %v914, %v941
        %v947 = vpack.c.bf16 %v944, %v943
        %v948 = vpack.c.bf16 %v946, %v945
        %v951 = vunpack.c.l.b16 %v947
        %v952 = vunpack.c.h.b16 %v947
        %v953 = vunpack.c.l.b16 %v948
        %v954 = vunpack.c.h.b16 %v948
        %v955 = vpack.c.b16 %v951, %v951
        %v956 = vpack.c.b16 %v952, %v952
        %v957 = vpack.c.b16 %v953, %v953
        %v958 = vpack.c.b16 %v954, %v954
        %963 = vst [vmem:[%s298] sm:$0xf] %v955
        %964 = vst [vmem:[%s298 + $0x8] sm:$0xf] %v956
        %965 = vst [vmem:[%s298 + $0x10] sm:$0xf] %v957
        %966 = vst [vmem:[%s298 + $0x18] sm:$0xf] %v958
        %v967 = vld [vmem:[%s793] sm:$0xff]
        %v968 = vld [vmem:[%s793 + $0x8] sm:$0xff]
        %v969 = vld [vmem:[%s793 + $0x10] sm:$0xff]
        %v970 = vld [vmem:[%s793 + $0x18] sm:$0xff]
        %v971 = vld [vmem:[%s764] sm:$0xff]
        %v972 = vld [vmem:[%s764 + $0x8] sm:$0xff]
        %v973 = vld [vmem:[%s764 + $0x10] sm:$0xff]
        %v974 = vld [vmem:[%s764 + $0x18] sm:$0xff]
        %v975 = vrcp.pop %v971
        %v976 = vrcp.pop %v972
        %v977 = vrcp.pop %v973
        %v978 = vrcp.pop %v974
        %980 = vset.pattern.permute.xlu0 0
        %981 = vperm.xlu0 %980, %v975
        %v982 = vpop.permute.xlu0 %981
        %985 = vset.pattern.permute.xlu0 0
        %986 = vperm.xlu0 %985, %v976
        %v987 = vpop.permute.xlu0 %986
        %990 = vset.pattern.permute.xlu0 0
        %991 = vperm.xlu0 %990, %v977
        %v992 = vpop.permute.xlu0 %991
        %995 = vset.pattern.permute.xlu0 0
        %996 = vperm.xlu0 %995, %v978
        %v997 = vpop.permute.xlu0 %996
        %v999 = vmul.f32 %v967, %v982
        %v1000 = vmul.f32 %v968, %v987
        %v1001 = vmul.f32 %v969, %v992
        %v1002 = vmul.f32 %v970, %v997
        %v1003 = vpack.c.bf16 %v1000, %v999
        %v1004 = vpack.c.bf16 %v1002, %v1001
        %v1007 = vunpack.c.l.b16 %v1003
        %v1008 = vunpack.c.h.b16 %v1003
        %v1009 = vunpack.c.l.b16 %v1004
        %v1010 = vunpack.c.h.b16 %v1004
        %v1011 = vpack.c.b16 %v1007, %v1007
        %v1012 = vpack.c.b16 %v1008, %v1008
        %v1013 = vpack.c.b16 %v1009, %v1009
        %v1014 = vpack.c.b16 %v1010, %v1010
        %1019 = vst [vmem:[%s298 + $0x4] sm:$0xf] %v1011
        %1020 = vst [vmem:[%s298 + $0xc] sm:$0xf] %v1012
        %1021 = vst [vmem:[%s298 + $0x14] sm:$0xf] %v1013
        %1022 = vst [vmem:[%s298 + $0x1c] sm:$0xf] %v1014
      $region40: #{mla_forward.4} parent=31 // pred_fallthru
        _
      %s1023 = smul.u32 4, %s20
      %p1024 = scmp.lt.s32.totalorder %s19, 1
      %s1025 = scalar_select %p1024, %s19, 1
      %p1026 = scmp.lt.s32.totalorder %s1023, 7
      %s1027 = scalar_select %p1026, %s1023, 7
      %s1028 = smul.addr %s1027, 2
      %s1029 = smul.addr %s1025, 16
      %s1030 = sadd.s32 %s1028, %s1029
      %s1031 = smul.addr %s1030, 4
      %s1032 = scalar_lea.vmem %s3, %s1031
      // Predicated region
      $region41: #{mla_forward.4} parent=31 // pred_check
        %p1033 = pneg %p137
      $region42: #{mla_forward.4} parent=31 // pred_check_branch
        %1035 = sbr.rel (%p1033) target = $region44
      $region43: #{mla_forward.4} parent=31 // pred_region
        %s1036 = smul.u32 4, %s20
      $region44: #{mla_forward.4} parent=31 // pred_fallthru
        _
    $region32: #{mla_forward.4} parent=5 // pred_fallthru
      _
    %p1037 = scmp.le.s32.totalorder 2, %s9
    // Predicated region
    $region45: #{mla_forward.4} parent=5 // pred_check
      %p1038 = pneg %p1037
    $region46: #{mla_forward.4} parent=5 // pred_check_branch
      %1040 = sbr.rel (%p1038) target = $region48
    $region47: #{mla_forward.4} parent=5 // pred_region
      %s1041 = ssub.s32 %s9, 2
      // Predicated region
      $region49: #{mla_forward.4} parent=47 // pred_check
        %p1042 = pneg %p143
      $region50: #{mla_forward.4} parent=47 // pred_check_branch
        %1044 = sbr.rel (%p1042) target = $region52
      $region51: #{mla_forward.4} parent=47 // pred_region
        %s1045 = smul.u32 4, %s23
        %p1046 = scmp.lt.s32.totalorder %s22, 1
        %s1047 = scalar_select %p1046, %s22, 1
        %p1048 = scmp.lt.s32.totalorder %s1045, 7
        %s1049 = scalar_select %p1048, %s1045, 7
        %s1050 = smul.addr %s1049, 2
        %s1051 = smul.addr %s1047, 16
        %s1052 = sadd.s32 %s1050, %s1051
        %s1053 = smul.addr %s1052, 4
        %s1054 = scalar_lea.vmem %s3, %s1053
      $region52: #{mla_forward.4} parent=47 // pred_fallthru
        _
    $region48: #{mla_forward.4} parent=5 // pred_fallthru
      _
  $region6: #{mla_forward.4} parent=0 // loop_footer
    %s13 = sadd.s32 1, %s9
  $region7: #{mla_forward.4} parent=0 // loop_footer_branch
    %8 = sbr.rel target = $region3
  $region8: #{mla_forward.4} parent=0 // loop_exit
    _

// kernel: mla_forward.3
$region0: #{mla_forward.3}
  #allocation0 [shape = 'u32[]', space=smem, size = 0x4, offset = 0x4, fixed_abs, tag = 'smem constant byte address 0x4 - core index']
  #allocation1 [shape = 'u32[144,128]{1,0:T(1,128)}', space=vmem, size = 0x12000, scoped, tag = 'internal scratch']
  #allocation2 [shape = 'f32[5,32,256]{2,1,0:T(8,128)}', space=vmem, size = 0x28000, scoped, tag = 'scratch operand']
  %s0 = inlined_call_operand.vmem [shape: f32[128,256], index: 0, kind: input, shape index: {}]
  %s1 = inlined_call_operand.vmem [shape: bf16[5,256,256], index: 1, kind: input, shape index: {}]
  %s2 = inlined_call_operand.vmem [shape: bf16[2,64,256], index: 2, kind: input, shape index: {}]
  %s3 = inlined_call_operand.vmem [shape: bf16[128,256], index: 3, kind: output, shape index: {0}]
  %s4 = inlined_call_operand.vmem [shape: bf16[128,256], index: 4, kind: output, shape index: {1}]
  %s5 = inlined_call_operand.vmem [shape: bf16[128,256], index: 5, kind: output, shape index: {2}]
  %6 = xla_tuple %s3, %s4, %s5
  %s7 = sld [smem:[#allocation0]]
  $region107: #{mla_forward.3} parent=0
    _
  %s9 = ssub.s32 1, %s7
  %s10 = scalar_select 0, %s9, %s7
  $region1: #{mla_forward.3} parent=0
    #allocation3 [shape = 'u8[65536]{0}', space=vmem, size = 0x10000, scoped, tag = 'input window, operand 2']
    loop: start=0, step=1, limit=6
    $region2: #{mla_forward.3} parent=1 // loop_pre_header
      _
    $region3: #{mla_forward.3} parent=1 // loop_header
      %s12 = sphi 0, %s16
      %p13 = scmp.ge.s32.totalorder %s12, 6
      %s19 = sphi 0, %s38
      %s20 = sphi 0, %s34
      %s21 = sphi 0, %s30
      %s22 = sphi 0, %s19
      %s23 = sphi 0, %s20
      %s24 = sphi 0, %s21
      %s25 = sphi 0, %s22
      %s26 = sphi 0, %s23
      %s27 = sphi 0, %s24
      %s43 = sphi 0, %s45
      %s46 = sphi 0, %s43
      %s47 = sphi 0, %s46
      %s63 = sphi 0, %s47
      %s71 = sphi 0, %s73
      %s74 = sphi 0, %s71
      %s75 = sphi 0, %s74
      %s91 = sphi 0, %s75
      %s123 = sphi 0, %s125
      %s126 = sphi 0, %s123
      %s127 = sphi 0, %s126
      %s143 = sphi 0, %s127
      %s151 = sphi 0, %s153
      %s154 = sphi 0, %s151
      %s155 = sphi 0, %s154
      %s171 = sphi 0, %s155
      %s179 = sphi 0, %s181
      %s182 = sphi 0, %s179
      %s183 = sphi 0, %s182
      %s199 = sphi 0, %s183
      %s207 = sphi 0, %s209
      %s210 = sphi 0, %s207
      %s211 = sphi 0, %s210
      %s227 = sphi 0, %s211
    $region4: #{mla_forward.3} parent=1 // loop_header_branch
      %15 = sbr.rel (%p13) target = $region8
    $region5: #{mla_forward.3} parent=1 // loop_body
      %s17 = ssub.s32 %s12, 1
      %s18 = ssub.s32 %s12, 2
      %s28 = sadd.s32 1, %s21
      %p29 = scmp.ge.s32.totalorder %s28, 1
      %s30 = scalar_select %p29, 0, %s28
      %s31 = sadd.s32 1, %s20
      %s32 = scalar_select %p29, %s31, %s20
      %p33 = scmp.ge.s32.totalorder %s32, 1
      %s34 = scalar_select %p33, 0, %s32
      %s35 = sadd.s32 1, %s19
      %s36 = scalar_select %p33, %s35, %s19
      %p37 = scmp.ge.s32.totalorder %s36, 4
      %s38 = scalar_select %p37, 0, %s36
      %s39 = ssub.s32 %s19, %s38
      %s40 = ssub.s32 %s21, %s30
      %s41 = sor.u32 %s39, %s40
      %p42 = scmp.eq.s32.totalorder %s41, 0
      %s44 = sadd.s32 %s43, 1
      %s45 = scalar_select %p42, %s43, %s44
      %p48 = pneg %p42
      %p49 = scmp.eq.s32.totalorder %s12, 3
      %p50 = por %p48, %p49
      %p51 = scmp.ne.s32.totalorder %s43, %s46
      %p52 = scmp.eq.s32.totalorder %s12, 0
      %p53 = por %p51, %p52
      %p54 = scmp.ne.s32.totalorder %s43, %s46
      %p55 = scmp.eq.s32.totalorder %s17, 3
      %p56 = por %p54, %p55
      %p57 = scmp.ne.s32.totalorder %s46, %s47
      %p58 = scmp.eq.s32.totalorder %s17, 0
      %p59 = por %p57, %p58
      %p60 = scmp.ne.s32.totalorder %s46, %s47
      %p61 = scmp.eq.s32.totalorder %s18, 3
      %p62 = por %p60, %p61
      %p64 = scmp.ne.s32.totalorder %s47, %s63
      %p65 = scmp.eq.s32.totalorder %s18, 0
      %p66 = por %p64, %p65
      %s67 = ssub.s32 %s21, %s30
      %s68 = ssub.s32 %s20, %s34
      %s69 = sor.u32 %s67, %s68
      %p70 = scmp.eq.s32.totalorder %s69, 0
      %s72 = sadd.s32 %s71, 1
      %s73 = scalar_select %p70, %s71, %s72
      %p76 = pneg %p70
      %p77 = scmp.eq.s32.totalorder %s12, 3
      %p78 = por %p76, %p77
      %p79 = scmp.ne.s32.totalorder %s71, %s74
      %p80 = scmp.eq.s32.totalorder %s12, 0
      %p81 = por %p79, %p80
      %p82 = scmp.ne.s32.totalorder %s71, %s74
      %p83 = scmp.eq.s32.totalorder %s17, 3
      %p84 = por %p82, %p83
      %p85 = scmp.ne.s32.totalorder %s74, %s75
      %p86 = scmp.eq.s32.totalorder %s17, 0
      %p87 = por %p85, %p86
      %p88 = scmp.ne.s32.totalorder %s74, %s75
      %p89 = scmp.eq.s32.totalorder %s18, 3
      %p90 = por %p88, %p89
      %p92 = scmp.ne.s32.totalorder %s75, %s91
      %p93 = scmp.eq.s32.totalorder %s18, 0
      %p94 = por %p92, %p93
      %p95 = scmp.lt.s32.totalorder %s19, 0
      %s96 = ssub.s32 0, %s19
      %s97 = scalar_select %p95, %s96, %s19
      %s98 = sand.u32 %s97, 1
      %s99 = ssub.s32 0, %s98
      %s100 = scalar_select %p95, %s99, %s98
      %p101 = scmp.ne.s32.totalorder %s100, 0
      %p102 = scmp.lt.s32.totalorder %s100, 0
      %p103 = pnand %p102, %p101
      %p104 = pneg %p103
      %s105 = sadd.s32 %s100, 2
      %s106 = scalar_select %p104, %s105, %s100
      %p107 = scmp.lt.s32.totalorder %s38, 0
      %s108 = ssub.s32 0, %s38
      %s109 = scalar_select %p107, %s108, %s38
      %s110 = sand.u32 %s109, 1
      %s111 = ssub.s32 0, %s110
      %s112 = scalar_select %p107, %s111, %s110
      %p113 = scmp.ne.s32.totalorder %s112, 0
      %p114 = scmp.lt.s32.totalorder %s112, 0
      %p115 = pnand %p114, %p113
      %p116 = pneg %p115
      %s117 = sadd.s32 %s112, 2
      %s118 = scalar_select %p116, %s117, %s112
      %s119 = ssub.s32 %s106, %s118
      %s120 = ssub.s32 %s20, %s34
      %s121 = sor.u32 %s119, %s120
      %p122 = scmp.eq.s32.totalorder %s121, 0
      %s124 = sadd.s32 %s123, 1
      %s125 = scalar_select %p122, %s123, %s124
      %p128 = pneg %p122
      %p129 = scmp.eq.s32.totalorder %s12, 3
      %p130 = por %p128, %p129
      %p131 = scmp.ne.s32.totalorder %s123, %s126
      %p132 = scmp.eq.s32.totalorder %s12, 0
      %p133 = por %p131, %p132
      %p134 = scmp.ne.s32.totalorder %s123, %s126
      %p135 = scmp.eq.s32.totalorder %s17, 3
      %p136 = por %p134, %p135
      %p137 = scmp.ne.s32.totalorder %s126, %s127
      %p138 = scmp.eq.s32.totalorder %s17, 0
      %p139 = por %p137, %p138
      %p140 = scmp.ne.s32.totalorder %s126, %s127
      %p141 = scmp.eq.s32.totalorder %s18, 3
      %p142 = por %p140, %p141
      %p144 = scmp.ne.s32.totalorder %s127, %s143
      %p145 = scmp.eq.s32.totalorder %s18, 0
      %p146 = por %p144, %p145
      %s147 = ssub.s32 %s19, %s38
      %s148 = ssub.s32 %s20, %s34
      %s149 = sor.u32 %s147, %s148
      %p150 = scmp.eq.s32.totalorder %s149, 0
      %s152 = sadd.s32 %s151, 1
      %s153 = scalar_select %p150, %s151, %s152
      %p156 = pneg %p150
      %p157 = scmp.eq.s32.totalorder %s12, 3
      %p158 = por %p156, %p157
      %p159 = scmp.ne.s32.totalorder %s151, %s154
      %p160 = scmp.eq.s32.totalorder %s12, 0
      %p161 = por %p159, %p160
      %p162 = scmp.ne.s32.totalorder %s151, %s154
      %p163 = scmp.eq.s32.totalorder %s17, 3
      %p164 = por %p162, %p163
      %p165 = scmp.ne.s32.totalorder %s154, %s155
      %p166 = scmp.eq.s32.totalorder %s17, 0
      %p167 = por %p165, %p166
      %p168 = scmp.ne.s32.totalorder %s154, %s155
      %p169 = scmp.eq.s32.totalorder %s18, 3
      %p170 = por %p168, %p169
      %p172 = scmp.ne.s32.totalorder %s155, %s171
      %p173 = scmp.eq.s32.totalorder %s18, 0
      %p174 = por %p172, %p173
      %s175 = ssub.s32 %s19, %s38
      %s176 = ssub.s32 %s20, %s34
      %s177 = sor.u32 %s175, %s176
      %p178 = scmp.eq.s32.totalorder %s177, 0
      %s180 = sadd.s32 %s179, 1
      %s181 = scalar_select %p178, %s179, %s180
      %p184 = pneg %p178
      %p185 = scmp.eq.s32.totalorder %s12, 3
      %p186 = por %p184, %p185
      %p187 = scmp.ne.s32.totalorder %s179, %s182
      %p188 = scmp.eq.s32.totalorder %s12, 0
      %p189 = por %p187, %p188
      %p190 = scmp.ne.s32.totalorder %s179, %s182
      %p191 = scmp.eq.s32.totalorder %s17, 3
      %p192 = por %p190, %p191
      %p193 = scmp.ne.s32.totalorder %s182, %s183
      %p194 = scmp.eq.s32.totalorder %s17, 0
      %p195 = por %p193, %p194
      %p196 = scmp.ne.s32.totalorder %s182, %s183
      %p197 = scmp.eq.s32.totalorder %s18, 3
      %p198 = por %p196, %p197
      %p200 = scmp.ne.s32.totalorder %s183, %s199
      %p201 = scmp.eq.s32.totalorder %s18, 0
      %p202 = por %p200, %p201
      %s203 = ssub.s32 %s19, %s38
      %s204 = ssub.s32 %s20, %s34
      %s205 = sor.u32 %s203, %s204
      %p206 = scmp.eq.s32.totalorder %s205, 0
      %s208 = sadd.s32 %s207, 1
      %s209 = scalar_select %p206, %s207, %s208
      %p212 = pneg %p206
      %p213 = scmp.eq.s32.totalorder %s12, 3
      %p214 = por %p212, %p213
      %p215 = scmp.ne.s32.totalorder %s207, %s210
      %p216 = scmp.eq.s32.totalorder %s12, 0
      %p217 = por %p215, %p216
      %p218 = scmp.ne.s32.totalorder %s207, %s210
      %p219 = scmp.eq.s32.totalorder %s17, 3
      %p220 = por %p218, %p219
      %p221 = scmp.ne.s32.totalorder %s210, %s211
      %p222 = scmp.eq.s32.totalorder %s17, 0
      %p223 = por %p221, %p222
      %p224 = scmp.ne.s32.totalorder %s210, %s211
      %p225 = scmp.eq.s32.totalorder %s18, 3
      %p226 = por %p224, %p225
      %p228 = scmp.ne.s32.totalorder %s211, %s227
      %p229 = scmp.eq.s32.totalorder %s18, 0
      %p230 = por %p228, %p229
      %p231 = scmp.le.s32.totalorder 1, %s12
      %p232 = scmp.lt.s32.totalorder %s12, 5
      %p233 = pnand %p231, %p232
      %p234 = pneg %p233
      // Predicated region
      $region9: #{mla_forward.3} parent=5 // pred_check
        _
      $region10: #{mla_forward.3} parent=5 // pred_check_branch
        %236 = sbr.rel (%p233) target = $region12
      $region11: #{mla_forward.3} parent=5 // pred_region
        %s237 = ssub.s32 %s12, 1
        // Predicated region
        $region13: #{mla_forward.3} parent=11 // pred_check
          %p238 = pneg %p87
        $region14: #{mla_forward.3} parent=11 // pred_check_branch
          %240 = sbr.rel (%p238) target = $region16
        $region15: #{mla_forward.3} parent=11 // pred_region
          %s241 = smul.u32 32, %s24
          %s242 = smul.u32 2, %s23
          %p243 = scmp.lt.s32.totalorder %s241, 31
          %s244 = scalar_select %p243, %s241, 31
          %p245 = scmp.lt.s32.totalorder %s242, 1
          %s246 = scalar_select %p245, %s242, 1
          %s247 = smul.addr %s244, 2
          %s248 = sadd.s32 %s246, %s247
          %s249 = smul.addr %s248, 4
          %s250 = scalar_lea.vmem %s1, %s249
          %s251 = smul.u32 32, %s24
          %s252 = smul.u32 2, %s23
        $region16: #{mla_forward.3} parent=11 // pred_fallthru
          _
      $region12: #{mla_forward.3} parent=5 // pred_fallthru
        _
      %p253 = scmp.lt.s32.totalorder %s12, 4
      // Predicated region
      $region17: #{mla_forward.3} parent=5 // pred_check
        %p254 = pneg %p253
      $region18: #{mla_forward.3} parent=5 // pred_check_branch
        %256 = sbr.rel (%p254) target = $region20
      $region19: #{mla_forward.3} parent=5 // pred_region
        // Predicated region
        $region21: #{mla_forward.3} parent=19 // pred_check
          %p257 = pneg %p53
        $region22: #{mla_forward.3} parent=19 // pred_check_branch
          %259 = sbr.rel (%p257) target = $region24
        $region23: #{mla_forward.3} parent=19 // pred_region
          %s260 = smul.u32 4, %s19
          %s261 = smul.u32 2, %s21
          %p262 = scmp.lt.s32.totalorder %s260, 15
          %s263 = scalar_select %p262, %s260, 15
          %p264 = scmp.lt.s32.totalorder %s261, 1
          %s265 = scalar_select %p264, %s261, 1
          %s266 = smul.addr %s263, 2
          %s267 = sadd.s32 %s265, %s266
          %s268 = smul.addr %s267, 8
          %s269 = scalar_lea.vmem %s0, %s268
          %s270 = smul.u32 4, %s19
          %s271 = smul.u32 2, %s21
        $region24: #{mla_forward.3} parent=19 // pred_fallthru
          _
        // Predicated region
        $region25: #{mla_forward.3} parent=19 // pred_check
          %p272 = pneg %p133
        $region26: #{mla_forward.3} parent=19 // pred_check_branch
          %274 = sbr.rel (%p272) target = $region28
        $region27: #{mla_forward.3} parent=19 // pred_region
          %s275 = sand.u32 %s123, 1
          %s276 = sand.u32 %s123, 1
          %s277 = smul.addr %s276, 64
          %s278 = scalar_lea.vmem [#allocation3], %s277
          %p279 = scmp.lt.s32.totalorder %s19, 0
          %s280 = ssub.s32 0, %s19
          %s281 = scalar_select %p279, %s280, %s19
          %s282 = sand.u32 %s281, 1
          %s283 = ssub.s32 0, %s282
          %s284 = scalar_select %p279, %s283, %s282
          %p285 = scmp.ne.s32.totalorder %s284, 0
          %p286 = scmp.lt.s32.totalorder %s284, 0
          %p287 = pnand %p286, %p285
          %p288 = pneg %p287
          %s289 = sadd.s32 %s284, 2
          %s290 = scalar_select %p288, %s289, %s284
          %s291 = smul.u32 4, %s290
          %s292 = smul.u32 2, %s20
          %s293 = smul.addr %s291, 2
          %s294 = sadd.s32 %s292, %s293
          %s295 = smul.addr %s294, 4
          %s296 = scalar_lea.vmem %s2, %s295
          // Predicated region
          $region29: #{mla_forward.3} parent=27 // pred_check
            _
          $region30: #{mla_forward.3} parent=27 // pred_check_branch
            %298 = sbr.rel (0) target = $region32
          $region31: #{mla_forward.3} parent=27 // pred_region
            // Predicated region
            $region33: #{mla_forward.3} parent=31 // pred_check
              _
            $region34: #{mla_forward.3} parent=31 // pred_check_branch
              %300 = sbr.rel (0) target = $region36
            $region35: #{mla_forward.3} parent=31 // pred_region
              // Predicated region
              $region48: #{mla_forward.3} parent=35 // pred_check
                _
              $region49: #{mla_forward.3} parent=35 // pred_check_branch
                %330 = sbr.rel (0) target = $region51
              $region50: #{mla_forward.3} parent=35 // pred_region
                loop: start=0, step=1, limit=1
                $region52: #{mla_forward.3} parent=50 // loop_pre_header
                  _
                $region53: #{mla_forward.3} parent=50 // loop_header
                  %s332 = sphi 0, %s336
                  %p333 = scmp.ge.s32.totalorder %s332, 1
                  %s337 = sphi %s296, %s296
                  %s338 = sphi %s278, %s278
                $region54: #{mla_forward.3} parent=50 // loop_header_branch
                  %335 = sbr.rel (%p333) target = $region58
                $region55: #{mla_forward.3} parent=50 // loop_body
                  %v339 = vld [vmem:[%s337] sm:$0xff]
                  %340 = vst [vmem:[%s338] sm:$0xff] %v339
                  %v341 = vld [vmem:[%s337 + $0x8] sm:$0xff]
                  %342 = vst [vmem:[%s338 + $0x8] sm:$0xff] %v341
                  %v343 = vld [vmem:[%s337 + $0x10] sm:$0xff]
                  %344 = vst [vmem:[%s338 + $0x10] sm:$0xff] %v343
                  %v345 = vld [vmem:[%s337 + $0x18] sm:$0xff]
                  %346 = vst [vmem:[%s338 + $0x18] sm:$0xff] %v345
                  %v347 = vld [vmem:[%s337 + $0x40] sm:$0xff]
                  %348 = vst [vmem:[%s338 + $0x20] sm:$0xff] %v347
                  %v349 = vld [vmem:[%s337 + $0x48] sm:$0xff]
                  %350 = vst [vmem:[%s338 + $0x28] sm:$0xff] %v349
                  %v351 = vld [vmem:[%s337 + $0x50] sm:$0xff]
                  %352 = vst [vmem:[%s338 + $0x30] sm:$0xff] %v351
                  %v353 = vld [vmem:[%s337 + $0x58] sm:$0xff]
                  %354 = vst [vmem:[%s338 + $0x38] sm:$0xff] %v353
                $region56: #{mla_forward.3} parent=50 // loop_footer
                  %s336 = sadd.s32 1, %s332
                $region57: #{mla_forward.3} parent=50 // loop_footer_branch
                  %331 = sbr.rel target = $region53
                $region58: #{mla_forward.3} parent=50 // loop_exit
                  _
              $region51: #{mla_forward.3} parent=35 // pred_fallthru
                _
              // Predicated region
              $region59: #{mla_forward.3} parent=35 // pred_check
                _
              $region60: #{mla_forward.3} parent=35 // pred_check_branch
                %356 = sbr.rel target = $region62
              $region61: #{mla_forward.3} parent=35 // pred_region
                _
              $region62: #{mla_forward.3} parent=35 // pred_fallthru
                _
            $region36: #{mla_forward.3} parent=31 // pred_fallthru
              _
            // Predicated region
            $region37: #{mla_forward.3} parent=31 // pred_check
              _
            $region38: #{mla_forward.3} parent=31 // pred_check_branch
              %302 = sbr.rel target = $region40
            $region39: #{mla_forward.3} parent=31 // pred_region
              %s304 = ssub.s32 256, 1
              loop: start=0, step=1, limit=1
              $region41: #{mla_forward.3} parent=39 // loop_pre_header
                _
              $region42: #{mla_forward.3} parent=39 // loop_header
                %s306 = sphi 0, %s310
                %p307 = scmp.ge.s32.totalorder %s306, 1
                %s311 = sphi %s296, %s296
                %s312 = sphi %s278, %s278
              $region43: #{mla_forward.3} parent=39 // loop_header_branch
                %309 = sbr.rel (%p307) target = $region47
              $region44: #{mla_forward.3} parent=39 // loop_body
                %v313 = vld [vmem:[%s311] sm:%s304]
                %314 = vst [vmem:[%s312] sm:%s304] %v313
                %v315 = vld [vmem:[%s311 + $0x8] sm:%s304]
                %316 = vst [vmem:[%s312 + $0x8] sm:%s304] %v315
                %v317 = vld [vmem:[%s311 + $0x10] sm:%s304]
                %318 = vst [vmem:[%s312 + $0x10] sm:%s304] %v317
                %v319 = vld [vmem:[%s311 + $0x18] sm:%s304]
                %320 = vst [vmem:[%s312 + $0x18] sm:%s304] %v319
                %v321 = vld [vmem:[%s311 + $0x40] sm:%s304]
                %322 = vst [vmem:[%s312 + $0x20] sm:%s304] %v321
                %v323 = vld [vmem:[%s311 + $0x48] sm:%s304]
                %324 = vst [vmem:[%s312 + $0x28] sm:%s304] %v323
                %v325 = vld [vmem:[%s311 + $0x50] sm:%s304]
                %326 = vst [vmem:[%s312 + $0x30] sm:%s304] %v325
                %v327 = vld [vmem:[%s311 + $0x58] sm:%s304]
                %328 = vst [vmem:[%s312 + $0x38] sm:%s304] %v327
              $region45: #{mla_forward.3} parent=39 // loop_footer
                %s310 = sadd.s32 1, %s306
              $region46: #{mla_forward.3} parent=39 // loop_footer_branch
                %305 = sbr.rel target = $region42
              $region47: #{mla_forward.3} parent=39 // loop_exit
                _
            $region40: #{mla_forward.3} parent=31 // pred_fallthru
              _
          $region32: #{mla_forward.3} parent=27 // pred_fallthru
            _
          %357 = vnop
        $region28: #{mla_forward.3} parent=19 // pred_fallthru
          _
      $region20: #{mla_forward.3} parent=5 // pred_fallthru
        _
      %p358 = scmp.le.s32.totalorder 1, %s12
      %p359 = scmp.lt.s32.totalorder %s12, 5
      %p360 = pnand %p358, %p359
      %p361 = pneg %p360
      // Predicated region
      $region63: #{mla_forward.3} parent=5 // pred_check
        _
      $region64: #{mla_forward.3} parent=5 // pred_check_branch
        %363 = sbr.rel (%p360) target = $region66
      $region65: #{mla_forward.3} parent=5 // pred_region
        %s364 = ssub.s32 %s12, 1
        %s365 = sand.u32 %s126, 1
        %s366 = sand.u32 %s126, 1
        %s367 = smul.addr %s366, 64
        %s368 = scalar_lea.vmem [#allocation3], %s367
        // Predicated region
        $region67: #{mla_forward.3} parent=65 // pred_check
          %p369 = pneg %p139
        $region68: #{mla_forward.3} parent=65 // pred_check_branch
          %371 = sbr.rel (%p369) target = $region70
        $region69: #{mla_forward.3} parent=65 // pred_region
          _
        $region70: #{mla_forward.3} parent=65 // pred_fallthru
          _
        %s372 = smul.u32 4, %s22
        %s373 = smul.u32 2, %s24
        %p374 = scmp.lt.s32.totalorder %s372, 15
        %s375 = scalar_select %p374, %s372, 15
        %p376 = scmp.lt.s32.totalorder %s373, 1
        %s377 = scalar_select %p376, %s373, 1
        %s378 = smul.addr %s375, 2
        %s379 = sadd.s32 %s377, %s378
        %s380 = smul.addr %s379, 8
        %s381 = scalar_lea.vmem %s0, %s380
        %p382 = pneg %p59
        %p383 = pneg %p56
        %s384 = smul.u32 32, %s24
        %s385 = smul.u32 2, %s23
        %p386 = scmp.lt.s32.totalorder %s384, 31
        %s387 = scalar_select %p386, %s384, 31
        %p388 = scmp.lt.s32.totalorder %s385, 1
        %s389 = scalar_select %p388, %s385, 1
        %s390 = smul.addr %s387, 2
        %s391 = sadd.s32 %s389, %s390
        %s392 = smul.addr %s391, 4
        %s393 = scalar_lea.vmem %s1, %s392
        %p394 = pneg %p87
        %p395 = pneg %p84
        %s396 = sand.u32 %s126, 1
        %s397 = sand.u32 %s126, 1
        %s398 = smul.addr %s397, 64
        %s399 = scalar_lea.vmem [#allocation3], %s398
        %p400 = pneg %p139
        %p401 = pneg %p136
        %p402 = pneg %p167
        %p403 = pneg %p164
        %s404 = smul.u32 4, %s22
        %s405 = smul.u32 2, %s23
        %p406 = scmp.lt.s32.totalorder %s404, 15
        %s407 = scalar_select %p406, %s404, 15
        %p408 = scmp.lt.s32.totalorder %s405, 1
        %s409 = scalar_select %p408, %s405, 1
        %s410 = smul.addr %s407, 2
        %s411 = sadd.s32 %s409, %s410
        %s412 = smul.addr %s411, 4
        %s413 = scalar_lea.vmem %s3, %s412
        %p414 = pneg %p195
        %p415 = pneg %p192
        %s416 = smul.u32 4, %s22
        %s417 = smul.u32 2, %s23
        %p418 = scmp.lt.s32.totalorder %s416, 15
        %s419 = scalar_select %p418, %s416, 15
        %p420 = scmp.lt.s32.totalorder %s417, 1
        %s421 = scalar_select %p420, %s417, 1
        %s422 = smul.addr %s419, 2
        %s423 = sadd.s32 %s421, %s422
        %s424 = smul.addr %s423, 4
        %s425 = scalar_lea.vmem %s4, %s424
        %p426 = pneg %p223
        %p427 = pneg %p220
        %s428 = smul.u32 4, %s22
        %s429 = smul.u32 2, %s23
        %p430 = scmp.lt.s32.totalorder %s428, 15
        %s431 = scalar_select %p430, %s428, 15
        %p432 = scmp.lt.s32.totalorder %s429, 1
        %s433 = scalar_select %p432, %s429, 1
        %s434 = smul.addr %s431, 2
        %s435 = sadd.s32 %s433, %s434
        %s436 = smul.addr %s435, 4
        %s437 = scalar_lea.vmem %s5, %s436
        %s438 = smul.u32 4, %s22
        %s439 = smul.u32 2, %s24
        %p440 = scmp.lt.s32.totalorder %s438, 15
        %s441 = scalar_select %p440, %s438, 15
        %p442 = scmp.lt.s32.totalorder %s439, 1
        %s443 = scalar_select %p442, %s439, 1
        %s444 = smul.addr %s441, 2
        %s445 = sadd.s32 %s443, %s444
        %s446 = smul.addr %s445, 8
        %s447 = scalar_lea.vmem %s0, %s446
        %s448 = smul.u32 4, %s22
        %s449 = smul.u32 2, %s24
        %s450 = smul.u32 32, %s24
        %s451 = smul.u32 2, %s23
        %p452 = scmp.lt.s32.totalorder %s450, 31
        %s453 = scalar_select %p452, %s450, 31
        %p454 = scmp.lt.s32.totalorder %s451, 1
        %s455 = scalar_select %p454, %s451, 1
        %s456 = smul.addr %s453, 2
        %s457 = sadd.s32 %s455, %s456
        %s458 = smul.addr %s457, 4
        %s459 = scalar_lea.vmem %s1, %s458
        %s460 = smul.u32 32, %s24
        %s461 = smul.u32 2, %s23
        %p462 = scmp.lt.s32.totalorder %s22, 0
        %s463 = ssub.s32 0, %s22
        %s464 = scalar_select %p462, %s463, %s22
        %s465 = sand.u32 %s464, 1
        %s466 = ssub.s32 0, %s465
        %s467 = scalar_select %p462, %s466, %s465
        %p468 = scmp.ne.s32.totalorder %s467, 0
        %p469 = scmp.lt.s32.totalorder %s467, 0
        %p470 = pnand %p469, %p468
        %p471 = pneg %p470
        %s472 = sadd.s32 %s467, 2
        %s473 = scalar_select %p471, %s472, %s467
        %s474 = smul.u32 4, %s473
        %s475 = smul.u32 2, %s23
        %s476 = smul.u32 4, %s22
        %s477 = smul.u32 2, %s23
        %p478 = scmp.lt.s32.totalorder %s476, 15
        %s479 = scalar_select %p478, %s476, 15
        %p480 = scmp.lt.s32.totalorder %s477, 1
        %s481 = scalar_select %p480, %s477, 1
        %s482 = smul.addr %s479, 2
        %s483 = sadd.s32 %s481, %s482
        %s484 = smul.addr %s483, 4
        %s485 = scalar_lea.vmem %s3, %s484
        %s486 = smul.u32 4, %s22
        %s487 = smul.u32 2, %s23
        %s488 = smul.u32 4, %s22
        %s489 = smul.u32 2, %s23
        %p490 = scmp.lt.s32.totalorder %s488, 15
        %s491 = scalar_select %p490, %s488, 15
        %p492 = scmp.lt.s32.totalorder %s489, 1
        %s493 = scalar_select %p492, %s489, 1
        %s494 = smul.addr %s491, 2
        %s495 = sadd.s32 %s493, %s494
        %s496 = smul.addr %s495, 4
        %s497 = scalar_lea.vmem %s4, %s496
        %s498 = smul.u32 4, %s22
        %s499 = smul.u32 2, %s23
        %s500 = smul.u32 4, %s22
        %s501 = smul.u32 2, %s23
        %p502 = scmp.lt.s32.totalorder %s500, 15
        %s503 = scalar_select %p502, %s500, 15
        %p504 = scmp.lt.s32.totalorder %s501, 1
        %s505 = scalar_select %p504, %s501, 1
        %s506 = smul.addr %s503, 2
        %s507 = sadd.s32 %s505, %s506
        %s508 = smul.addr %s507, 4
        %s509 = scalar_lea.vmem %s5, %s508
        %s510 = smul.u32 4, %s22
        %s511 = smul.u32 2, %s23
        %p512 = scmp.eq.s32.totalorder %s24, 0
        // Predicated region
        $region71: #{mla_forward.3} parent=65 // pred_check
          %p513 = pneg %p512
        $region72: #{mla_forward.3} parent=65 // pred_check_branch
          %515 = sbr.rel (%p513) target = $region74
        $region73: #{mla_forward.3} parent=65 // pred_region
          %516 = vst [vmem:[#allocation2] sm:$0xff] 0.0
          %517 = vst [vmem:[#allocation2 + $0x8] sm:$0xff] 0.0
          %518 = vst [vmem:[#allocation2 + $0x10] sm:$0xff] 0.0
          %519 = vst [vmem:[#allocation2 + $0x18] sm:$0xff] 0.0
          %520 = vst [vmem:[#allocation2 + $0x20] sm:$0xff] 0.0
          %521 = vst [vmem:[#allocation2 + $0x28] sm:$0xff] 0.0
          %522 = vst [vmem:[#allocation2 + $0x30] sm:$0xff] 0.0
          %523 = vst [vmem:[#allocation2 + $0x38] sm:$0xff] 0.0
          %524 = vst [vmem:[#allocation2 + $0x40] sm:$0xff] 0.0
          %525 = vst [vmem:[#allocation2 + $0x48] sm:$0xff] 0.0
          %526 = vst [vmem:[#allocation2 + $0x50] sm:$0xff] 0.0
          %527 = vst [vmem:[#allocation2 + $0x58] sm:$0xff] 0.0
          %528 = vst [vmem:[#allocation2 + $0x60] sm:$0xff] 0.0
          %529 = vst [vmem:[#allocation2 + $0x68] sm:$0xff] 0.0
          %530 = vst [vmem:[#allocation2 + $0x70] sm:$0xff] 0.0
          %531 = vst [vmem:[#allocation2 + $0x78] sm:$0xff] 0.0
          %532 = vst [vmem:[#allocation2 + $0x80] sm:$0xff] 0.0
          %533 = vst [vmem:[#allocation2 + $0x88] sm:$0xff] 0.0
          %534 = vst [vmem:[#allocation2 + $0x90] sm:$0xff] 0.0
          %535 = vst [vmem:[#allocation2 + $0x98] sm:$0xff] 0.0
          %536 = vst [vmem:[#allocation2 + $0xa0] sm:$0xff] 0.0
          %537 = vst [vmem:[#allocation2 + $0xa8] sm:$0xff] 0.0
          %538 = vst [vmem:[#allocation2 + $0xb0] sm:$0xff] 0.0
          %539 = vst [vmem:[#allocation2 + $0xb8] sm:$0xff] 0.0
          %540 = vst [vmem:[#allocation2 + $0xc0] sm:$0xff] 0.0
          %541 = vst [vmem:[#allocation2 + $0xc8] sm:$0xff] 0.0
          %542 = vst [vmem:[#allocation2 + $0xd0] sm:$0xff] 0.0
          %543 = vst [vmem:[#allocation2 + $0xd8] sm:$0xff] 0.0
          %544 = vst [vmem:[#allocation2 + $0xe0] sm:$0xff] 0.0
          %545 = vst [vmem:[#allocation2 + $0xe8] sm:$0xff] 0.0
          %546 = vst [vmem:[#allocation2 + $0xf0] sm:$0xff] 0.0
          %547 = vst [vmem:[#allocation2 + $0xf8] sm:$0xff] 0.0
          %548 = vst [vmem:[#allocation2 + $0x100] sm:$0xff] 0.0
          %549 = vst [vmem:[#allocation2 + $0x108] sm:$0xff] 0.0
          %550 = vst [vmem:[#allocation2 + $0x110] sm:$0xff] 0.0
          %551 = vst [vmem:[#allocation2 + $0x118] sm:$0xff] 0.0
          %552 = vst [vmem:[#allocation2 + $0x120] sm:$0xff] 0.0
          %553 = vst [vmem:[#allocation2 + $0x128] sm:$0xff] 0.0
          %554 = vst [vmem:[#allocation2 + $0x130] sm:$0xff] 0.0
          %555 = vst [vmem:[#allocation2 + $0x138] sm:$0xff] 0.0
        $region74: #{mla_forward.3} parent=65 // pred_fallthru
          _
        %v556 = vld [vmem:[%s447] sm:$0xff]
        %v557 = vld [vmem:[%s447 + $0x8] sm:$0xff]
        %v558 = vld [vmem:[%s447 + $0x10] sm:$0xff]
        %v559 = vld [vmem:[%s447 + $0x18] sm:$0xff]
        %v560 = vld [vmem:[%s447 + $0x20] sm:$0xff]
        %v561 = vld [vmem:[%s447 + $0x28] sm:$0xff]
        %v562 = vld [vmem:[%s447 + $0x30] sm:$0xff]
        %v563 = vld [vmem:[%s447 + $0x38] sm:$0xff]
        %v564 = vpack.c.bf16 %v558, %v556
        %v565 = vpack.c.bf16 %v559, %v557
        %v566 = vpack.c.bf16 %v562, %v560
        %v567 = vpack.c.bf16 %v563, %v561
        %v568 = vld [vmem:[#allocation2] sm:$0xff]
        %v569 = vld [vmem:[#allocation2 + $0x8] sm:$0xff]
        %v570 = vld [vmem:[#allocation2 + $0x10] sm:$0xff]
        %v571 = vld [vmem:[#allocation2 + $0x18] sm:$0xff]
        %v572 = vld [vmem:[#allocation2 + $0x20] sm:$0xff]
        %v573 = vld [vmem:[#allocation2 + $0x28] sm:$0xff]
        %v574 = vld [vmem:[#allocation2 + $0x30] sm:$0xff]
        %v575 = vld [vmem:[#allocation2 + $0x38] sm:$0xff]
        %v576 = vld [vmem:[%s459] sm:$0xff]
        %v577 = vld [vmem:[%s459 + $0x8] sm:$0xff]
        %v578 = vld [vmem:[%s459 + $0x10] sm:$0xff]
        %v579 = vld [vmem:[%s459 + $0x18] sm:$0xff]
        %v580 = vld [vmem:[%s459 + $0x20] sm:$0xff]
        %v581 = vld [vmem:[%s459 + $0x28] sm:$0xff]
        %v582 = vld [vmem:[%s459 + $0x30] sm:$0xff]
        %v583 = vld [vmem:[%s459 + $0x38] sm:$0xff]
        %v584 = vld [vmem:[%s459 + $0x40] sm:$0xff]
        %v585 = vld [vmem:[%s459 + $0x48] sm:$0xff]
        %v586 = vld [vmem:[%s459 + $0x50] sm:$0xff]
        %v587 = vld [vmem:[%s459 + $0x58] sm:$0xff]
        %v588 = vld [vmem:[%s459 + $0x60] sm:$0xff]
        %v589 = vld [vmem:[%s459 + $0x68] sm:$0xff]
        %v590 = vld [vmem:[%s459 + $0x70] sm:$0xff]
        %v591 = vld [vmem:[%s459 + $0x78] sm:$0xff]
        %v592 = vld [vmem:[%s459 + $0x80] sm:$0xff]
        %v593 = vld [vmem:[%s459 + $0x88] sm:$0xff]
        %v594 = vld [vmem:[%s459 + $0x90] sm:$0xff]
        %v595 = vld [vmem:[%s459 + $0x98] sm:$0xff]
        %v596 = vld [vmem:[%s459 + $0xa0] sm:$0xff]
        %v597 = vld [vmem:[%s459 + $0xa8] sm:$0xff]
        %v598 = vld [vmem:[%s459 + $0xb0] sm:$0xff]
        %v599 = vld [vmem:[%s459 + $0xb8] sm:$0xff]
        %v600 = vld [vmem:[%s459 + $0xc0] sm:$0xff]
        %v601 = vld [vmem:[%s459 + $0xc8] sm:$0xff]
        %v602 = vld [vmem:[%s459 + $0xd0] sm:$0xff]
        %v603 = vld [vmem:[%s459 + $0xd8] sm:$0xff]
        %v604 = vld [vmem:[%s459 + $0xe0] sm:$0xff]
        %v605 = vld [vmem:[%s459 + $0xe8] sm:$0xff]
        %v606 = vld [vmem:[%s459 + $0xf0] sm:$0xff]
        %v607 = vld [vmem:[%s459 + $0xf8] sm:$0xff]
        %v640 = vunpack.c.l.b16 %v576
        %v641 = vunpack.c.h.b16 %v576
        %v642 = vunpack.c.l.b16 %v577
        %v643 = vunpack.c.h.b16 %v577
        %v644 = vunpack.c.l.b16 %v578
        %v645 = vunpack.c.h.b16 %v578
        %v646 = vunpack.c.l.b16 %v579
        %v647 = vunpack.c.h.b16 %v579
        %v648 = vunpack.c.l.b16 %v580
        %v649 = vunpack.c.h.b16 %v580
        %v650 = vunpack.c.l.b16 %v581
        %v651 = vunpack.c.h.b16 %v581
        %v652 = vunpack.c.l.b16 %v582
        %v653 = vunpack.c.h.b16 %v582
        %v654 = vunpack.c.l.b16 %v583
        %v655 = vunpack.c.h.b16 %v583
        %v656 = vunpack.c.l.b16 %v584
        %v657 = vunpack.c.h.b16 %v584
        %v658 = vunpack.c.l.b16 %v585
        %v659 = vunpack.c.h.b16 %v585
        %v660 = vunpack.c.l.b16 %v586
        %v661 = vunpack.c.h.b16 %v586
        %v662 = vunpack.c.l.b16 %v587
        %v663 = vunpack.c.h.b16 %v587
        %v664 = vunpack.c.l.b16 %v588
        %v665 = vunpack.c.h.b16 %v588
        %v666 = vunpack.c.l.b16 %v589
        %v667 = vunpack.c.h.b16 %v589
        %v668 = vunpack.c.l.b16 %v590
        %v669 = vunpack.c.h.b16 %v590
        %v670 = vunpack.c.l.b16 %v591
        %v671 = vunpack.c.h.b16 %v591
        %v672 = vunpack.c.l.b16 %v592
        %v673 = vunpack.c.h.b16 %v592
        %v674 = vunpack.c.l.b16 %v593
        %v675 = vunpack.c.h.b16 %v593
        %v676 = vunpack.c.l.b16 %v594
        %v677 = vunpack.c.h.b16 %v594
        %v678 = vunpack.c.l.b16 %v595
        %v679 = vunpack.c.h.b16 %v595
        %v680 = vunpack.c.l.b16 %v596
        %v681 = vunpack.c.h.b16 %v596
        %v682 = vunpack.c.l.b16 %v597
        %v683 = vunpack.c.h.b16 %v597
        %v684 = vunpack.c.l.b16 %v598
        %v685 = vunpack.c.h.b16 %v598
        %v686 = vunpack.c.l.b16 %v599
        %v687 = vunpack.c.h.b16 %v599
        %v688 = vunpack.c.l.b16 %v600
        %v689 = vunpack.c.h.b16 %v600
        %v690 = vunpack.c.l.b16 %v601
        %v691 = vunpack.c.h.b16 %v601
        %v692 = vunpack.c.l.b16 %v602
        %v693 = vunpack.c.h.b16 %v602
        %v694 = vunpack.c.l.b16 %v603
        %v695 = vunpack.c.h.b16 %v603
        %v696 = vunpack.c.l.b16 %v604
        %v697 = vunpack.c.h.b16 %v604
        %v698 = vunpack.c.l.b16 %v605
        %v699 = vunpack.c.h.b16 %v605
        %v700 = vunpack.c.l.b16 %v606
        %v701 = vunpack.c.h.b16 %v606
        %v702 = vunpack.c.l.b16 %v607
        %v703 = vunpack.c.h.b16 %v607
        %v704 = vpack.c.b16 %v642, %v640
        %v705 = vpack.c.b16 %v643, %v641
        %v706 = vpack.c.b16 %v646, %v644
        %v707 = vpack.c.b16 %v647, %v645
        %v708 = vpack.c.b16 %v650, %v648
        %v709 = vpack.c.b16 %v651, %v649
        %v710 = vpack.c.b16 %v654, %v652
        %v711 = vpack.c.b16 %v655, %v653
        %v712 = vpack.c.b16 %v658, %v656
        %v713 = vpack.c.b16 %v659, %v657
        %v714 = vpack.c.b16 %v662, %v660
        %v715 = vpack.c.b16 %v663, %v661
        %v716 = vpack.c.b16 %v666, %v664
        %v717 = vpack.c.b16 %v667, %v665
        %v718 = vpack.c.b16 %v670, %v668
        %v719 = vpack.c.b16 %v671, %v669
        %v720 = vpack.c.b16 %v674, %v672
        %v721 = vpack.c.b16 %v675, %v673
        %v722 = vpack.c.b16 %v678, %v676
        %v723 = vpack.c.b16 %v679, %v677
        %v724 = vpack.c.b16 %v682, %v680
        %v725 = vpack.c.b16 %v683, %v681
        %v726 = vpack.c.b16 %v686, %v684
        %v727 = vpack.c.b16 %v687, %v685
        %v728 = vpack.c.b16 %v690, %v688
        %v729 = vpack.c.b16 %v691, %v689
        %v730 = vpack.c.b16 %v694, %v692
        %v731 = vpack.c.b16 %v695, %v693
        %v732 = vpack.c.b16 %v698, %v696
        %v733 = vpack.c.b16 %v699, %v697
        %v734 = vpack.c.b16 %v702, %v700
        %v735 = vpack.c.b16 %v703, %v701
        %768 = vmatprep.subr.bf16.mxu0 %v719
        %769 = vmatpush1.bf16.msra.mxu0 %v718
        %770 = vmatprep.subr.bf16.mxu0 %v717
        %771 = vmatpush1.bf16.msra.mxu0 %v716
        %772 = vmatprep.subr.bf16.mxu0 %v715
        %773 = vmatpush1.bf16.msra.mxu0 %v714
        %774 = vmatprep.subr.bf16.mxu0 %v713
        %775 = vmatpush1.bf16.msra.mxu0 %v712
        %776 = vmatprep.subr.bf16.mxu0 %v711
        %777 = vmatpush1.bf16.msra.mxu0 %v710
        %778 = vmatprep.subr.bf16.mxu0 %v709
        %779 = vmatpush1.bf16.msra.mxu0 %v708
        %780 = vmatprep.subr.bf16.mxu0 %v707
        %781 = vmatpush1.bf16.msra.mxu0 %v706
        %782 = vmatprep.subr.bf16.mxu0 %v705
        %783 = vmatpush1.bf16.msra.mxu0 %v704
        %784 = vmatprep.subr.bf16.mxu0 %v735
        %785 = vmatpush2.bf16.msra.mxu0 %v734
        %786 = vmatprep.subr.bf16.mxu0 %v733
        %787 = vmatpush2.bf16.msra.mxu0 %v732
        %788 = vmatprep.subr.bf16.mxu0 %v731
        %789 = vmatpush2.bf16.msra.mxu0 %v730
        %790 = vmatprep.subr.bf16.mxu0 %v729
        %791 = vmatpush2.bf16.msra.mxu0 %v728
        %792 = vmatprep.subr.bf16.mxu0 %v727
        %793 = vmatpush2.bf16.msra.mxu0 %v726
        %794 = vmatprep.subr.bf16.mxu0 %v725
        %795 = vmatpush2.bf16.msra.mxu0 %v724
        %796 = vmatprep.subr.bf16.mxu0 %v723
        %797 = vmatpush2.bf16.msra.mxu0 %v722
        %798 = vmatprep.subr.bf16.mxu0 %v721
        %799 = vmatpush2.bf16.msra.mxu0 %v720
        %800 = vmatprep.mubr.bf16.mxu0 %v565
        %801 = vmatmul.mubr.bf16.gmra.mxu0 %v564
        %v802 = vpop.f32.mrf.mxu0
        %v803 = vadd.f32 0.0, %v802
        %v804 = vpop.f32.mrf.mxu0
        %v805 = vadd.f32 0.0, %v804
        %v806 = vpop.f32.mrf.mxu0
        %v807 = vadd.f32 0.0, %v806
        %v808 = vpop.f32.mrf.mxu0
        %v809 = vadd.f32 0.0, %v808
        %810 = vmatprep.mubr.bf16.mxu0 %v567
        %811 = vmatmul.mubr.bf16.gmra.mxu0 %v566
        %v812 = vpop.f32.mrf.mxu0
        %v813 = vadd.f32 0.0, %v812
        %v814 = vpop.f32.mrf.mxu0
        %v815 = vadd.f32 0.0, %v814
        %v816 = vpop.f32.mrf.mxu0
        %v817 = vadd.f32 0.0, %v816
        %v818 = vpop.f32.mrf.mxu0
        %v819 = vadd.f32 0.0, %v818
        %820 = vdwg.mxu0
        %v821 = vadd.f32 %v568, %v803
        %v822 = vadd.f32 %v569, %v805
        %v823 = vadd.f32 %v570, %v807
        %v824 = vadd.f32 %v571, %v809
        %v825 = vadd.f32 %v572, %v813
        %v826 = vadd.f32 %v573, %v815
        %v827 = vadd.f32 %v574, %v817
        %v828 = vadd.f32 %v575, %v819
        %829 = vst [vmem:[#allocation2] sm:$0xff] %v821
        %830 = vst [vmem:[#allocation2 + $0x8] sm:$0xff] %v822
        %831 = vst [vmem:[#allocation2 + $0x10] sm:$0xff] %v823
        %832 = vst [vmem:[#allocation2 + $0x18] sm:$0xff] %v824
        %833 = vst [vmem:[#allocation2 + $0x20] sm:$0xff] %v825
        %834 = vst [vmem:[#allocation2 + $0x28] sm:$0xff] %v826
        %835 = vst [vmem:[#allocation2 + $0x30] sm:$0xff] %v827
        %836 = vst [vmem:[#allocation2 + $0x38] sm:$0xff] %v828
        %s837 = scalar_lea.vmem [#allocation2], 64
        %v838 = vld [vmem:[%s837] sm:$0xff]
        %v839 = vld [vmem:[%s837 + $0x8] sm:$0xff]
        %v840 = vld [vmem:[%s837 + $0x10] sm:$0xff]
        %v841 = vld [vmem:[%s837 + $0x18] sm:$0xff]
        %v842 = vld [vmem:[%s837 + $0x20] sm:$0xff]
        %v843 = vld [vmem:[%s837 + $0x28] sm:$0xff]
        %v844 = vld [vmem:[%s837 + $0x30] sm:$0xff]
        %v845 = vld [vmem:[%s837 + $0x38] sm:$0xff]
        %s846 = scalar_lea.vmem %s459, 256
        %v847 = vld [vmem:[%s846] sm:$0xff]
        %v848 = vld [vmem:[%s846 + $0x8] sm:$0xff]
        %v849 = vld [vmem:[%s846 + $0x10] sm:$0xff]
        %v850 = vld [vmem:[%s846 + $0x18] sm:$0xff]
        %v851 = vld [vmem:[%s846 + $0x20] sm:$0xff]
        %v852 = vld [vmem:[%s846 + $0x28] sm:$0xff]
        %v853 = vld [vmem:[%s846 + $0x30] sm:$0xff]
        %v854 = vld [vmem:[%s846 + $0x38] sm:$0xff]
        %v855 = vld [vmem:[%s846 + $0x40] sm:$0xff]
        %v856 = vld [vmem:[%s846 + $0x48] sm:$0xff]
        %v857 = vld [vmem:[%s846 + $0x50] sm:$0xff]
        %v858 = vld [vmem:[%s846 + $0x58] sm:$0xff]
        %v859 = vld [vmem:[%s846 + $0x60] sm:$0xff]
        %v860 = vld [vmem:[%s846 + $0x68] sm:$0xff]
        %v861 = vld [vmem:[%s846 + $0x70] sm:$0xff]
        %v862 = vld [vmem:[%s846 + $0x78] sm:$0xff]
        %v863 = vld [vmem:[%s846 + $0x80] sm:$0xff]
        %v864 = vld [vmem:[%s846 + $0x88] sm:$0xff]
        %v865 = vld [vmem:[%s846 + $0x90] sm:$0xff]
        %v866 = vld [vmem:[%s846 + $0x98] sm:$0xff]
        %v867 = vld [vmem:[%s846 + $0xa0] sm:$0xff]
        %v868 = vld [vmem:[%s846 + $0xa8] sm:$0xff]
        %v869 = vld [vmem:[%s846 + $0xb0] sm:$0xff]
        %v870 = vld [vmem:[%s846 + $0xb8] sm:$0xff]
        %v871 = vld [vmem:[%s846 + $0xc0] sm:$0xff]
        %v872 = vld [vmem:[%s846 + $0xc8] sm:$0xff]
        %v873 = vld [vmem:[%s846 + $0xd0] sm:$0xff]
        %v874 = vld [vmem:[%s846 + $0xd8] sm:$0xff]
        %v875 = vld [vmem:[%s846 + $0xe0] sm:$0xff]
        %v876 = vld [vmem:[%s846 + $0xe8] sm:$0xff]
        %v877 = vld [vmem:[%s846 + $0xf0] sm:$0xff]
        %v878 = vld [vmem:[%s846 + $0xf8] sm:$0xff]
        %v911 = vunpack.c.l.b16 %v847
        %v912 = vunpack.c.h.b16 %v847
        %v913 = vunpack.c.l.b16 %v848
        %v914 = vunpack.c.h.b16 %v848
        %v915 = vunpack.c.l.b16 %v849
        %v916 = vunpack.c.h.b16 %v849
        %v917 = vunpack.c.l.b16 %v850
        %v918 = vunpack.c.h.b16 %v850
        %v919 = vunpack.c.l.b16 %v851
        %v920 = vunpack.c.h.b16 %v851
        %v921 = vunpack.c.l.b16 %v852
        %v922 = vunpack.c.h.b16 %v852
        %v923 = vunpack.c.l.b16 %v853
        %v924 = vunpack.c.h.b16 %v853
        %v925 = vunpack.c.l.b16 %v854
        %v926 = vunpack.c.h.b16 %v854
        %v927 = vunpack.c.l.b16 %v855
        %v928 = vunpack.c.h.b16 %v855
        %v929 = vunpack.c.l.b16 %v856
        %v930 = vunpack.c.h.b16 %v856
        %v931 = vunpack.c.l.b16 %v857
        %v932 = vunpack.c.h.b16 %v857
        %v933 = vunpack.c.l.b16 %v858
        %v934 = vunpack.c.h.b16 %v858
        %v935 = vunpack.c.l.b16 %v859
        %v936 = vunpack.c.h.b16 %v859
        %v937 = vunpack.c.l.b16 %v860
        %v938 = vunpack.c.h.b16 %v860
        %v939 = vunpack.c.l.b16 %v861
        %v940 = vunpack.c.h.b16 %v861
        %v941 = vunpack.c.l.b16 %v862
        %v942 = vunpack.c.h.b16 %v862
        %v943 = vunpack.c.l.b16 %v863
        %v944 = vunpack.c.h.b16 %v863
        %v945 = vunpack.c.l.b16 %v864
        %v946 = vunpack.c.h.b16 %v864
        %v947 = vunpack.c.l.b16 %v865
        %v948 = vunpack.c.h.b16 %v865
        %v949 = vunpack.c.l.b16 %v866
        %v950 = vunpack.c.h.b16 %v866
        %v951 = vunpack.c.l.b16 %v867
        %v952 = vunpack.c.h.b16 %v867
        %v953 = vunpack.c.l.b16 %v868
        %v954 = vunpack.c.h.b16 %v868
        %v955 = vunpack.c.l.b16 %v869
        %v956 = vunpack.c.h.b16 %v869
        %v957 = vunpack.c.l.b16 %v870
        %v958 = vunpack.c.h.b16 %v870
        %v959 = vunpack.c.l.b16 %v871
        %v960 = vunpack.c.h.b16 %v871
        %v961 = vunpack.c.l.b16 %v872
        %v962 = vunpack.c.h.b16 %v872
        %v963 = vunpack.c.l.b16 %v873
        %v964 = vunpack.c.h.b16 %v873
        %v965 = vunpack.c.l.b16 %v874
        %v966 = vunpack.c.h.b16 %v874
        %v967 = vunpack.c.l.b16 %v875
        %v968 = vunpack.c.h.b16 %v875
        %v969 = vunpack.c.l.b16 %v876
        %v970 = vunpack.c.h.b16 %v876
        %v971 = vunpack.c.l.b16 %v877
        %v972 = vunpack.c.h.b16 %v877
        %v973 = vunpack.c.l.b16 %v878
        %v974 = vunpack.c.h.b16 %v878
        %v975 = vpack.c.b16 %v913, %v911
        %v976 = vpack.c.b16 %v914, %v912
        %v977 = vpack.c.b16 %v917, %v915
        %v978 = vpack.c.b16 %v918, %v916
        %v979 = vpack.c.b16 %v921, %v919
        %v980 = vpack.c.b16 %v922, %v920
        %v981 = vpack.c.b16 %v925, %v923
        %v982 = vpack.c.b16 %v926, %v924
        %v983 = vpack.c.b16 %v929, %v927
        %v984 = vpack.c.b16 %v930, %v928
        %v985 = vpack.c.b16 %v933, %v931
        %v986 = vpack.c.b16 %v934, %v932
        %v987 = vpack.c.b16 %v937, %v935
        %v988 = vpack.c.b16 %v938, %v936
        %v989 = vpack.c.b16 %v941, %v939
        %v990 = vpack.c.b16 %v942, %v940
        %v991 = vpack.c.b16 %v945, %v943
        %v992 = vpack.c.b16 %v946, %v944
        %v993 = vpack.c.b16 %v949, %v947
        %v994 = vpack.c.b16 %v950, %v948
        %v995 = vpack.c.b16 %v953, %v951
        %v996 = vpack.c.b16 %v954, %v952
        %v997 = vpack.c.b16 %v957, %v955
        %v998 = vpack.c.b16 %v958, %v956
        %v999 = vpack.c.b16 %v961, %v959
        %v1000 = vpack.c.b16 %v962, %v960
        %v1001 = vpack.c.b16 %v965, %v963
        %v1002 = vpack.c.b16 %v966, %v964
        %v1003 = vpack.c.b16 %v969, %v967
        %v1004 = vpack.c.b16 %v970, %v968
        %v1005 = vpack.c.b16 %v973, %v971
        %v1006 = vpack.c.b16 %v974, %v972
        %1039 = vmatprep.subr.bf16.mxu0 %v990
        %1040 = vmatpush1.bf16.msra.mxu0 %v989
        %1041 = vmatprep.subr.bf16.mxu0 %v988
        %1042 = vmatpush1.bf16.msra.mxu0 %v987
        %1043 = vmatprep.subr.bf16.mxu0 %v986
        %1044 = vmatpush1.bf16.msra.mxu0 %v985
        %1045 = vmatprep.subr.bf16.mxu0 %v984
        %1046 = vmatpush1.bf16.msra.mxu0 %v983
        %1047 = vmatprep.subr.bf16.mxu0 %v982
        %1048 = vmatpush1.bf16.msra.mxu0 %v981
        %1049 = vmatprep.subr.bf16.mxu0 %v980
        %1050 = vmatpush1.bf16.msra.mxu0 %v979
        %1051 = vmatprep.subr.bf16.mxu0 %v978
        %1052 = vmatpush1.bf16.msra.mxu0 %v977
        %1053 = vmatprep.subr.bf16.mxu0 %v976
        %1054 = vmatpush1.bf16.msra.mxu0 %v975
        %1055 = vmatprep.subr.bf16.mxu0 %v1006
        %1056 = vmatpush2.bf16.msra.mxu0 %v1005
        %1057 = vmatprep.subr.bf16.mxu0 %v1004
        %1058 = vmatpush2.bf16.msra.mxu0 %v1003
        %1059 = vmatprep.subr.bf16.mxu0 %v1002
        %1060 = vmatpush2.bf16.msra.mxu0 %v1001
        %1061 = vmatprep.subr.bf16.mxu0 %v1000
        %1062 = vmatpush2.bf16.msra.mxu0 %v999
        %1063 = vmatprep.subr.bf16.mxu0 %v998
        %1064 = vmatpush2.bf16.msra.mxu0 %v997
        %1065 = vmatprep.subr.bf16.mxu0 %v996
        %1066 = vmatpush2.bf16.msra.mxu0 %v995
        %1067 = vmatprep.subr.bf16.mxu0 %v994
        %1068 = vmatpush2.bf16.msra.mxu0 %v993
        %1069 = vmatprep.subr.bf16.mxu0 %v992
        %1070 = vmatpush2.bf16.msra.mxu0 %v991
        %1071 = vmatprep.mubr.bf16.mxu0 %v565
        %1072 = vmatmul.mubr.bf16.gmra.mxu0 %v564
        %v1073 = vpop.f32.mrf.mxu0
        %v1074 = vadd.f32 0.0, %v1073
        %v1075 = vpop.f32.mrf.mxu0
        %v1076 = vadd.f32 0.0, %v1075
        %v1077 = vpop.f32.mrf.mxu0
        %v1078 = vadd.f32 0.0, %v1077
        %v1079 = vpop.f32.mrf.mxu0
        %v1080 = vadd.f32 0.0, %v1079
        %1081 = vmatprep.mubr.bf16.mxu0 %v567
        %1082 = vmatmul.mubr.bf16.gmra.mxu0 %v566
        %v1083 = vpop.f32.mrf.mxu0
        %v1084 = vadd.f32 0.0, %v1083
        %v1085 = vpop.f32.mrf.mxu0
        %v1086 = vadd.f32 0.0, %v1085
        %v1087 = vpop.f32.mrf.mxu0
        %v1088 = vadd.f32 0.0, %v1087
        %v1089 = vpop.f32.mrf.mxu0
        %v1090 = vadd.f32 0.0, %v1089
        %1091 = vdwg.mxu0
        %v1092 = vadd.f32 %v838, %v1074
        %v1093 = vadd.f32 %v839, %v1076
        %v1094 = vadd.f32 %v840, %v1078
        %v1095 = vadd.f32 %v841, %v1080
        %v1096 = vadd.f32 %v842, %v1084
        %v1097 = vadd.f32 %v843, %v1086
        %v1098 = vadd.f32 %v844, %v1088
        %v1099 = vadd.f32 %v845, %v1090
        %1100 = vst [vmem:[%s837] sm:$0xff] %v1092
        %1101 = vst [vmem:[%s837 + $0x8] sm:$0xff] %v1093
        %1102 = vst [vmem:[%s837 + $0x10] sm:$0xff] %v1094
        %1103 = vst [vmem:[%s837 + $0x18] sm:$0xff] %v1095
        %1104 = vst [vmem:[%s837 + $0x20] sm:$0xff] %v1096
        %1105 = vst [vmem:[%s837 + $0x28] sm:$0xff] %v1097
        %1106 = vst [vmem:[%s837 + $0x30] sm:$0xff] %v1098
        %1107 = vst [vmem:[%s837 + $0x38] sm:$0xff] %v1099
        %s1108 = scalar_lea.vmem [#allocation2], 128
        %v1109 = vld [vmem:[%s1108] sm:$0xff]
        %v1110 = vld [vmem:[%s1108 + $0x8] sm:$0xff]
        %v1111 = vld [vmem:[%s1108 + $0x10] sm:$0xff]
        %v1112 = vld [vmem:[%s1108 + $0x18] sm:$0xff]
        %v1113 = vld [vmem:[%s1108 + $0x20] sm:$0xff]
        %v1114 = vld [vmem:[%s1108 + $0x28] sm:$0xff]
        %v1115 = vld [vmem:[%s1108 + $0x30] sm:$0xff]
        %v1116 = vld [vmem:[%s1108 + $0x38] sm:$0xff]
        %s1117 = scalar_lea.vmem %s459, 512
        %v1118 = vld [vmem:[%s1117] sm:$0xff]
        %v1119 = vld [vmem:[%s1117 + $0x8] sm:$0xff]
        %v1120 = vld [vmem:[%s1117 + $0x10] sm:$0xff]
        %v1121 = vld [vmem:[%s1117 + $0x18] sm:$0xff]
        %v1122 = vld [vmem:[%s1117 + $0x20] sm:$0xff]
        %v1123 = vld [vmem:[%s1117 + $0x28] sm:$0xff]
        %v1124 = vld [vmem:[%s1117 + $0x30] sm:$0xff]
        %v1125 = vld [vmem:[%s1117 + $0x38] sm:$0xff]
        %v1126 = vld [vmem:[%s1117 + $0x40] sm:$0xff]
        %v1127 = vld [vmem:[%s1117 + $0x48] sm:$0xff]
        %v1128 = vld [vmem:[%s1117 + $0x50] sm:$0xff]
        %v1129 = vld [vmem:[%s1117 + $0x58] sm:$0xff]
        %v1130 = vld [vmem:[%s1117 + $0x60] sm:$0xff]
        %v1131 = vld [vmem:[%s1117 + $0x68] sm:$0xff]
        %v1132 = vld [vmem:[%s1117 + $0x70] sm:$0xff]
        %v1133 = vld [vmem:[%s1117 + $0x78] sm:$0xff]
        %v1134 = vld [vmem:[%s1117 + $0x80] sm:$0xff]
        %v1135 = vld [vmem:[%s1117 + $0x88] sm:$0xff]
        %v1136 = vld [vmem:[%s1117 + $0x90] sm:$0xff]
        %v1137 = vld [vmem:[%s1117 + $0x98] sm:$0xff]
        %v1138 = vld [vmem:[%s1117 + $0xa0] sm:$0xff]
        %v1139 = vld [vmem:[%s1117 + $0xa8] sm:$0xff]
        %v1140 = vld [vmem:[%s1117 + $0xb0] sm:$0xff]
        %v1141 = vld [vmem:[%s1117 + $0xb8] sm:$0xff]
        %v1142 = vld [vmem:[%s1117 + $0xc0] sm:$0xff]
        %v1143 = vld [vmem:[%s1117 + $0xc8] sm:$0xff]
        %v1144 = vld [vmem:[%s1117 + $0xd0] sm:$0xff]
        %v1145 = vld [vmem:[%s1117 + $0xd8] sm:$0xff]
        %v1146 = vld [vmem:[%s1117 + $0xe0] sm:$0xff]
        %v1147 = vld [vmem:[%s1117 + $0xe8] sm:$0xff]
        %v1148 = vld [vmem:[%s1117 + $0xf0] sm:$0xff]
        %v1149 = vld [vmem:[%s1117 + $0xf8] sm:$0xff]
        %v1182 = vunpack.c.l.b16 %v1118
        %v1183 = vunpack.c.h.b16 %v1118
        %v1184 = vunpack.c.l.b16 %v1119
        %v1185 = vunpack.c.h.b16 %v1119
        %v1186 = vunpack.c.l.b16 %v1120
        %v1187 = vunpack.c.h.b16 %v1120
        %v1188 = vunpack.c.l.b16 %v1121
        %v1189 = vunpack.c.h.b16 %v1121
        %v1190 = vunpack.c.l.b16 %v1122
        %v1191 = vunpack.c.h.b16 %v1122
        %v1192 = vunpack.c.l.b16 %v1123
        %v1193 = vunpack.c.h.b16 %v1123
        %v1194 = vunpack.c.l.b16 %v1124
        %v1195 = vunpack.c.h.b16 %v1124
        %v1196 = vunpack.c.l.b16 %v1125
        %v1197 = vunpack.c.h.b16 %v1125
        %v1198 = vunpack.c.l.b16 %v1126
        %v1199 = vunpack.c.h.b16 %v1126
        %v1200 = vunpack.c.l.b16 %v1127
        %v1201 = vunpack.c.h.b16 %v1127
        %v1202 = vunpack.c.l.b16 %v1128
        %v1203 = vunpack.c.h.b16 %v1128
        %v1204 = vunpack.c.l.b16 %v1129
        %v1205 = vunpack.c.h.b16 %v1129
        %v1206 = vunpack.c.l.b16 %v1130
        %v1207 = vunpack.c.h.b16 %v1130
        %v1208 = vunpack.c.l.b16 %v1131
        %v1209 = vunpack.c.h.b16 %v1131
        %v1210 = vunpack.c.l.b16 %v1132
        %v1211 = vunpack.c.h.b16 %v1132
        %v1212 = vunpack.c.l.b16 %v1133
        %v1213 = vunpack.c.h.b16 %v1133
        %v1214 = vunpack.c.l.b16 %v1134
        %v1215 = vunpack.c.h.b16 %v1134
        %v1216 = vunpack.c.l.b16 %v1135
        %v1217 = vunpack.c.h.b16 %v1135
        %v1218 = vunpack.c.l.b16 %v1136
        %v1219 = vunpack.c.h.b16 %v1136
        %v1220 = vunpack.c.l.b16 %v1137
        %v1221 = vunpack.c.h.b16 %v1137
        %v1222 = vunpack.c.l.b16 %v1138
        %v1223 = vunpack.c.h.b16 %v1138
        %v1224 = vunpack.c.l.b16 %v1139
        %v1225 = vunpack.c.h.b16 %v1139
        %v1226 = vunpack.c.l.b16 %v1140
        %v1227 = vunpack.c.h.b16 %v1140
        %v1228 = vunpack.c.l.b16 %v1141
        %v1229 = vunpack.c.h.b16 %v1141
        %v1230 = vunpack.c.l.b16 %v1142
        %v1231 = vunpack.c.h.b16 %v1142
        %v1232 = vunpack.c.l.b16 %v1143
        %v1233 = vunpack.c.h.b16 %v1143
        %v1234 = vunpack.c.l.b16 %v1144
        %v1235 = vunpack.c.h.b16 %v1144
        %v1236 = vunpack.c.l.b16 %v1145
        %v1237 = vunpack.c.h.b16 %v1145
        %v1238 = vunpack.c.l.b16 %v1146
        %v1239 = vunpack.c.h.b16 %v1146
        %v1240 = vunpack.c.l.b16 %v1147
        %v1241 = vunpack.c.h.b16 %v1147
        %v1242 = vunpack.c.l.b16 %v1148
        %v1243 = vunpack.c.h.b16 %v1148
        %v1244 = vunpack.c.l.b16 %v1149
        %v1245 = vunpack.c.h.b16 %v1149
        %v1246 = vpack.c.b16 %v1184, %v1182
        %v1247 = vpack.c.b16 %v1185, %v1183
        %v1248 = vpack.c.b16 %v1188, %v1186
        %v1249 = vpack.c.b16 %v1189, %v1187
        %v1250 = vpack.c.b16 %v1192, %v1190
        %v1251 = vpack.c.b16 %v1193, %v1191
        %v1252 = vpack.c.b16 %v1196, %v1194
        %v1253 = vpack.c.b16 %v1197, %v1195
        %v1254 = vpack.c.b16 %v1200, %v1198
        %v1255 = vpack.c.b16 %v1201, %v1199
        %v1256 = vpack.c.b16 %v1204, %v1202
        %v1257 = vpack.c.b16 %v1205, %v1203
        %v1258 = vpack.c.b16 %v1208, %v1206
        %v1259 = vpack.c.b16 %v1209, %v1207
        %v1260 = vpack.c.b16 %v1212, %v1210
        %v1261 = vpack.c.b16 %v1213, %v1211
        %v1262 = vpack.c.b16 %v1216, %v1214
        %v1263 = vpack.c.b16 %v1217, %v1215
        %v1264 = vpack.c.b16 %v1220, %v1218
        %v1265 = vpack.c.b16 %v1221, %v1219
        %v1266 = vpack.c.b16 %v1224, %v1222
        %v1267 = vpack.c.b16 %v1225, %v1223
        %v1268 = vpack.c.b16 %v1228, %v1226
        %v1269 = vpack.c.b16 %v1229, %v1227
        %v1270 = vpack.c.b16 %v1232, %v1230
        %v1271 = vpack.c.b16 %v1233, %v1231
        %v1272 = vpack.c.b16 %v1236, %v1234
        %v1273 = vpack.c.b16 %v1237, %v1235
        %v1274 = vpack.c.b16 %v1240, %v1238
        %v1275 = vpack.c.b16 %v1241, %v1239
        %v1276 = vpack.c.b16 %v1244, %v1242
        %v1277 = vpack.c.b16 %v1245, %v1243
        %1310 = vmatprep.subr.bf16.mxu0 %v1261
        %1311 = vmatpush1.bf16.msra.mxu0 %v1260
        %1312 = vmatprep.subr.bf16.mxu0 %v1259
        %1313 = vmatpush1.bf16.msra.mxu0 %v1258
        %1314 = vmatprep.subr.bf16.mxu0 %v1257
        %1315 = vmatpush1.bf16.msra.mxu0 %v1256
        %1316 = vmatprep.subr.bf16.mxu0 %v1255
        %1317 = vmatpush1.bf16.msra.mxu0 %v1254
        %1318 = vmatprep.subr.bf16.mxu0 %v1253
        %1319 = vmatpush1.bf16.msra.mxu0 %v1252
        %1320 = vmatprep.subr.bf16.mxu0 %v1251
        %1321 = vmatpush1.bf16.msra.mxu0 %v1250
        %1322 = vmatprep.subr.bf16.mxu0 %v1249
        %1323 = vmatpush1.bf16.msra.mxu0 %v1248
        %1324 = vmatprep.subr.bf16.mxu0 %v1247
        %1325 = vmatpush1.bf16.msra.mxu0 %v1246
        %1326 = vmatprep.subr.bf16.mxu0 %v1277
        %1327 = vmatpush2.bf16.msra.mxu0 %v1276
        %1328 = vmatprep.subr.bf16.mxu0 %v1275
        %1329 = vmatpush2.bf16.msra.mxu0 %v1274
        %1330 = vmatprep.subr.bf16.mxu0 %v1273
        %1331 = vmatpush2.bf16.msra.mxu0 %v1272
        %1332 = vmatprep.subr.bf16.mxu0 %v1271
        %1333 = vmatpush2.bf16.msra.mxu0 %v1270
        %1334 = vmatprep.subr.bf16.mxu0 %v1269
        %1335 = vmatpush2.bf16.msra.mxu0 %v1268
        %1336 = vmatprep.subr.bf16.mxu0 %v1267
        %1337 = vmatpush2.bf16.msra.mxu0 %v1266
        %1338 = vmatprep.subr.bf16.mxu0 %v1265
        %1339 = vmatpush2.bf16.msra.mxu0 %v1264
        %1340 = vmatprep.subr.bf16.mxu0 %v1263
        %1341 = vmatpush2.bf16.msra.mxu0 %v1262
        %1342 = vmatprep.mubr.bf16.mxu0 %v565
        %1343 = vmatmul.mubr.bf16.gmra.mxu0 %v564
        %v1344 = vpop.f32.mrf.mxu0
        %v1345 = vadd.f32 0.0, %v1344
        %v1346 = vpop.f32.mrf.mxu0
        %v1347 = vadd.f32 0.0, %v1346
        %v1348 = vpop.f32.mrf.mxu0
        %v1349 = vadd.f32 0.0, %v1348
        %v1350 = vpop.f32.mrf.mxu0
        %v1351 = vadd.f32 0.0, %v1350
        %1352 = vmatprep.mubr.bf16.mxu0 %v567
        %1353 = vmatmul.mubr.bf16.gmra.mxu0 %v566
        %v1354 = vpop.f32.mrf.mxu0
        %v1355 = vadd.f32 0.0, %v1354
        %v1356 = vpop.f32.mrf.mxu0
        %v1357 = vadd.f32 0.0, %v1356
        %v1358 = vpop.f32.mrf.mxu0
        %v1359 = vadd.f32 0.0, %v1358
        %v1360 = vpop.f32.mrf.mxu0
        %v1361 = vadd.f32 0.0, %v1360
        %1362 = vdwg.mxu0
        %v1363 = vadd.f32 %v1109, %v1345
        %v1364 = vadd.f32 %v1110, %v1347
        %v1365 = vadd.f32 %v1111, %v1349
        %v1366 = vadd.f32 %v1112, %v1351
        %v1367 = vadd.f32 %v1113, %v1355
        %v1368 = vadd.f32 %v1114, %v1357
        %v1369 = vadd.f32 %v1115, %v1359
        %v1370 = vadd.f32 %v1116, %v1361
        %1371 = vst [vmem:[%s1108] sm:$0xff] %v1363
        %1372 = vst [vmem:[%s1108 + $0x8] sm:$0xff] %v1364
        %1373 = vst [vmem:[%s1108 + $0x10] sm:$0xff] %v1365
        %1374 = vst [vmem:[%s1108 + $0x18] sm:$0xff] %v1366
        %1375 = vst [vmem:[%s1108 + $0x20] sm:$0xff] %v1367
        %1376 = vst [vmem:[%s1108 + $0x28] sm:$0xff] %v1368
        %1377 = vst [vmem:[%s1108 + $0x30] sm:$0xff] %v1369
        %1378 = vst [vmem:[%s1108 + $0x38] sm:$0xff] %v1370
        %s1379 = scalar_lea.vmem [#allocation2], 192
        %v1380 = vld [vmem:[%s1379] sm:$0xff]
        %v1381 = vld [vmem:[%s1379 + $0x8] sm:$0xff]
        %v1382 = vld [vmem:[%s1379 + $0x10] sm:$0xff]
        %v1383 = vld [vmem:[%s1379 + $0x18] sm:$0xff]
        %v1384 = vld [vmem:[%s1379 + $0x20] sm:$0xff]
        %v1385 = vld [vmem:[%s1379 + $0x28] sm:$0xff]
        %v1386 = vld [vmem:[%s1379 + $0x30] sm:$0xff]
        %v1387 = vld [vmem:[%s1379 + $0x38] sm:$0xff]
        %s1388 = scalar_lea.vmem %s459, 768
        %v1389 = vld [vmem:[%s1388] sm:$0xff]
        %v1390 = vld [vmem:[%s1388 + $0x8] sm:$0xff]
        %v1391 = vld [vmem:[%s1388 + $0x10] sm:$0xff]
        %v1392 = vld [vmem:[%s1388 + $0x18] sm:$0xff]
        %v1393 = vld [vmem:[%s1388 + $0x20] sm:$0xff]
        %v1394 = vld [vmem:[%s1388 + $0x28] sm:$0xff]
        %v1395 = vld [vmem:[%s1388 + $0x30] sm:$0xff]
        %v1396 = vld [vmem:[%s1388 + $0x38] sm:$0xff]
        %v1397 = vld [vmem:[%s1388 + $0x40] sm:$0xff]
        %v1398 = vld [vmem:[%s1388 + $0x48] sm:$0xff]
        %v1399 = vld [vmem:[%s1388 + $0x50] sm:$0xff]
        %v1400 = vld [vmem:[%s1388 + $0x58] sm:$0xff]
        %v1401 = vld [vmem:[%s1388 + $0x60] sm:$0xff]
        %v1402 = vld [vmem:[%s1388 + $0x68] sm:$0xff]
        %v1403 = vld [vmem:[%s1388 + $0x70] sm:$0xff]
        %v1404 = vld [vmem:[%s1388 + $0x78] sm:$0xff]
        %v1405 = vld [vmem:[%s1388 + $0x80] sm:$0xff]
        %v1406 = vld [vmem:[%s1388 + $0x88] sm:$0xff]
        %v1407 = vld [vmem:[%s1388 + $0x90] sm:$0xff]
        %v1408 = vld [vmem:[%s1388 + $0x98] sm:$0xff]
        %v1409 = vld [vmem:[%s1388 + $0xa0] sm:$0xff]
        %v1410 = vld [vmem:[%s1388 + $0xa8] sm:$0xff]
        %v1411 = vld [vmem:[%s1388 + $0xb0] sm:$0xff]
        %v1412 = vld [vmem:[%s1388 + $0xb8] sm:$0xff]
        %v1413 = vld [vmem:[%s1388 + $0xc0] sm:$0xff]
        %v1414 = vld [vmem:[%s1388 + $0xc8] sm:$0xff]
        %v1415 = vld [vmem:[%s1388 + $0xd0] sm:$0xff]
        %v1416 = vld [vmem:[%s1388 + $0xd8] sm:$0xff]
        %v1417 = vld [vmem:[%s1388 + $0xe0] sm:$0xff]
        %v1418 = vld [vmem:[%s1388 + $0xe8] sm:$0xff]
        %v1419 = vld [vmem:[%s1388 + $0xf0] sm:$0xff]
        %v1420 = vld [vmem:[%s1388 + $0xf8] sm:$0xff]
        %v1453 = vunpack.c.l.b16 %v1389
        %v1454 = vunpack.c.h.b16 %v1389
        %v1455 = vunpack.c.l.b16 %v1390
        %v1456 = vunpack.c.h.b16 %v1390
        %v1457 = vunpack.c.l.b16 %v1391
        %v1458 = vunpack.c.h.b16 %v1391
        %v1459 = vunpack.c.l.b16 %v1392
        %v1460 = vunpack.c.h.b16 %v1392
        %v1461 = vunpack.c.l.b16 %v1393
        %v1462 = vunpack.c.h.b16 %v1393
        %v1463 = vunpack.c.l.b16 %v1394
        %v1464 = vunpack.c.h.b16 %v1394
        %v1465 = vunpack.c.l.b16 %v1395
        %v1466 = vunpack.c.h.b16 %v1395
        %v1467 = vunpack.c.l.b16 %v1396
        %v1468 = vunpack.c.h.b16 %v1396
        %v1469 = vunpack.c.l.b16 %v1397
        %v1470 = vunpack.c.h.b16 %v1397
        %v1471 = vunpack.c.l.b16 %v1398
        %v1472 = vunpack.c.h.b16 %v1398
        %v1473 = vunpack.c.l.b16 %v1399
        %v1474 = vunpack.c.h.b16 %v1399
        %v1475 = vunpack.c.l.b16 %v1400
        %v1476 = vunpack.c.h.b16 %v1400
        %v1477 = vunpack.c.l.b16 %v1401
        %v1478 = vunpack.c.h.b16 %v1401
        %v1479 = vunpack.c.l.b16 %v1402
        %v1480 = vunpack.c.h.b16 %v1402
        %v1481 = vunpack.c.l.b16 %v1403
        %v1482 = vunpack.c.h.b16 %v1403
        %v1483 = vunpack.c.l.b16 %v1404
        %v1484 = vunpack.c.h.b16 %v1404
        %v1485 = vunpack.c.l.b16 %v1405
        %v1486 = vunpack.c.h.b16 %v1405
        %v1487 = vunpack.c.l.b16 %v1406
        %v1488 = vunpack.c.h.b16 %v1406
        %v1489 = vunpack.c.l.b16 %v1407
        %v1490 = vunpack.c.h.b16 %v1407
        %v1491 = vunpack.c.l.b16 %v1408
        %v1492 = vunpack.c.h.b16 %v1408
        %v1493 = vunpack.c.l.b16 %v1409
        %v1494 = vunpack.c.h.b16 %v1409
        %v1495 = vunpack.c.l.b16 %v1410
        %v1496 = vunpack.c.h.b16 %v1410
        %v1497 = vunpack.c.l.b16 %v1411
        %v1498 = vunpack.c.h.b16 %v1411
        %v1499 = vunpack.c.l.b16 %v1412
        %v1500 = vunpack.c.h.b16 %v1412
        %v1501 = vunpack.c.l.b16 %v1413
        %v1502 = vunpack.c.h.b16 %v1413
        %v1503 = vunpack.c.l.b16 %v1414
        %v1504 = vunpack.c.h.b16 %v1414
        %v1505 = vunpack.c.l.b16 %v1415
        %v1506 = vunpack.c.h.b16 %v1415
        %v1507 = vunpack.c.l.b16 %v1416
        %v1508 = vunpack.c.h.b16 %v1416
        %v1509 = vunpack.c.l.b16 %v1417
        %v1510 = vunpack.c.h.b16 %v1417
        %v1511 = vunpack.c.l.b16 %v1418
        %v1512 = vunpack.c.h.b16 %v1418
        %v1513 = vunpack.c.l.b16 %v1419
        %v1514 = vunpack.c.h.b16 %v1419
        %v1515 = vunpack.c.l.b16 %v1420
        %v1516 = vunpack.c.h.b16 %v1420
        %v1517 = vpack.c.b16 %v1455, %v1453
        %v1518 = vpack.c.b16 %v1456, %v1454
        %v1519 = vpack.c.b16 %v1459, %v1457
        %v1520 = vpack.c.b16 %v1460, %v1458
        %v1521 = vpack.c.b16 %v1463, %v1461
        %v1522 = vpack.c.b16 %v1464, %v1462
        %v1523 = vpack.c.b16 %v1467, %v1465
        %v1524 = vpack.c.b16 %v1468, %v1466
        %v1525 = vpack.c.b16 %v1471, %v1469
        %v1526 = vpack.c.b16 %v1472, %v1470
        %v1527 = vpack.c.b16 %v1475, %v1473
        %v1528 = vpack.c.b16 %v1476, %v1474
        %v1529 = vpack.c.b16 %v1479, %v1477
        %v1530 = vpack.c.b16 %v1480, %v1478
        %v1531 = vpack.c.b16 %v1483, %v1481
        %v1532 = vpack.c.b16 %v1484, %v1482
        %v1533 = vpack.c.b16 %v1487, %v1485
        %v1534 = vpack.c.b16 %v1488, %v1486
        %v1535 = vpack.c.b16 %v1491, %v1489
        %v1536 = vpack.c.b16 %v1492, %v1490
        %v1537 = vpack.c.b16 %v1495, %v1493
        %v1538 = vpack.c.b16 %v1496, %v1494
        %v1539 = vpack.c.b16 %v1499, %v1497
        %v1540 = vpack.c.b16 %v1500, %v1498
        %v1541 = vpack.c.b16 %v1503, %v1501
        %v1542 = vpack.c.b16 %v1504, %v1502
        %v1543 = vpack.c.b16 %v1507, %v1505
        %v1544 = vpack.c.b16 %v1508, %v1506
        %v1545 = vpack.c.b16 %v1511, %v1509
        %v1546 = vpack.c.b16 %v1512, %v1510
        %v1547 = vpack.c.b16 %v1515, %v1513
        %v1548 = vpack.c.b16 %v1516, %v1514
        %1581 = vmatprep.subr.bf16.mxu0 %v1532
        %1582 = vmatpush1.bf16.msra.mxu0 %v1531
        %1583 = vmatprep.subr.bf16.mxu0 %v1530
        %1584 = vmatpush1.bf16.msra.mxu0 %v1529
        %1585 = vmatprep.subr.bf16.mxu0 %v1528
        %1586 = vmatpush1.bf16.msra.mxu0 %v1527
        %1587 = vmatprep.subr.bf16.mxu0 %v1526
        %1588 = vmatpush1.bf16.msra.mxu0 %v1525
        %1589 = vmatprep.subr.bf16.mxu0 %v1524
        %1590 = vmatpush1.bf16.msra.mxu0 %v1523
        %1591 = vmatprep.subr.bf16.mxu0 %v1522
        %1592 = vmatpush1.bf16.msra.mxu0 %v1521
        %1593 = vmatprep.subr.bf16.mxu0 %v1520
        %1594 = vmatpush1.bf16.msra.mxu0 %v1519
        %1595 = vmatprep.subr.bf16.mxu0 %v1518
        %1596 = vmatpush1.bf16.msra.mxu0 %v1517
        %1597 = vmatprep.subr.bf16.mxu0 %v1548
        %1598 = vmatpush2.bf16.msra.mxu0 %v1547
        %1599 = vmatprep.subr.bf16.mxu0 %v1546
        %1600 = vmatpush2.bf16.msra.mxu0 %v1545
        %1601 = vmatprep.subr.bf16.mxu0 %v1544
        %1602 = vmatpush2.bf16.msra.mxu0 %v1543
        %1603 = vmatprep.subr.bf16.mxu0 %v1542
        %1604 = vmatpush2.bf16.msra.mxu0 %v1541
        %1605 = vmatprep.subr.bf16.mxu0 %v1540
        %1606 = vmatpush2.bf16.msra.mxu0 %v1539
        %1607 = vmatprep.subr.bf16.mxu0 %v1538
        %1608 = vmatpush2.bf16.msra.mxu0 %v1537
        %1609 = vmatprep.subr.bf16.mxu0 %v1536
        %1610 = vmatpush2.bf16.msra.mxu0 %v1535
        %1611 = vmatprep.subr.bf16.mxu0 %v1534
        %1612 = vmatpush2.bf16.msra.mxu0 %v1533
        %1613 = vmatprep.mubr.bf16.mxu0 %v565
        %1614 = vmatmul.mubr.bf16.gmra.mxu0 %v564
        %v1615 = vpop.f32.mrf.mxu0
        %v1616 = vadd.f32 0.0, %v1615
        %v1617 = vpop.f32.mrf.mxu0
        %v1618 = vadd.f32 0.0, %v1617
        %v1619 = vpop.f32.mrf.mxu0
        %v1620 = vadd.f32 0.0, %v1619
        %v1621 = vpop.f32.mrf.mxu0
        %v1622 = vadd.f32 0.0, %v1621
        %1623 = vmatprep.mubr.bf16.mxu0 %v567
        %1624 = vmatmul.mubr.bf16.gmra.mxu0 %v566
        %v1625 = vpop.f32.mrf.mxu0
        %v1626 = vadd.f32 0.0, %v1625
        %v1627 = vpop.f32.mrf.mxu0
        %v1628 = vadd.f32 0.0, %v1627
        %v1629 = vpop.f32.mrf.mxu0
        %v1630 = vadd.f32 0.0, %v1629
        %v1631 = vpop.f32.mrf.mxu0
        %v1632 = vadd.f32 0.0, %v1631
        %1633 = vdwg.mxu0
        %v1634 = vadd.f32 %v1380, %v1616
        %v1635 = vadd.f32 %v1381, %v1618
        %v1636 = vadd.f32 %v1382, %v1620
        %v1637 = vadd.f32 %v1383, %v1622
        %v1638 = vadd.f32 %v1384, %v1626
        %v1639 = vadd.f32 %v1385, %v1628
        %v1640 = vadd.f32 %v1386, %v1630
        %v1641 = vadd.f32 %v1387, %v1632
        %1642 = vst [vmem:[%s1379] sm:$0xff] %v1634
        %1643 = vst [vmem:[%s1379 + $0x8] sm:$0xff] %v1635
        %1644 = vst [vmem:[%s1379 + $0x10] sm:$0xff] %v1636
        %1645 = vst [vmem:[%s1379 + $0x18] sm:$0xff] %v1637
        %1646 = vst [vmem:[%s1379 + $0x20] sm:$0xff] %v1638
        %1647 = vst [vmem:[%s1379 + $0x28] sm:$0xff] %v1639
        %1648 = vst [vmem:[%s1379 + $0x30] sm:$0xff] %v1640
        %1649 = vst [vmem:[%s1379 + $0x38] sm:$0xff] %v1641
        %s1650 = scalar_lea.vmem [#allocation2], 256
        %v1651 = vld [vmem:[%s1650] sm:$0xff]
        %v1652 = vld [vmem:[%s1650 + $0x8] sm:$0xff]
        %v1653 = vld [vmem:[%s1650 + $0x10] sm:$0xff]
        %v1654 = vld [vmem:[%s1650 + $0x18] sm:$0xff]
        %v1655 = vld [vmem:[%s1650 + $0x20] sm:$0xff]
        %v1656 = vld [vmem:[%s1650 + $0x28] sm:$0xff]
        %v1657 = vld [vmem:[%s1650 + $0x30] sm:$0xff]
        %v1658 = vld [vmem:[%s1650 + $0x38] sm:$0xff]
        %s1659 = scalar_lea.vmem %s459, 1024
        %v1660 = vld [vmem:[%s1659] sm:$0xff]
        %v1661 = vld [vmem:[%s1659 + $0x8] sm:$0xff]
        %v1662 = vld [vmem:[%s1659 + $0x10] sm:$0xff]
        %v1663 = vld [vmem:[%s1659 + $0x18] sm:$0xff]
        %v1664 = vld [vmem:[%s1659 + $0x20] sm:$0xff]
        %v1665 = vld [vmem:[%s1659 + $0x28] sm:$0xff]
        %v1666 = vld [vmem:[%s1659 + $0x30] sm:$0xff]
        %v1667 = vld [vmem:[%s1659 + $0x38] sm:$0xff]
        %v1668 = vld [vmem:[%s1659 + $0x40] sm:$0xff]
        %v1669 = vld [vmem:[%s1659 + $0x48] sm:$0xff]
        %v1670 = vld [vmem:[%s1659 + $0x50] sm:$0xff]
        %v1671 = vld [vmem:[%s1659 + $0x58] sm:$0xff]
        %v1672 = vld [vmem:[%s1659 + $0x60] sm:$0xff]
        %v1673 = vld [vmem:[%s1659 + $0x68] sm:$0xff]
        %v1674 = vld [vmem:[%s1659 + $0x70] sm:$0xff]
        %v1675 = vld [vmem:[%s1659 + $0x78] sm:$0xff]
        %v1676 = vld [vmem:[%s1659 + $0x80] sm:$0xff]
        %v1677 = vld [vmem:[%s1659 + $0x88] sm:$0xff]
        %v1678 = vld [vmem:[%s1659 + $0x90] sm:$0xff]
        %v1679 = vld [vmem:[%s1659 + $0x98] sm:$0xff]
        %v1680 = vld [vmem:[%s1659 + $0xa0] sm:$0xff]
        %v1681 = vld [vmem:[%s1659 + $0xa8] sm:$0xff]
        %v1682 = vld [vmem:[%s1659 + $0xb0] sm:$0xff]
        %v1683 = vld [vmem:[%s1659 + $0xb8] sm:$0xff]
        %v1684 = vld [vmem:[%s1659 + $0xc0] sm:$0xff]
        %v1685 = vld [vmem:[%s1659 + $0xc8] sm:$0xff]
        %v1686 = vld [vmem:[%s1659 + $0xd0] sm:$0xff]
        %v1687 = vld [vmem:[%s1659 + $0xd8] sm:$0xff]
        %v1688 = vld [vmem:[%s1659 + $0xe0] sm:$0xff]
        %v1689 = vld [vmem:[%s1659 + $0xe8] sm:$0xff]
        %v1690 = vld [vmem:[%s1659 + $0xf0] sm:$0xff]
        %v1691 = vld [vmem:[%s1659 + $0xf8] sm:$0xff]
        %v1724 = vunpack.c.l.b16 %v1660
        %v1725 = vunpack.c.h.b16 %v1660
        %v1726 = vunpack.c.l.b16 %v1661
        %v1727 = vunpack.c.h.b16 %v1661
        %v1728 = vunpack.c.l.b16 %v1662
        %v1729 = vunpack.c.h.b16 %v1662
        %v1730 = vunpack.c.l.b16 %v1663
        %v1731 = vunpack.c.h.b16 %v1663
        %v1732 = vunpack.c.l.b16 %v1664
        %v1733 = vunpack.c.h.b16 %v1664
        %v1734 = vunpack.c.l.b16 %v1665
        %v1735 = vunpack.c.h.b16 %v1665
        %v1736 = vunpack.c.l.b16 %v1666
        %v1737 = vunpack.c.h.b16 %v1666
        %v1738 = vunpack.c.l.b16 %v1667
        %v1739 = vunpack.c.h.b16 %v1667
        %v1740 = vunpack.c.l.b16 %v1668
        %v1741 = vunpack.c.h.b16 %v1668
        %v1742 = vunpack.c.l.b16 %v1669
        %v1743 = vunpack.c.h.b16 %v1669
        %v1744 = vunpack.c.l.b16 %v1670
        %v1745 = vunpack.c.h.b16 %v1670
        %v1746 = vunpack.c.l.b16 %v1671
        %v1747 = vunpack.c.h.b16 %v1671
        %v1748 = vunpack.c.l.b16 %v1672
        %v1749 = vunpack.c.h.b16 %v1672
        %v1750 = vunpack.c.l.b16 %v1673
        %v1751 = vunpack.c.h.b16 %v1673
        %v1752 = vunpack.c.l.b16 %v1674
        %v1753 = vunpack.c.h.b16 %v1674
        %v1754 = vunpack.c.l.b16 %v1675
        %v1755 = vunpack.c.h.b16 %v1675
        %v1756 = vunpack.c.l.b16 %v1676
        %v1757 = vunpack.c.h.b16 %v1676
        %v1758 = vunpack.c.l.b16 %v1677
        %v1759 = vunpack.c.h.b16 %v1677
        %v1760 = vunpack.c.l.b16 %v1678
        %v1761 = vunpack.c.h.b16 %v1678
        %v1762 = vunpack.c.l.b16 %v1679
        %v1763 = vunpack.c.h.b16 %v1679
        %v1764 = vunpack.c.l.b16 %v1680
        %v1765 = vunpack.c.h.b16 %v1680
        %v1766 = vunpack.c.l.b16 %v1681
        %v1767 = vunpack.c.h.b16 %v1681
        %v1768 = vunpack.c.l.b16 %v1682
        %v1769 = vunpack.c.h.b16 %v1682
        %v1770 = vunpack.c.l.b16 %v1683
        %v1771 = vunpack.c.h.b16 %v1683
        %v1772 = vunpack.c.l.b16 %v1684
        %v1773 = vunpack.c.h.b16 %v1684
        %v1774 = vunpack.c.l.b16 %v1685
        %v1775 = vunpack.c.h.b16 %v1685
        %v1776 = vunpack.c.l.b16 %v1686
        %v1777 = vunpack.c.h.b16 %v1686
        %v1778 = vunpack.c.l.b16 %v1687
        %v1779 = vunpack.c.h.b16 %v1687
        %v1780 = vunpack.c.l.b16 %v1688
        %v1781 = vunpack.c.h.b16 %v1688
        %v1782 = vunpack.c.l.b16 %v1689
        %v1783 = vunpack.c.h.b16 %v1689
        %v1784 = vunpack.c.l.b16 %v1690
        %v1785 = vunpack.c.h.b16 %v1690
        %v1786 = vunpack.c.l.b16 %v1691
        %v1787 = vunpack.c.h.b16 %v1691
        %v1788 = vpack.c.b16 %v1726, %v1724
        %v1789 = vpack.c.b16 %v1727, %v1725
        %v1790 = vpack.c.b16 %v1730, %v1728
        %v1791 = vpack.c.b16 %v1731, %v1729
        %v1792 = vpack.c.b16 %v1734, %v1732
        %v1793 = vpack.c.b16 %v1735, %v1733
        %v1794 = vpack.c.b16 %v1738, %v1736
        %v1795 = vpack.c.b16 %v1739, %v1737
        %v1796 = vpack.c.b16 %v1742, %v1740
        %v1797 = vpack.c.b16 %v1743, %v1741
        %v1798 = vpack.c.b16 %v1746, %v1744
        %v1799 = vpack.c.b16 %v1747, %v1745
        %v1800 = vpack.c.b16 %v1750, %v1748
        %v1801 = vpack.c.b16 %v1751, %v1749
        %v1802 = vpack.c.b16 %v1754, %v1752
        %v1803 = vpack.c.b16 %v1755, %v1753
        %v1804 = vpack.c.b16 %v1758, %v1756
        %v1805 = vpack.c.b16 %v1759, %v1757
        %v1806 = vpack.c.b16 %v1762, %v1760
        %v1807 = vpack.c.b16 %v1763, %v1761
        %v1808 = vpack.c.b16 %v1766, %v1764
        %v1809 = vpack.c.b16 %v1767, %v1765
        %v1810 = vpack.c.b16 %v1770, %v1768
        %v1811 = vpack.c.b16 %v1771, %v1769
        %v1812 = vpack.c.b16 %v1774, %v1772
        %v1813 = vpack.c.b16 %v1775, %v1773
        %v1814 = vpack.c.b16 %v1778, %v1776
        %v1815 = vpack.c.b16 %v1779, %v1777
        %v1816 = vpack.c.b16 %v1782, %v1780
        %v1817 = vpack.c.b16 %v1783, %v1781
        %v1818 = vpack.c.b16 %v1786, %v1784
        %v1819 = vpack.c.b16 %v1787, %v1785
        %1852 = vmatprep.subr.bf16.mxu0 %v1803
        %1853 = vmatpush1.bf16.msra.mxu0 %v1802
        %1854 = vmatprep.subr.bf16.mxu0 %v1801
        %1855 = vmatpush1.bf16.msra.mxu0 %v1800
        %1856 = vmatprep.subr.bf16.mxu0 %v1799
        %1857 = vmatpush1.bf16.msra.mxu0 %v1798
        %1858 = vmatprep.subr.bf16.mxu0 %v1797
        %1859 = vmatpush1.bf16.msra.mxu0 %v1796
        %1860 = vmatprep.subr.bf16.mxu0 %v1795
        %1861 = vmatpush1.bf16.msra.mxu0 %v1794
        %1862 = vmatprep.subr.bf16.mxu0 %v1793
        %1863 = vmatpush1.bf16.msra.mxu0 %v1792
        %1864 = vmatprep.subr.bf16.mxu0 %v1791
        %1865 = vmatpush1.bf16.msra.mxu0 %v1790
        %1866 = vmatprep.subr.bf16.mxu0 %v1789
        %1867 = vmatpush1.bf16.msra.mxu0 %v1788
        %1868 = vmatprep.subr.bf16.mxu0 %v1819
        %1869 = vmatpush2.bf16.msra.mxu0 %v1818
        %1870 = vmatprep.subr.bf16.mxu0 %v1817
        %1871 = vmatpush2.bf16.msra.mxu0 %v1816
        %1872 = vmatprep.subr.bf16.mxu0 %v1815
        %1873 = vmatpush2.bf16.msra.mxu0 %v1814
        %1874 = vmatprep.subr.bf16.mxu0 %v1813
        %1875 = vmatpush2.bf16.msra.mxu0 %v1812
        %1876 = vmatprep.subr.bf16.mxu0 %v1811
        %1877 = vmatpush2.bf16.msra.mxu0 %v1810
        %1878 = vmatprep.subr.bf16.mxu0 %v1809
        %1879 = vmatpush2.bf16.msra.mxu0 %v1808
        %1880 = vmatprep.subr.bf16.mxu0 %v1807
        %1881 = vmatpush2.bf16.msra.mxu0 %v1806
        %1882 = vmatprep.subr.bf16.mxu0 %v1805
        %1883 = vmatpush2.bf16.msra.mxu0 %v1804
        %1884 = vmatprep.mubr.bf16.mxu0 %v565
        %1885 = vmatmul.mubr.bf16.gmra.mxu0 %v564
        %v1886 = vpop.f32.mrf.mxu0
        %v1887 = vadd.f32 0.0, %v1886
        %v1888 = vpop.f32.mrf.mxu0
        %v1889 = vadd.f32 0.0, %v1888
        %v1890 = vpop.f32.mrf.mxu0
        %v1891 = vadd.f32 0.0, %v1890
        %v1892 = vpop.f32.mrf.mxu0
        %v1893 = vadd.f32 0.0, %v1892
        %1894 = vmatprep.mubr.bf16.mxu0 %v567
        %1895 = vmatmul.mubr.bf16.gmra.mxu0 %v566
        %v1896 = vpop.f32.mrf.mxu0
        %v1897 = vadd.f32 0.0, %v1896
        %v1898 = vpop.f32.mrf.mxu0
        %v1899 = vadd.f32 0.0, %v1898
        %v1900 = vpop.f32.mrf.mxu0
        %v1901 = vadd.f32 0.0, %v1900
        %v1902 = vpop.f32.mrf.mxu0
        %v1903 = vadd.f32 0.0, %v1902
        %1904 = vdwg.mxu0
        %v1905 = vadd.f32 %v1651, %v1887
        %v1906 = vadd.f32 %v1652, %v1889
        %v1907 = vadd.f32 %v1653, %v1891
        %v1908 = vadd.f32 %v1654, %v1893
        %v1909 = vadd.f32 %v1655, %v1897
        %v1910 = vadd.f32 %v1656, %v1899
        %v1911 = vadd.f32 %v1657, %v1901
        %v1912 = vadd.f32 %v1658, %v1903
        %1913 = vst [vmem:[%s1650] sm:$0xff] %v1905
        %1914 = vst [vmem:[%s1650 + $0x8] sm:$0xff] %v1906
        %1915 = vst [vmem:[%s1650 + $0x10] sm:$0xff] %v1907
        %1916 = vst [vmem:[%s1650 + $0x18] sm:$0xff] %v1908
        %1917 = vst [vmem:[%s1650 + $0x20] sm:$0xff] %v1909
        %1918 = vst [vmem:[%s1650 + $0x28] sm:$0xff] %v1910
        %1919 = vst [vmem:[%s1650 + $0x30] sm:$0xff] %v1911
        %1920 = vst [vmem:[%s1650 + $0x38] sm:$0xff] %v1912
        // Predicated region
        $region75: #{mla_forward.3} parent=65 // pred_check
          %p1921 = pneg %p512
        $region76: #{mla_forward.3} parent=65 // pred_check_branch
          %1923 = sbr.rel (%p1921) target = $region78
        $region77: #{mla_forward.3} parent=65 // pred_region
          %v1924 = vld [vmem:[%s368] sm:$0xff]
          %v1925 = vld [vmem:[%s368 + $0x8] sm:$0xff]
          %v1926 = vld [vmem:[%s368 + $0x10] sm:$0xff]
          %v1927 = vld [vmem:[%s368 + $0x18] sm:$0xff]
          %v1928 = vunpack.c.l.bf16 %v1924
          %v1929 = vunpack.c.h.bf16 %v1924
          %v1930 = vunpack.c.l.bf16 %v1925
          %v1931 = vunpack.c.h.bf16 %v1925
          %v1932 = vunpack.c.l.bf16 %v1926
          %v1933 = vunpack.c.h.bf16 %v1926
          %v1934 = vunpack.c.l.bf16 %v1927
          %v1935 = vunpack.c.h.bf16 %v1927
          %s1936 = scalar_lea.vmem %s368, 32 [#allocation3]
          %v1937 = vld [vmem:[%s1936] sm:$0xff]
          %v1938 = vld [vmem:[%s1936 + $0x8] sm:$0xff]
          %v1939 = vld [vmem:[%s1936 + $0x10] sm:$0xff]
          %v1940 = vld [vmem:[%s1936 + $0x18] sm:$0xff]
          %v1941 = vunpack.c.l.bf16 %v1937
          %v1942 = vunpack.c.h.bf16 %v1937
          %v1943 = vunpack.c.l.bf16 %v1938
          %v1944 = vunpack.c.h.bf16 %v1938
          %v1945 = vunpack.c.l.bf16 %v1939
          %v1946 = vunpack.c.h.bf16 %v1939
          %v1947 = vunpack.c.l.bf16 %v1940
          %v1948 = vunpack.c.h.bf16 %v1940
          %v1949 = vld [vmem:[#allocation2] sm:$0xff]
          %v1950 = vld [vmem:[#allocation2 + $0x8] sm:$0xff]
          %v1951 = vld [vmem:[#allocation2 + $0x10] sm:$0xff]
          %v1952 = vld [vmem:[#allocation2 + $0x18] sm:$0xff]
          %v1953 = vld [vmem:[#allocation2 + $0x20] sm:$0xff]
          %v1954 = vld [vmem:[#allocation2 + $0x28] sm:$0xff]
          %v1955 = vld [vmem:[#allocation2 + $0x30] sm:$0xff]
          %v1956 = vld [vmem:[#allocation2 + $0x38] sm:$0xff]
          %v1957 = vmul.f32 %v1949, %v1928
          %v1958 = vmul.f32 %v1950, %v1929
          %v1959 = vmul.f32 %v1951, %v1930
          %v1960 = vmul.f32 %v1952, %v1931
          %v1961 = vmul.f32 %v1953, %v1932
          %v1962 = vmul.f32 %v1954, %v1933
          %v1963 = vmul.f32 %v1955, %v1934
          %v1964 = vmul.f32 %v1956, %v1935
          %v1965 = vld [vmem:[%s837] sm:$0xff]
          %v1966 = vld [vmem:[%s837 + $0x8] sm:$0xff]
          %v1967 = vld [vmem:[%s837 + $0x10] sm:$0xff]
          %v1968 = vld [vmem:[%s837 + $0x18] sm:$0xff]
          %v1969 = vld [vmem:[%s837 + $0x20] sm:$0xff]
          %v1970 = vld [vmem:[%s837 + $0x28] sm:$0xff]
          %v1971 = vld [vmem:[%s837 + $0x30] sm:$0xff]
          %v1972 = vld [vmem:[%s837 + $0x38] sm:$0xff]
          %v1973 = vmul.f32 %v1965, %v1941
          %v1974 = vmul.f32 %v1966, %v1942
          %v1975 = vmul.f32 %v1967, %v1943
          %v1976 = vmul.f32 %v1968, %v1944
          %v1977 = vmul.f32 %v1969, %v1945
          %v1978 = vmul.f32 %v1970, %v1946
          %v1979 = vmul.f32 %v1971, %v1947
          %v1980 = vmul.f32 %v1972, %v1948
          %v1981 = vadd.f32 %v1957, %v1973
          %v1982 = vadd.f32 %v1958, %v1974
          %v1983 = vadd.f32 %v1959, %v1975
          %v1984 = vadd.f32 %v1960, %v1976
          %v1985 = vadd.f32 %v1961, %v1977
          %v1986 = vadd.f32 %v1962, %v1978
          %v1987 = vadd.f32 %v1963, %v1979
          %v1988 = vadd.f32 %v1964, %v1980
          %v1989 = vpack.c.bf16 %v1983, %v1981
          %v1990 = vpack.c.bf16 %v1984, %v1982
          %v1991 = vpack.c.bf16 %v1987, %v1985
          %v1992 = vpack.c.bf16 %v1988, %v1986
          %v1997 = vunpack.c.l.b16 %v1989
          %v1998 = vunpack.c.l.b16 %v1990
          %v1999 = vunpack.c.h.b16 %v1989
          %v2000 = vunpack.c.h.b16 %v1990
          %v2001 = vunpack.c.l.b16 %v1991
          %v2002 = vunpack.c.l.b16 %v1992
          %v2003 = vunpack.c.h.b16 %v1991
          %v2004 = vunpack.c.h.b16 %v1992
          %v2005 = vpack.c.b16 %v1998, %v1997
          %v2006 = vpack.c.b16 %v2000, %v1999
          %v2007 = vpack.c.b16 %v2002, %v2001
          %v2008 = vpack.c.b16 %v2004, %v2003
          %2013 = vst [vmem:[%s485] sm:$0xff] %v2005
          %2014 = vst [vmem:[%s485 + $0x8] sm:$0xff] %v2006
          %2015 = vst [vmem:[%s485 + $0x10] sm:$0xff] %v2007
          %2016 = vst [vmem:[%s485 + $0x18] sm:$0xff] %v2008
          %v2017 = vld [vmem:[%s1108] sm:$0xff]
          %v2018 = vld [vmem:[%s1108 + $0x8] sm:$0xff]
          %v2019 = vld [vmem:[%s1108 + $0x10] sm:$0xff]
          %v2020 = vld [vmem:[%s1108 + $0x18] sm:$0xff]
          %v2021 = vld [vmem:[%s1108 + $0x20] sm:$0xff]
          %v2022 = vld [vmem:[%s1108 + $0x28] sm:$0xff]
          %v2023 = vld [vmem:[%s1108 + $0x30] sm:$0xff]
          %v2024 = vld [vmem:[%s1108 + $0x38] sm:$0xff]
          %v2025 = vmul.f32 %v2017, %v1928
          %v2026 = vmul.f32 %v2018, %v1929
          %v2027 = vmul.f32 %v2019, %v1930
          %v2028 = vmul.f32 %v2020, %v1931
          %v2029 = vmul.f32 %v2021, %v1932
          %v2030 = vmul.f32 %v2022, %v1933
          %v2031 = vmul.f32 %v2023, %v1934
          %v2032 = vmul.f32 %v2024, %v1935
          %v2033 = vld [vmem:[%s1379] sm:$0xff]
          %v2034 = vld [vmem:[%s1379 + $0x8] sm:$0xff]
          %v2035 = vld [vmem:[%s1379 + $0x10] sm:$0xff]
          %v2036 = vld [vmem:[%s1379 + $0x18] sm:$0xff]
          %v2037 = vld [vmem:[%s1379 + $0x20] sm:$0xff]
          %v2038 = vld [vmem:[%s1379 + $0x28] sm:$0xff]
          %v2039 = vld [vmem:[%s1379 + $0x30] sm:$0xff]
          %v2040 = vld [vmem:[%s1379 + $0x38] sm:$0xff]
          %v2041 = vmul.f32 %v2033, %v1941
          %v2042 = vmul.f32 %v2034, %v1942
          %v2043 = vmul.f32 %v2035, %v1943
          %v2044 = vmul.f32 %v2036, %v1944
          %v2045 = vmul.f32 %v2037, %v1945
          %v2046 = vmul.f32 %v2038, %v1946
          %v2047 = vmul.f32 %v2039, %v1947
          %v2048 = vmul.f32 %v2040, %v1948
          %v2049 = vadd.f32 %v2025, %v2041
          %v2050 = vadd.f32 %v2026, %v2042
          %v2051 = vadd.f32 %v2027, %v2043
          %v2052 = vadd.f32 %v2028, %v2044
          %v2053 = vadd.f32 %v2029, %v2045
          %v2054 = vadd.f32 %v2030, %v2046
          %v2055 = vadd.f32 %v2031, %v2047
          %v2056 = vadd.f32 %v2032, %v2048
          %v2057 = vpack.c.bf16 %v2051, %v2049
          %v2058 = vpack.c.bf16 %v2052, %v2050
          %v2059 = vpack.c.bf16 %v2055, %v2053
          %v2060 = vpack.c.bf16 %v2056, %v2054
          %v2065 = vunpack.c.l.b16 %v2057
          %v2066 = vunpack.c.l.b16 %v2058
          %v2067 = vunpack.c.h.b16 %v2057
          %v2068 = vunpack.c.h.b16 %v2058
          %v2069 = vunpack.c.l.b16 %v2059
          %v2070 = vunpack.c.l.b16 %v2060
          %v2071 = vunpack.c.h.b16 %v2059
          %v2072 = vunpack.c.h.b16 %v2060
          %v2073 = vpack.c.b16 %v2066, %v2065
          %v2074 = vpack.c.b16 %v2068, %v2067
          %v2075 = vpack.c.b16 %v2070, %v2069
          %v2076 = vpack.c.b16 %v2072, %v2071
          %2081 = vst [vmem:[%s497] sm:$0xff] %v2073
          %2082 = vst [vmem:[%s497 + $0x8] sm:$0xff] %v2074
          %2083 = vst [vmem:[%s497 + $0x10] sm:$0xff] %v2075
          %2084 = vst [vmem:[%s497 + $0x18] sm:$0xff] %v2076
          %v2085 = vld [vmem:[%s1650] sm:$0xff]
          %v2086 = vld [vmem:[%s1650 + $0x8] sm:$0xff]
          %v2087 = vld [vmem:[%s1650 + $0x10] sm:$0xff]
          %v2088 = vld [vmem:[%s1650 + $0x18] sm:$0xff]
          %v2089 = vld [vmem:[%s1650 + $0x20] sm:$0xff]
          %v2090 = vld [vmem:[%s1650 + $0x28] sm:$0xff]
          %v2091 = vld [vmem:[%s1650 + $0x30] sm:$0xff]
          %v2092 = vld [vmem:[%s1650 + $0x38] sm:$0xff]
          %v2093 = vpack.c.bf16 %v2087, %v2085
          %v2094 = vpack.c.bf16 %v2088, %v2086
          %v2095 = vpack.c.bf16 %v2091, %v2089
          %v2096 = vpack.c.bf16 %v2092, %v2090
          %v2101 = vunpack.c.l.b16 %v2093
          %v2102 = vunpack.c.l.b16 %v2094
          %v2103 = vunpack.c.h.b16 %v2093
          %v2104 = vunpack.c.h.b16 %v2094
          %v2105 = vunpack.c.l.b16 %v2095
          %v2106 = vunpack.c.l.b16 %v2096
          %v2107 = vunpack.c.h.b16 %v2095
          %v2108 = vunpack.c.h.b16 %v2096
          %v2109 = vpack.c.b16 %v2102, %v2101
          %v2110 = vpack.c.b16 %v2104, %v2103
          %v2111 = vpack.c.b16 %v2106, %v2105
          %v2112 = vpack.c.b16 %v2108, %v2107
          %2117 = vst [vmem:[%s509] sm:$0xff] %v2109
          %2118 = vst [vmem:[%s509 + $0x8] sm:$0xff] %v2110
          %2119 = vst [vmem:[%s509 + $0x10] sm:$0xff] %v2111
          %2120 = vst [vmem:[%s509 + $0x18] sm:$0xff] %v2112
        $region78: #{mla_forward.3} parent=65 // pred_fallthru
          _
        %s2121 = smul.u32 4, %s22
        %s2122 = smul.u32 2, %s23
        %p2123 = scmp.lt.s32.totalorder %s2121, 15
        %s2124 = scalar_select %p2123, %s2121, 15
        %p2125 = scmp.lt.s32.totalorder %s2122, 1
        %s2126 = scalar_select %p2125, %s2122, 1
        %s2127 = smul.addr %s2124, 2
        %s2128 = sadd.s32 %s2126, %s2127
        %s2129 = smul.addr %s2128, 4
        %s2130 = scalar_lea.vmem %s3, %s2129
        %s2131 = smul.u32 4, %s22
        %s2132 = smul.u32 2, %s23
        %p2133 = scmp.lt.s32.totalorder %s2131, 15
        %s2134 = scalar_select %p2133, %s2131, 15
        %p2135 = scmp.lt.s32.totalorder %s2132, 1
        %s2136 = scalar_select %p2135, %s2132, 1
        %s2137 = smul.addr %s2134, 2
        %s2138 = sadd.s32 %s2136, %s2137
        %s2139 = smul.addr %s2138, 4
        %s2140 = scalar_lea.vmem %s4, %s2139
        %s2141 = smul.u32 4, %s22
        %s2142 = smul.u32 2, %s23
        %p2143 = scmp.lt.s32.totalorder %s2141, 15
        %s2144 = scalar_select %p2143, %s2141, 15
        %p2145 = scmp.lt.s32.totalorder %s2142, 1
        %s2146 = scalar_select %p2145, %s2142, 1
        %s2147 = smul.addr %s2144, 2
        %s2148 = sadd.s32 %s2146, %s2147
        %s2149 = smul.addr %s2148, 4
        %s2150 = scalar_lea.vmem %s5, %s2149
        // Predicated region
        $region79: #{mla_forward.3} parent=65 // pred_check
          %p2151 = pneg %p164
        $region80: #{mla_forward.3} parent=65 // pred_check_branch
          %2153 = sbr.rel (%p2151) target = $region82
        $region81: #{mla_forward.3} parent=65 // pred_region
          %s2154 = smul.u32 4, %s22
          %s2155 = smul.u32 2, %s23
        $region82: #{mla_forward.3} parent=65 // pred_fallthru
          _
        // Predicated region
        $region83: #{mla_forward.3} parent=65 // pred_check
          %p2156 = pneg %p192
        $region84: #{mla_forward.3} parent=65 // pred_check_branch
          %2158 = sbr.rel (%p2156) target = $region86
        $region85: #{mla_forward.3} parent=65 // pred_region
          %s2159 = smul.u32 4, %s22
          %s2160 = smul.u32 2, %s23
        $region86: #{mla_forward.3} parent=65 // pred_fallthru
          _
        // Predicated region
        $region87: #{mla_forward.3} parent=65 // pred_check
          %p2161 = pneg %p220
        $region88: #{mla_forward.3} parent=65 // pred_check_branch
          %2163 = sbr.rel (%p2161) target = $region90
        $region89: #{mla_forward.3} parent=65 // pred_region
          %s2164 = smul.u32 4, %s22
          %s2165 = smul.u32 2, %s23
        $region90: #{mla_forward.3} parent=65 // pred_fallthru
          _
      $region66: #{mla_forward.3} parent=5 // pred_fallthru
        _
      %p2166 = scmp.le.s32.totalorder 2, %s12
      // Predicated region
      $region91: #{mla_forward.3} parent=5 // pred_check
        %p2167 = pneg %p2166
      $region92: #{mla_forward.3} parent=5 // pred_check_branch
        %2169 = sbr.rel (%p2167) target = $region94
      $region93: #{mla_forward.3} parent=5 // pred_region
        %s2170 = ssub.s32 %s12, 2
        // Predicated region
        $region95: #{mla_forward.3} parent=93 // pred_check
          %p2171 = pneg %p170
        $region96: #{mla_forward.3} parent=93 // pred_check_branch
          %2173 = sbr.rel (%p2171) target = $region98
        $region97: #{mla_forward.3} parent=93 // pred_region
          %s2174 = smul.u32 4, %s25
          %s2175 = smul.u32 2, %s26
          %p2176 = scmp.lt.s32.totalorder %s2174, 15
          %s2177 = scalar_select %p2176, %s2174, 15
          %p2178 = scmp.lt.s32.totalorder %s2175, 1
          %s2179 = scalar_select %p2178, %s2175, 1
          %s2180 = smul.addr %s2177, 2
          %s2181 = sadd.s32 %s2179, %s2180
          %s2182 = smul.addr %s2181, 4
          %s2183 = scalar_lea.vmem %s3, %s2182
        $region98: #{mla_forward.3} parent=93 // pred_fallthru
          _
        // Predicated region
        $region99: #{mla_forward.3} parent=93 // pred_check
          %p2184 = pneg %p198
        $region100: #{mla_forward.3} parent=93 // pred_check_branch
          %2186 = sbr.rel (%p2184) target = $region102
        $region101: #{mla_forward.3} parent=93 // pred_region
          %s2187 = smul.u32 4, %s25
          %s2188 = smul.u32 2, %s26
          %p2189 = scmp.lt.s32.totalorder %s2187, 15
          %s2190 = scalar_select %p2189, %s2187, 15
          %p2191 = scmp.lt.s32.totalorder %s2188, 1
          %s2192 = scalar_select %p2191, %s2188, 1
          %s2193 = smul.addr %s2190, 2
          %s2194 = sadd.s32 %s2192, %s2193
          %s2195 = smul.addr %s2194, 4
          %s2196 = scalar_lea.vmem %s4, %s2195
        $region102: #{mla_forward.3} parent=93 // pred_fallthru
          _
        // Predicated region
        $region103: #{mla_forward.3} parent=93 // pred_check
          %p2197 = pneg %p226
        $region104: #{mla_forward.3} parent=93 // pred_check_branch
          %2199 = sbr.rel (%p2197) target = $region106
        $region105: #{mla_forward.3} parent=93 // pred_region
          %s2200 = smul.u32 4, %s25
          %s2201 = smul.u32 2, %s26
          %p2202 = scmp.lt.s32.totalorder %s2200, 15
          %s2203 = scalar_select %p2202, %s2200, 15
          %p2204 = scmp.lt.s32.totalorder %s2201, 1
          %s2205 = scalar_select %p2204, %s2201, 1
          %s2206 = smul.addr %s2203, 2
          %s2207 = sadd.s32 %s2205, %s2206
          %s2208 = smul.addr %s2207, 4
          %s2209 = scalar_lea.vmem %s5, %s2208
        $region106: #{mla_forward.3} parent=93 // pred_fallthru
          _
      $region94: #{mla_forward.3} parent=5 // pred_fallthru
        _
    $region6: #{mla_forward.3} parent=1 // loop_footer
      %s16 = sadd.s32 1, %s12
    $region7: #{mla_forward.3} parent=1 // loop_footer_branch
      %11 = sbr.rel target = $region3
    $region8: #{mla_forward.3} parent=1 // loop_exit
      _

</llo_original>
